<compile_context>
chip_gen: v7x
topology: tpu7x:2x2x1
jax: 0.10.0
libtpu: 0.0.40
codegen_flags: <defaults>
</compile_context>

<pallas_src>
import functools
import math

import numpy as np
import jax
import jax.numpy as jnp
from jax import lax
from jax.experimental import pallas as pl
from jax.experimental.pallas import tpu as pltpu


# ----------------------------------------------------------------------------
# Sorting-network construction (host-side numpy, deterministic).
# Each layer is (split_a, split_b, combine_min, combine_max):
#   split_a/split_b : (k, n)  pick the "low"/"high" wire of each comparator
#   combine_min/max : (n, k)  scatter min/max results back to wire positions
# Pass-through wires are encoded with 0.5/0.5 combine weights (identity).
# ----------------------------------------------------------------------------
def odd_even_network(n):
    layers = n
    network = []
    shifted = False
    even = (n % 2 == 0)

    for _ in range(layers):
        if even:
            k = n // 2 + (1 if shifted else 0)
        else:
            k = n // 2 + 1

        split_a = np.zeros((k, n), np.float32)
        split_b = np.zeros((k, n), np.float32)
        combine_min = np.zeros((n, k), np.float32)
        combine_max = np.zeros((n, k), np.float32)
        count = 0

        # pass-through of wire 0 in shifted layers
        if shifted:
            split_a[count, 0] = 1.0
            split_b[count, 0] = 1.0
            combine_min[0, count] = 0.5
            combine_max[0, count] = 0.5
            count += 1

        start = 1 if shifted else 0
        for i in range(start, n - 1, 2):
            split_a[count, i] = 1.0
            split_b[count, i + 1] = 1.0
            combine_min[i, count] = 1.0
            combine_max[i + 1, count] = 1.0
            count += 1

        # pass-through of the last wire when the comparator chain misses it
        if count < k:
            split_a[count, n - 1] = 1.0
            split_b[count, n - 1] = 1.0
            combine_min[n - 1, count] = 0.5
            combine_max[n - 1, count] = 0.5
            count += 1

        assert count == k
        network.append((split_a, split_b, combine_min, combine_max))
        shifted = not shifted

    return network


def bitonic_network(n):
    # TODO(synk): bitonic sorting-network construction not ported; 'odd_even' covers the forward-pass semantics.
    raise NotImplementedError("bitonic sorting network construction not implemented")


# ----------------------------------------------------------------------------
# In-kernel math helpers
# ----------------------------------------------------------------------------
_TAN_PI_8 = 0.4142135623730951
_TAN_3PI_8 = 2.414213562373095


def _atan_f32(x):
    """float32 arctangent from VPU-friendly primitives (Cephes atanf scheme).
    jnp.arctan has no guaranteed Mosaic lowering, so expand manually."""
    sgn = jnp.where(x < 0.0, -1.0, 1.0)
    ax = jnp.abs(x)
    big = ax > _TAN_3PI_8
    mid = (ax > _TAN_PI_8) & (~big)
    z = jnp.where(big, -1.0 / jnp.maximum(ax, 1.0),
                  jnp.where(mid, (ax - 1.0) / (ax + 1.0), ax))
    y0 = jnp.where(big, math.pi / 2.0, jnp.where(mid, math.pi / 4.0, 0.0))
    zz = z * z
    p = ((((8.05374449538e-2 * zz - 1.38776856032e-1) * zz
           + 1.99777106478e-1) * zz - 3.33329491539e-1) * zz * z + z)
    return sgn * (y0 + p)


def _alpha(a, b, steepness, art_lambda, distribution):
    d = b - a
    if distribution == 'cauchy':
        return _atan_f32(steepness * d) * (1.0 / math.pi) + 0.5
    if distribution == 'logistic':
        return jax.nn.sigmoid(steepness * d)
    if distribution == 'logistic_phi':
        denom = jnp.exp(art_lambda * jnp.log(jnp.abs(d) + 1e-10))
        return jax.nn.sigmoid(steepness * d / denom)
    raise NotImplementedError(f'distribution `{distribution}` unknown')


def _round_up(x, m):
    return ((x + m - 1) // m) * m


# ----------------------------------------------------------------------------
# One sorting-network layer applied to a batch tile.
#   x    : (tile_b, n)        running sorted values
#   perm : (tile_b * n, n)    running soft permutations, batch-stacked
#   sab  : (n, 2K)  == [split_a.T | split_b.T]
#   cmm  : (2K, n)  == [combine_min.T ; combine_max.T]
# ----------------------------------------------------------------------------
def _apply_layer(x, perm, sab, cmm, *, n, K, tile_b,
                 steepness, art_lambda, distribution):
    # --- values path -------------------------------------------------------
    ab = jnp.dot(x, sab, preferred_element_type=jnp.float32)      # (tile_b, 2K)
    av = ab[:, :K]
    bv = ab[:, K:]
    alpha = _alpha(av, bv, steepness, art_lambda, distribution)   # (tile_b, K)

    d = av - bv
    x_min = bv + alpha * d                       # alpha*a + (1-alpha)*b
    x_max = (av + bv) - x_min                    # (1-alpha)*a + alpha*b
    x_new = jnp.dot(jnp.concatenate([x_min, x_max], axis=-1), cmm,
                    preferred_element_type=jnp.float32)           # (tile_b, n)

    # --- permutation path (one fused matmul for the whole batch tile) -------
    ab_p = jnp.dot(perm, sab, preferred_element_type=jnp.float32)  # (tile_b*n, 2K)
    a_p = ab_p[:, :K]
    b_p = ab_p[:, K:]
    # broadcast alpha[b] over the n permutation rows of batch b
    # (sublane-aligned merge: tile_b > 1 only when n % 8 == 0)
    alpha_rows = jnp.broadcast_to(
        alpha[:, None, :], (tile_b, n, K)).reshape(tile_b * n, K)
    w_min = b_p + alpha_rows * (a_p - b_p)
    w_max = (a_p + b_p) - w_min
    perm_new = jnp.dot(jnp.concatenate([w_min, w_max], axis=-1), cmm,
                       preferred_element_type=jnp.float32)         # (tile_b*n, n)
    return x_new, perm_new


def _identity_perm(n, tile_b):
    eye = (lax.broadcasted_iota(jnp.int32, (n, n), 0)
           == lax.broadcasted_iota(jnp.int32, (n, n), 1)).astype(jnp.float32)
    return jnp.broadcast_to(eye[None], (tile_b, n, n))


# ----------------------------------------------------------------------------
# Resident-weights kernel: grid=(num_batch_tiles,), the whole layer loop runs
# in-kernel; SAB/CMM are DMA'd into VMEM once (constant block index).
# ----------------------------------------------------------------------------
def _diffsort_resident_kernel(x_ref, sab_ref, cmm_ref, out_x_ref, out_p_ref, *,
                              n, K, tile_b, num_layers,
                              steepness, art_lambda, distribution):
    x0 = x_ref[0]                                            # (tile_b, n)
    perm0 = _identity_perm(n, tile_b).reshape(tile_b * n, n)  # (tile_b*n, n)

    def body(l, carry):
        x, perm = carry
        return _apply_layer(x, perm, sab_ref[l], cmm_ref[l],
                            n=n, K=K, tile_b=tile_b, steepness=steepness,
                            art_lambda=art_lambda, distribution=distribution)

    if num_layers <= 32:
        x_f, perm_f = lax.fori_loop(0, num_layers, body, (x0, perm0),
                                    unroll=True)
    else:
        x_f, perm_f = lax.fori_loop(0, num_layers, body, (x0, perm0))

    out_x_ref[0] = x_f
    out_p_ref[...] = perm_f.reshape(tile_b, n, n)


# ----------------------------------------------------------------------------
# Streamed fallback kernel: grid=(num_batch_tiles, L); weights streamed per
# layer; the running x / perm accumulate directly in the output refs (their
# block index is constant across the layer axis, so they stay VMEM-resident).
# ----------------------------------------------------------------------------
def _diffsort_streamed_kernel(x_ref, sab_ref, cmm_ref, out_x_ref, out_p_ref, *,
                              n, K, tile_b,
                              steepness, art_lambda, distribution):
    layer = pl.program_id(1)

    @pl.when(layer == 0)
    def _init():
        out_x_ref[0] = x_ref[0]
        out_p_ref[...] = _identity_perm(n, tile_b)

    x = out_x_ref[0]                                         # (tile_b, n)
    perm = out_p_ref[...].reshape(tile_b * n, n)
    x_new, perm_new = _apply_layer(x, perm, sab_ref[0], cmm_ref[0],
                                   n=n, K=K, tile_b=tile_b, steepness=steepness,
                                   art_lambda=art_lambda,
                                   distribution=distribution)
    out_x_ref[0] = x_new
    out_p_ref[...] = perm_new.reshape(tile_b, n, n)


def _pick_tile_b(B, n):
    """Batch rows per grid step.  >1 only when n is sublane-aligned."""
    if n % 8 != 0:
        return 1
    best = 1
    for t in range(1, B + 1):
        if B % t != 0:
            continue
        if t * n <= 1024 and t * n * n * 4 <= (4 << 20):
            best = t
    return best


# ----------------------------------------------------------------------------
# Module-like wrapper
# ----------------------------------------------------------------------------
class CustomDiffSortNet:
    """JAX/Pallas port of the PyTorch CustomDiffSortNet forward pass."""

    def __init__(self, sorting_network_type, size, steepness=10.0,
                 art_lambda=0.25, interpolation_type=None, distribution='cauchy'):
        self.sorting_network_type = sorting_network_type
        self.size = size
        if sorting_network_type == 'odd_even':
            self.network = odd_even_network(size)
        elif sorting_network_type == 'bitonic':
            self.network = bitonic_network(size)
        else:
            raise NotImplementedError(f'Sorting network `{sorting_network_type}` unknown.')
        if interpolation_type is not None:
            assert (distribution is None or distribution == 'cauchy'
                    or distribution == interpolation_type)
            distribution = interpolation_type
        self.steepness = float(steepness)
        self.art_lambda = float(art_lambda)
        self.distribution = distribution
        self._stack_network()

    def _stack_network(self):
        """Merge the 4 per-layer matrices into 2 (SAB / CMM), transposed for
        right-multiplication, comparator axis padded to a multiple of 128."""
        net = self.network
        L, n = len(net), self.size
        k_max = max(m[0].shape[0] for m in net)
        K = _round_up(max(k_max, 1), 128)          # 128-aligned half-width
        sab = np.zeros((L, n, 2 * K), np.float32)  # [sa.T | sb.T]
        cmm = np.zeros((L, 2 * K, n), np.float32)  # [cmin.T ; cmax.T]
        for l, (sa, sb, cmin, cmax) in enumerate(net):
            k = sa.shape[0]
            sab[l, :, :k] = sa.T
            sab[l, :, K:K + k] = sb.T
            cmm[l, :k, :] = cmin.T
            cmm[l, K:K + k, :] = cmax.T
        self.num_layers = L
        self.K = K
        self.sab = jnp.asarray(sab)
        self.cmm = jnp.asarray(cmm)

    def __call__(self, vectors):
        assert vectors.ndim == 2
        assert vectors.shape[1] == self.size
        B, n = vectors.shape
        L, K = self.num_layers, self.K

        tile_b = _pick_tile_b(B, n)
        nbt = B // tile_b
        x3 = vectors.astype(jnp.float32).reshape(nbt, tile_b, n)

        common = dict(n=n, K=K, tile_b=tile_b, steepness=self.steepness,
                      art_lambda=self.art_lambda, distribution=self.distribution)

        # --- VMEM budgeting (v7x has only 64 MiB physical VMEM) -------------
        weight_bytes = int(self.sab.size + self.cmm.size) * 4
        io_bytes = 2 * (tile_b * n * n * 4) + 4 * (tile_b * n * 4)
        work_bytes = 3 * (tile_b * n * (2 * K) * 4) + 2 * (tile_b * n * n * 4)
        resident_bytes = 2 * weight_bytes + io_bytes + work_bytes
        use_resident = resident_bytes <= (28 << 20)

        if use_resident:
            kernel = functools.partial(_diffsort_resident_kernel,
                                       num_layers=L, **common)
            grid_spec = pltpu.PrefetchScalarGridSpec(
                num_scalar_prefetch=0,
                grid=(nbt,),
                in_specs=[
                    pl.BlockSpec((1, tile_b, n), lambda b: (b, 0, 0)),
                    # constant block index -> network DMA'd to VMEM once
                    pl.BlockSpec((L, n, 2 * K), lambda b: (0, 0, 0)),
                    pl.BlockSpec((L, 2 * K, n), lambda b: (0, 0, 0)),
                ],
                out_specs=[
                    pl.BlockSpec((1, tile_b, n), lambda b: (b, 0, 0)),
                    pl.BlockSpec((tile_b, n, n), lambda b: (b, 0, 0)),
                ],
            )
            dim_sem = ("parallel",)
            planned = resident_bytes
        else:
            kernel = functools.partial(_diffsort_streamed_kernel, **common)
            grid_spec = pltpu.PrefetchScalarGridSpec(
                num_scalar_prefetch=0,
                grid=(nbt, L),
                in_specs=[
                    pl.BlockSpec((1, tile_b, n), lambda b, l: (b, 0, 0)),
                    pl.BlockSpec((1, n, 2 * K), lambda b, l: (l, 0, 0)),
                    pl.BlockSpec((1, 2 * K, n), lambda b, l: (l, 0, 0)),
                ],
                out_specs=[
                    pl.BlockSpec((1, tile_b, n), lambda b, l: (b, 0, 0)),
                    pl.BlockSpec((tile_b, n, n), lambda b, l: (b, 0, 0)),
                ],
            )
            dim_sem = ("parallel", "arbitrary")
            planned = 2 * 2 * (n * 2 * K * 4) + io_bytes + work_bytes

        cp_kwargs = dict(dimension_semantics=dim_sem)
        if planned > (12 << 20):
            # stay below v7x's 64 MiB physical VMEM; above v5e's 16 MiB default
            cp_kwargs["vmem_limit_bytes"] = int(
                min(max(planned * 2, 32 << 20), 48 << 20))

        sorted3, perm = pl.pallas_call(
            kernel,
            out_shape=(jax.ShapeDtypeStruct((nbt, tile_b, n), jnp.float32),
                       jax.ShapeDtypeStruct((B, n, n), jnp.float32)),
            grid_spec=grid_spec,
            compiler_params=pltpu.CompilerParams(**cp_kwargs),
        )(x3, self.sab, self.cmm)

        return sorted3.reshape(B, n), perm


# ----------------------------------------------------------------------------
# Pure-JAX reference (mirrors torch execute_sort) for a correctness check.
# ----------------------------------------------------------------------------
def reference_sort(vectors, network, steepness, art_lambda, distribution):
    x = vectors.astype(jnp.float32)
    B, n = x.shape
    X = jnp.broadcast_to(jnp.eye(n, dtype=x.dtype), (B, n, n))
    for sa, sb, cmin, cmax in network:
        sa, sb = jnp.asarray(sa), jnp.asarray(sb)
        cmin, cmax = jnp.asarray(cmin), jnp.asarray(cmax)
        a = x @ sa.T
        b = x @ sb.T
        d = b - a
        if distribution == 'cauchy':
            alpha = jnp.arctan(steepness * d) / jnp.pi + 0.5
        elif distribution == 'logistic':
            alpha = jax.nn.sigmoid(steepness * d)
        elif distribution == 'logistic_phi':
            alpha = jax.nn.sigmoid(
                steepness * d / jnp.power(jnp.abs(d) + 1e-10, art_lambda))
        else:
            raise NotImplementedError(distribution)
        aX = jnp.einsum('bij,kj->bik', X, sa)
        bX = jnp.einsum('bij,kj->bik', X, sb)
        w_min = alpha[:, None, :] * aX + (1 - alpha)[:, None, :] * bX
        w_max = (1 - alpha)[:, None, :] * aX + alpha[:, None, :] * bX
        X = (jnp.einsum('bik,jk->bij', w_max, cmax)
             + jnp.einsum('bik,jk->bij', w_min, cmin))
        x = ((alpha * a + (1 - alpha) * b) @ cmin.T
             + ((1 - alpha) * a + alpha * b) @ cmax.T)
    return x, X


if __name__ == "__main__":
    B, N = 4, 8
    key = jax.random.PRNGKey(0)
    vectors = jax.random.normal(key, (B, N), dtype=jnp.float32)

    sorter = CustomDiffSortNet('odd_even', size=N)  # defaults: steepness=10, cauchy
    sorted_out, perm = sorter(vectors)
    sorted_out, perm = jax.block_until_ready((sorted_out, perm))

    ref_sorted, ref_perm = reference_sort(
        vectors, sorter.network, sorter.steepness, sorter.art_lambda, sorter.distribution)

    assert sorted_out.shape == (B, N) and perm.shape == (B, N, N)
    assert jnp.allclose(sorted_out, ref_sorted, atol=1e-3, rtol=1e-3)
    assert jnp.allclose(perm, ref_perm, atol=1e-3, rtol=1e-3)

    print("KERNEL_OK")
</pallas_src>

<mosaic_0001>
module attributes {stable_mosaic.version = 11 : i64} {
  func.func @_diffsort_resident_kernel(%arg0: i32, %arg1: memref<1x4x8xf32, #tpu.memory_space<vmem>>, %arg2: memref<8x8x256xf32, #tpu.memory_space<vmem>>, %arg3: memref<8x256x8xf32, #tpu.memory_space<vmem>>, %arg4: memref<1x4x8xf32, #tpu.memory_space<vmem>>, %arg5: memref<4x8x8xf32, #tpu.memory_space<vmem>>) attributes {dimension_semantics = [#tpu.dimension_semantics<parallel>], iteration_bounds = array<i64: 1>, scalar_prefetch = 0 : i64, scratch_operands = 0 : i64, tpu.core_type = #tpu.core_type<tc>, window_params = [{transform_indices = @transform_0, window_bounds = array<i64: 1, 4, 8>}, {pipeline_mode = #tpu.pipeline_mode<synchronous>, transform_indices = @transform_1, window_bounds = array<i64: 8, 8, 256>}, {pipeline_mode = #tpu.pipeline_mode<synchronous>, transform_indices = @transform_2, window_bounds = array<i64: 8, 256, 8>}, {transform_indices = @transform_3, window_bounds = array<i64: 1, 4, 8>}, {transform_indices = @transform_4, window_bounds = array<i64: 4, 8, 8>}]} {
    %c0 = arith.constant 0 : index
    %c0_0 = arith.constant 0 : index
    %c0_1 = arith.constant 0 : index
    %0 = vector.load %arg1[%c0, %c0_0, %c0_1] : memref<1x4x8xf32, #tpu.memory_space<vmem>>, vector<1x4x8xf32>
    %1 = vector.shape_cast %0 : vector<1x4x8xf32> to vector<4x8xf32>
    %2 = tpu.iota {dimensions = array<i32: 0>} : vector<8x8xi32>
    %3 = tpu.iota {dimensions = array<i32: 1>} : vector<8x8xi32>
    %4 = arith.cmpi eq, %2, %3 : vector<8x8xi32>
    %5 = arith.extui %4 : vector<8x8xi1> to vector<8x8xi32>
    %6 = arith.sitofp %5 : vector<8x8xi32> to vector<8x8xf32>
    %7 = vector.shape_cast %6 : vector<8x8xf32> to vector<1x8x8xf32>
    %8 = vector.shape_cast %7 : vector<1x8x8xf32> to vector<1x8x8xf32>
    %9 = vector.broadcast %8 : vector<1x8x8xf32> to vector<4x8x8xf32>
    %10 = vector.shape_cast %9 : vector<4x8x8xf32> to vector<32x8xf32>
    %c0_i32 = arith.constant 0 : i32
    %11 = arith.index_cast %c0_i32 : i32 to index
    %c0_2 = arith.constant 0 : index
    %c0_3 = arith.constant 0 : index
    %12 = vector.load %arg2[%11, %c0_2, %c0_3] : memref<8x8x256xf32, #tpu.memory_space<vmem>>, vector<1x8x256xf32>
    %13 = vector.shape_cast %12 : vector<1x8x256xf32> to vector<8x256xf32>
    %14 = arith.index_cast %c0_i32 : i32 to index
    %c0_4 = arith.constant 0 : index
    %c0_5 = arith.constant 0 : index
    %15 = vector.load %arg3[%14, %c0_4, %c0_5] : memref<8x256x8xf32, #tpu.memory_space<vmem>>, vector<1x256x8xf32>
    %16 = vector.shape_cast %15 : vector<1x256x8xf32> to vector<256x8xf32>
    %cst = arith.constant dense<0.000000e+00> : vector<4x256xf32>
    %17 = tpu.matmul %1, %13, %cst {dimension_numbers = #tpu.dot_dimension_numbers<[1], [0], [0], [1], [0, 0, 1, 1], [], []>} : vector<4x8xf32>, vector<8x256xf32>, vector<4x256xf32> -> vector<4x256xf32>
    %18 = vector.extract_strided_slice %17 {offsets = [0, 0], sizes = [4, 128], strides = [1, 1]} : vector<4x256xf32> to vector<4x128xf32>
    %19 = vector.extract_strided_slice %17 {offsets = [0, 128], sizes = [4, 128], strides = [1, 1]} : vector<4x256xf32> to vector<4x128xf32>
    %20 = arith.subf %19, %18 : vector<4x128xf32>
    %cst_6 = arith.constant 1.000000e+01 : f32
    %21 = vector.broadcast %cst_6 : f32 to vector<4x128xf32>
    %22 = arith.mulf %21, %20 : vector<4x128xf32>
    %cst_7 = arith.constant 0.000000e+00 : f32
    %23 = vector.broadcast %cst_7 : f32 to vector<4x128xf32>
    %24 = arith.cmpf olt, %22, %23 : vector<4x128xf32>
    %cst_8 = arith.constant -1.000000e+00 : f32
    %cst_9 = arith.constant 1.000000e+00 : f32
    %25 = vector.broadcast %cst_8 : f32 to vector<4x128xf32>
    %26 = vector.broadcast %cst_9 : f32 to vector<4x128xf32>
    %27 = arith.select %24, %25, %26 : vector<4x128xi1>, vector<4x128xf32>
    %28 = math.absf %22 : vector<4x128xf32>
    %cst_10 = arith.constant 2.41421366 : f32
    %29 = vector.broadcast %cst_10 : f32 to vector<4x128xf32>
    %30 = arith.cmpf ogt, %28, %29 : vector<4x128xf32>
    %cst_11 = arith.constant 0.414213568 : f32
    %31 = vector.broadcast %cst_11 : f32 to vector<4x128xf32>
    %32 = arith.cmpf ogt, %28, %31 : vector<4x128xf32>
    %cst_12 = arith.constant dense<true> : vector<4x128xi1>
    %33 = arith.xori %30, %cst_12 : vector<4x128xi1>
    %34 = arith.andi %32, %33 : vector<4x128xi1>
    %cst_13 = arith.constant 1.000000e+00 : f32
    %35 = vector.broadcast %cst_13 : f32 to vector<4x128xf32>
    %36 = arith.maximumf %28, %35 : vector<4x128xf32>
    %cst_14 = arith.constant -1.000000e+00 : f32
    %37 = vector.broadcast %cst_14 : f32 to vector<4x128xf32>
    %38 = arith.divf %37, %36 : vector<4x128xf32>
    %cst_15 = arith.constant 1.000000e+00 : f32
    %39 = vector.broadcast %cst_15 : f32 to vector<4x128xf32>
    %40 = arith.subf %28, %39 : vector<4x128xf32>
    %cst_16 = arith.constant 1.000000e+00 : f32
    %41 = vector.broadcast %cst_16 : f32 to vector<4x128xf32>
    %42 = arith.addf %28, %41 : vector<4x128xf32>
    %43 = arith.divf %40, %42 : vector<4x128xf32>
    %44 = arith.select %34, %43, %28 : vector<4x128xi1>, vector<4x128xf32>
    %45 = arith.select %30, %38, %44 : vector<4x128xi1>, vector<4x128xf32>
    %cst_17 = arith.constant 0.785398185 : f32
    %cst_18 = arith.constant 0.000000e+00 : f32
    %46 = vector.broadcast %cst_17 : f32 to vector<4x128xf32>
    %47 = vector.broadcast %cst_18 : f32 to vector<4x128xf32>
    %48 = arith.select %34, %46, %47 : vector<4x128xi1>, vector<4x128xf32>
    %cst_19 = arith.constant 1.57079637 : f32
    %49 = vector.broadcast %cst_19 : f32 to vector<4x128xf32>
    %50 = arith.select %30, %49, %48 : vector<4x128xi1>, vector<4x128xf32>
    %51 = arith.mulf %45, %45 : vector<4x128xf32>
    %cst_20 = arith.constant 0.0805374458 : f32
    %52 = vector.broadcast %cst_20 : f32 to vector<4x128xf32>
    %53 = arith.mulf %52, %51 : vector<4x128xf32>
    %cst_21 = arith.constant 0.138776854 : f32
    %54 = vector.broadcast %cst_21 : f32 to vector<4x128xf32>
    %55 = arith.subf %53, %54 : vector<4x128xf32>
    %56 = arith.mulf %55, %51 : vector<4x128xf32>
    %cst_22 = arith.constant 0.199777111 : f32
    %57 = vector.broadcast %cst_22 : f32 to vector<4x128xf32>
    %58 = arith.addf %56, %57 : vector<4x128xf32>
    %59 = arith.mulf %58, %51 : vector<4x128xf32>
    %cst_23 = arith.constant 0.333329499 : f32
    %60 = vector.broadcast %cst_23 : f32 to vector<4x128xf32>
    %61 = arith.subf %59, %60 : vector<4x128xf32>
    %62 = arith.mulf %61, %51 : vector<4x128xf32>
    %63 = arith.mulf %62, %45 : vector<4x128xf32>
    %64 = arith.addf %63, %45 : vector<4x128xf32>
    %65 = arith.addf %50, %64 : vector<4x128xf32>
    %66 = arith.mulf %27, %65 : vector<4x128xf32>
    %cst_24 = arith.constant 0.318309873 : f32
    %67 = vector.broadcast %cst_24 : f32 to vector<4x128xf32>
    %68 = arith.mulf %66, %67 : vector<4x128xf32>
    %cst_25 = arith.constant 5.000000e-01 : f32
    %69 = vector.broadcast %cst_25 : f32 to vector<4x128xf32>
    %70 = arith.addf %68, %69 : vector<4x128xf32>
    %71 = arith.subf %18, %19 : vector<4x128xf32>
    %72 = arith.mulf %70, %71 : vector<4x128xf32>
    %73 = arith.addf %19, %72 : vector<4x128xf32>
    %74 = arith.addf %18, %19 : vector<4x128xf32>
    %75 = arith.subf %74, %73 : vector<4x128xf32>
    %76 = tpu.concatenate %73, %75 in 1 : vector<4x128xf32>, vector<4x128xf32> -> vector<4x256xf32>
    %cst_26 = arith.constant dense<0.000000e+00> : vector<4x8xf32>
    %77 = tpu.matmul %76, %16, %cst_26 {dimension_numbers = #tpu.dot_dimension_numbers<[1], [0], [0], [1], [0, 0, 1, 1], [], []>} : vector<4x256xf32>, vector<256x8xf32>, vector<4x8xf32> -> vector<4x8xf32>
    %cst_27 = arith.constant dense<0.000000e+00> : vector<32x256xf32>
    %78 = tpu.matmul %10, %13, %cst_27 {dimension_numbers = #tpu.dot_dimension_numbers<[1], [0], [0], [1], [0, 0, 1, 1], [], []>} : vector<32x8xf32>, vector<8x256xf32>, vector<32x256xf32> -> vector<32x256xf32>
    %79 = vector.extract_strided_slice %78 {offsets = [0, 0], sizes = [32, 128], strides = [1, 1]} : vector<32x256xf32> to vector<32x128xf32>
    %80 = vector.extract_strided_slice %78 {offsets = [0, 128], sizes = [32, 128], strides = [1, 1]} : vector<32x256xf32> to vector<32x128xf32>
    %81 = vector.shape_cast %70 : vector<4x128xf32> to vector<4x1x128xf32>
    %82 = vector.shape_cast %81 : vector<4x1x128xf32> to vector<4x1x128xf32>
    %83 = vector.broadcast %82 : vector<4x1x128xf32> to vector<4x8x128xf32>
    %84 = vector.shape_cast %83 : vector<4x8x128xf32> to vector<32x128xf32>
    %85 = arith.subf %79, %80 : vector<32x128xf32>
    %86 = arith.mulf %84, %85 : vector<32x128xf32>
    %87 = arith.addf %80, %86 : vector<32x128xf32>
    %88 = arith.addf %79, %80 : vector<32x128xf32>
    %89 = arith.subf %88, %87 : vector<32x128xf32>
    %90 = tpu.concatenate %87, %89 in 1 : vector<32x128xf32>, vector<32x128xf32> -> vector<32x256xf32>
    %cst_28 = arith.constant dense<0.000000e+00> : vector<32x8xf32>
    %91 = tpu.matmul %90, %16, %cst_28 {dimension_numbers = #tpu.dot_dimension_numbers<[1], [0], [0], [1], [0, 0, 1, 1], [], []>} : vector<32x256xf32>, vector<256x8xf32>, vector<32x8xf32> -> vector<32x8xf32>
    %c1_i32 = arith.constant 1 : i32
    %92 = arith.index_cast %c1_i32 : i32 to index
    %c0_29 = arith.constant 0 : index
    %c0_30 = arith.constant 0 : index
    %93 = vector.load %arg2[%92, %c0_29, %c0_30] : memref<8x8x256xf32, #tpu.memory_space<vmem>>, vector<1x8x256xf32>
    %94 = vector.shape_cast %93 : vector<1x8x256xf32> to vector<8x256xf32>
    %95 = arith.index_cast %c1_i32 : i32 to index
    %c0_31 = arith.constant 0 : index
    %c0_32 = arith.constant 0 : index
    %96 = vector.load %arg3[%95, %c0_31, %c0_32] : memref<8x256x8xf32, #tpu.memory_space<vmem>>, vector<1x256x8xf32>
    %97 = vector.shape_cast %96 : vector<1x256x8xf32> to vector<256x8xf32>
    %cst_33 = arith.constant dense<0.000000e+00> : vector<4x256xf32>
    %98 = tpu.matmul %77, %94, %cst_33 {dimension_numbers = #tpu.dot_dimension_numbers<[1], [0], [0], [1], [0, 0, 1, 1], [], []>} : vector<4x8xf32>, vector<8x256xf32>, vector<4x256xf32> -> vector<4x256xf32>
    %99 = vector.extract_strided_slice %98 {offsets = [0, 0], sizes = [4, 128], strides = [1, 1]} : vector<4x256xf32> to vector<4x128xf32>
    %100 = vector.extract_strided_slice %98 {offsets = [0, 128], sizes = [4, 128], strides = [1, 1]} : vector<4x256xf32> to vector<4x128xf32>
    %101 = arith.subf %100, %99 : vector<4x128xf32>
    %cst_34 = arith.constant 1.000000e+01 : f32
    %102 = vector.broadcast %cst_34 : f32 to vector<4x128xf32>
    %103 = arith.mulf %102, %101 : vector<4x128xf32>
    %cst_35 = arith.constant 0.000000e+00 : f32
    %104 = vector.broadcast %cst_35 : f32 to vector<4x128xf32>
    %105 = arith.cmpf olt, %103, %104 : vector<4x128xf32>
    %cst_36 = arith.constant -1.000000e+00 : f32
    %cst_37 = arith.constant 1.000000e+00 : f32
    %106 = vector.broadcast %cst_36 : f32 to vector<4x128xf32>
    %107 = vector.broadcast %cst_37 : f32 to vector<4x128xf32>
    %108 = arith.select %105, %106, %107 : vector<4x128xi1>, vector<4x128xf32>
    %109 = math.absf %103 : vector<4x128xf32>
    %cst_38 = arith.constant 2.41421366 : f32
    %110 = vector.broadcast %cst_38 : f32 to vector<4x128xf32>
    %111 = arith.cmpf ogt, %109, %110 : vector<4x128xf32>
    %cst_39 = arith.constant 0.414213568 : f32
    %112 = vector.broadcast %cst_39 : f32 to vector<4x128xf32>
    %113 = arith.cmpf ogt, %109, %112 : vector<4x128xf32>
    %cst_40 = arith.constant dense<true> : vector<4x128xi1>
    %114 = arith.xori %111, %cst_40 : vector<4x128xi1>
    %115 = arith.andi %113, %114 : vector<4x128xi1>
    %cst_41 = arith.constant 1.000000e+00 : f32
    %116 = vector.broadcast %cst_41 : f32 to vector<4x128xf32>
    %117 = arith.maximumf %109, %116 : vector<4x128xf32>
    %cst_42 = arith.constant -1.000000e+00 : f32
    %118 = vector.broadcast %cst_42 : f32 to vector<4x128xf32>
    %119 = arith.divf %118, %117 : vector<4x128xf32>
    %cst_43 = arith.constant 1.000000e+00 : f32
    %120 = vector.broadcast %cst_43 : f32 to vector<4x128xf32>
    %121 = arith.subf %109, %120 : vector<4x128xf32>
    %cst_44 = arith.constant 1.000000e+00 : f32
    %122 = vector.broadcast %cst_44 : f32 to vector<4x128xf32>
    %123 = arith.addf %109, %122 : vector<4x128xf32>
    %124 = arith.divf %121, %123 : vector<4x128xf32>
    %125 = arith.select %115, %124, %109 : vector<4x128xi1>, vector<4x128xf32>
    %126 = arith.select %111, %119, %125 : vector<4x128xi1>, vector<4x128xf32>
    %cst_45 = arith.constant 0.785398185 : f32
    %cst_46 = arith.constant 0.000000e+00 : f32
    %127 = vector.broadcast %cst_45 : f32 to vector<4x128xf32>
    %128 = vector.broadcast %cst_46 : f32 to vector<4x128xf32>
    %129 = arith.select %115, %127, %128 : vector<4x128xi1>, vector<4x128xf32>
    %cst_47 = arith.constant 1.57079637 : f32
    %130 = vector.broadcast %cst_47 : f32 to vector<4x128xf32>
    %131 = arith.select %111, %130, %129 : vector<4x128xi1>, vector<4x128xf32>
    %132 = arith.mulf %126, %126 : vector<4x128xf32>
    %cst_48 = arith.constant 0.0805374458 : f32
    %133 = vector.broadcast %cst_48 : f32 to vector<4x128xf32>
    %134 = arith.mulf %133, %132 : vector<4x128xf32>
    %cst_49 = arith.constant 0.138776854 : f32
    %135 = vector.broadcast %cst_49 : f32 to vector<4x128xf32>
    %136 = arith.subf %134, %135 : vector<4x128xf32>
    %137 = arith.mulf %136, %132 : vector<4x128xf32>
    %cst_50 = arith.constant 0.199777111 : f32
    %138 = vector.broadcast %cst_50 : f32 to vector<4x128xf32>
    %139 = arith.addf %137, %138 : vector<4x128xf32>
    %140 = arith.mulf %139, %132 : vector<4x128xf32>
    %cst_51 = arith.constant 0.333329499 : f32
    %141 = vector.broadcast %cst_51 : f32 to vector<4x128xf32>
    %142 = arith.subf %140, %141 : vector<4x128xf32>
    %143 = arith.mulf %142, %132 : vector<4x128xf32>
    %144 = arith.mulf %143, %126 : vector<4x128xf32>
    %145 = arith.addf %144, %126 : vector<4x128xf32>
    %146 = arith.addf %131, %145 : vector<4x128xf32>
    %147 = arith.mulf %108, %146 : vector<4x128xf32>
    %cst_52 = arith.constant 0.318309873 : f32
    %148 = vector.broadcast %cst_52 : f32 to vector<4x128xf32>
    %149 = arith.mulf %147, %148 : vector<4x128xf32>
    %cst_53 = arith.constant 5.000000e-01 : f32
    %150 = vector.broadcast %cst_53 : f32 to vector<4x128xf32>
    %151 = arith.addf %149, %150 : vector<4x128xf32>
    %152 = arith.subf %99, %100 : vector<4x128xf32>
    %153 = arith.mulf %151, %152 : vector<4x128xf32>
    %154 = arith.addf %100, %153 : vector<4x128xf32>
    %155 = arith.addf %99, %100 : vector<4x128xf32>
    %156 = arith.subf %155, %154 : vector<4x128xf32>
    %157 = tpu.concatenate %154, %156 in 1 : vector<4x128xf32>, vector<4x128xf32> -> vector<4x256xf32>
    %cst_54 = arith.constant dense<0.000000e+00> : vector<4x8xf32>
    %158 = tpu.matmul %157, %97, %cst_54 {dimension_numbers = #tpu.dot_dimension_numbers<[1], [0], [0], [1], [0, 0, 1, 1], [], []>} : vector<4x256xf32>, vector<256x8xf32>, vector<4x8xf32> -> vector<4x8xf32>
    %cst_55 = arith.constant dense<0.000000e+00> : vector<32x256xf32>
    %159 = tpu.matmul %91, %94, %cst_55 {dimension_numbers = #tpu.dot_dimension_numbers<[1], [0], [0], [1], [0, 0, 1, 1], [], []>} : vector<32x8xf32>, vector<8x256xf32>, vector<32x256xf32> -> vector<32x256xf32>
    %160 = vector.extract_strided_slice %159 {offsets = [0, 0], sizes = [32, 128], strides = [1, 1]} : vector<32x256xf32> to vector<32x128xf32>
    %161 = vector.extract_strided_slice %159 {offsets = [0, 128], sizes = [32, 128], strides = [1, 1]} : vector<32x256xf32> to vector<32x128xf32>
    %162 = vector.shape_cast %151 : vector<4x128xf32> to vector<4x1x128xf32>
    %163 = vector.shape_cast %162 : vector<4x1x128xf32> to vector<4x1x128xf32>
    %164 = vector.broadcast %163 : vector<4x1x128xf32> to vector<4x8x128xf32>
    %165 = vector.shape_cast %164 : vector<4x8x128xf32> to vector<32x128xf32>
    %166 = arith.subf %160, %161 : vector<32x128xf32>
    %167 = arith.mulf %165, %166 : vector<32x128xf32>
    %168 = arith.addf %161, %167 : vector<32x128xf32>
    %169 = arith.addf %160, %161 : vector<32x128xf32>
    %170 = arith.subf %169, %168 : vector<32x128xf32>
    %171 = tpu.concatenate %168, %170 in 1 : vector<32x128xf32>, vector<32x128xf32> -> vector<32x256xf32>
    %cst_56 = arith.constant dense<0.000000e+00> : vector<32x8xf32>
    %172 = tpu.matmul %171, %97, %cst_56 {dimension_numbers = #tpu.dot_dimension_numbers<[1], [0], [0], [1], [0, 0, 1, 1], [], []>} : vector<32x256xf32>, vector<256x8xf32>, vector<32x8xf32> -> vector<32x8xf32>
    %c2_i32 = arith.constant 2 : i32
    %173 = arith.index_cast %c2_i32 : i32 to index
    %c0_57 = arith.constant 0 : index
    %c0_58 = arith.constant 0 : index
    %174 = vector.load %arg2[%173, %c0_57, %c0_58] : memref<8x8x256xf32, #tpu.memory_space<vmem>>, vector<1x8x256xf32>
    %175 = vector.shape_cast %174 : vector<1x8x256xf32> to vector<8x256xf32>
    %176 = arith.index_cast %c2_i32 : i32 to index
    %c0_59 = arith.constant 0 : index
    %c0_60 = arith.constant 0 : index
    %177 = vector.load %arg3[%176, %c0_59, %c0_60] : memref<8x256x8xf32, #tpu.memory_space<vmem>>, vector<1x256x8xf32>
    %178 = vector.shape_cast %177 : vector<1x256x8xf32> to vector<256x8xf32>
    %cst_61 = arith.constant dense<0.000000e+00> : vector<4x256xf32>
    %179 = tpu.matmul %158, %175, %cst_61 {dimension_numbers = #tpu.dot_dimension_numbers<[1], [0], [0], [1], [0, 0, 1, 1], [], []>} : vector<4x8xf32>, vector<8x256xf32>, vector<4x256xf32> -> vector<4x256xf32>
    %180 = vector.extract_strided_slice %179 {offsets = [0, 0], sizes = [4, 128], strides = [1, 1]} : vector<4x256xf32> to vector<4x128xf32>
    %181 = vector.extract_strided_slice %179 {offsets = [0, 128], sizes = [4, 128], strides = [1, 1]} : vector<4x256xf32> to vector<4x128xf32>
    %182 = arith.subf %181, %180 : vector<4x128xf32>
    %cst_62 = arith.constant 1.000000e+01 : f32
    %183 = vector.broadcast %cst_62 : f32 to vector<4x128xf32>
    %184 = arith.mulf %183, %182 : vector<4x128xf32>
    %cst_63 = arith.constant 0.000000e+00 : f32
    %185 = vector.broadcast %cst_63 : f32 to vector<4x128xf32>
    %186 = arith.cmpf olt, %184, %185 : vector<4x128xf32>
    %cst_64 = arith.constant -1.000000e+00 : f32
    %cst_65 = arith.constant 1.000000e+00 : f32
    %187 = vector.broadcast %cst_64 : f32 to vector<4x128xf32>
    %188 = vector.broadcast %cst_65 : f32 to vector<4x128xf32>
    %189 = arith.select %186, %187, %188 : vector<4x128xi1>, vector<4x128xf32>
    %190 = math.absf %184 : vector<4x128xf32>
    %cst_66 = arith.constant 2.41421366 : f32
    %191 = vector.broadcast %cst_66 : f32 to vector<4x128xf32>
    %192 = arith.cmpf ogt, %190, %191 : vector<4x128xf32>
    %cst_67 = arith.constant 0.414213568 : f32
    %193 = vector.broadcast %cst_67 : f32 to vector<4x128xf32>
    %194 = arith.cmpf ogt, %190, %193 : vector<4x128xf32>
    %cst_68 = arith.constant dense<true> : vector<4x128xi1>
    %195 = arith.xori %192, %cst_68 : vector<4x128xi1>
    %196 = arith.andi %194, %195 : vector<4x128xi1>
    %cst_69 = arith.constant 1.000000e+00 : f32
    %197 = vector.broadcast %cst_69 : f32 to vector<4x128xf32>
    %198 = arith.maximumf %190, %197 : vector<4x128xf32>
    %cst_70 = arith.constant -1.000000e+00 : f32
    %199 = vector.broadcast %cst_70 : f32 to vector<4x128xf32>
    %200 = arith.divf %199, %198 : vector<4x128xf32>
    %cst_71 = arith.constant 1.000000e+00 : f32
    %201 = vector.broadcast %cst_71 : f32 to vector<4x128xf32>
    %202 = arith.subf %190, %201 : vector<4x128xf32>
    %cst_72 = arith.constant 1.000000e+00 : f32
    %203 = vector.broadcast %cst_72 : f32 to vector<4x128xf32>
    %204 = arith.addf %190, %203 : vector<4x128xf32>
    %205 = arith.divf %202, %204 : vector<4x128xf32>
    %206 = arith.select %196, %205, %190 : vector<4x128xi1>, vector<4x128xf32>
    %207 = arith.select %192, %200, %206 : vector<4x128xi1>, vector<4x128xf32>
    %cst_73 = arith.constant 0.785398185 : f32
    %cst_74 = arith.constant 0.000000e+00 : f32
    %208 = vector.broadcast %cst_73 : f32 to vector<4x128xf32>
    %209 = vector.broadcast %cst_74 : f32 to vector<4x128xf32>
    %210 = arith.select %196, %208, %209 : vector<4x128xi1>, vector<4x128xf32>
    %cst_75 = arith.constant 1.57079637 : f32
    %211 = vector.broadcast %cst_75 : f32 to vector<4x128xf32>
    %212 = arith.select %192, %211, %210 : vector<4x128xi1>, vector<4x128xf32>
    %213 = arith.mulf %207, %207 : vector<4x128xf32>
    %cst_76 = arith.constant 0.0805374458 : f32
    %214 = vector.broadcast %cst_76 : f32 to vector<4x128xf32>
    %215 = arith.mulf %214, %213 : vector<4x128xf32>
    %cst_77 = arith.constant 0.138776854 : f32
    %216 = vector.broadcast %cst_77 : f32 to vector<4x128xf32>
    %217 = arith.subf %215, %216 : vector<4x128xf32>
    %218 = arith.mulf %217, %213 : vector<4x128xf32>
    %cst_78 = arith.constant 0.199777111 : f32
    %219 = vector.broadcast %cst_78 : f32 to vector<4x128xf32>
    %220 = arith.addf %218, %219 : vector<4x128xf32>
    %221 = arith.mulf %220, %213 : vector<4x128xf32>
    %cst_79 = arith.constant 0.333329499 : f32
    %222 = vector.broadcast %cst_79 : f32 to vector<4x128xf32>
    %223 = arith.subf %221, %222 : vector<4x128xf32>
    %224 = arith.mulf %223, %213 : vector<4x128xf32>
    %225 = arith.mulf %224, %207 : vector<4x128xf32>
    %226 = arith.addf %225, %207 : vector<4x128xf32>
    %227 = arith.addf %212, %226 : vector<4x128xf32>
    %228 = arith.mulf %189, %227 : vector<4x128xf32>
    %cst_80 = arith.constant 0.318309873 : f32
    %229 = vector.broadcast %cst_80 : f32 to vector<4x128xf32>
    %230 = arith.mulf %228, %229 : vector<4x128xf32>
    %cst_81 = arith.constant 5.000000e-01 : f32
    %231 = vector.broadcast %cst_81 : f32 to vector<4x128xf32>
    %232 = arith.addf %230, %231 : vector<4x128xf32>
    %233 = arith.subf %180, %181 : vector<4x128xf32>
    %234 = arith.mulf %232, %233 : vector<4x128xf32>
    %235 = arith.addf %181, %234 : vector<4x128xf32>
    %236 = arith.addf %180, %181 : vector<4x128xf32>
    %237 = arith.subf %236, %235 : vector<4x128xf32>
    %238 = tpu.concatenate %235, %237 in 1 : vector<4x128xf32>, vector<4x128xf32> -> vector<4x256xf32>
    %cst_82 = arith.constant dense<0.000000e+00> : vector<4x8xf32>
    %239 = tpu.matmul %238, %178, %cst_82 {dimension_numbers = #tpu.dot_dimension_numbers<[1], [0], [0], [1], [0, 0, 1, 1], [], []>} : vector<4x256xf32>, vector<256x8xf32>, vector<4x8xf32> -> vector<4x8xf32>
    %cst_83 = arith.constant dense<0.000000e+00> : vector<32x256xf32>
    %240 = tpu.matmul %172, %175, %cst_83 {dimension_numbers = #tpu.dot_dimension_numbers<[1], [0], [0], [1], [0, 0, 1, 1], [], []>} : vector<32x8xf32>, vector<8x256xf32>, vector<32x256xf32> -> vector<32x256xf32>
    %241 = vector.extract_strided_slice %240 {offsets = [0, 0], sizes = [32, 128], strides = [1, 1]} : vector<32x256xf32> to vector<32x128xf32>
    %242 = vector.extract_strided_slice %240 {offsets = [0, 128], sizes = [32, 128], strides = [1, 1]} : vector<32x256xf32> to vector<32x128xf32>
    %243 = vector.shape_cast %232 : vector<4x128xf32> to vector<4x1x128xf32>
    %244 = vector.shape_cast %243 : vector<4x1x128xf32> to vector<4x1x128xf32>
    %245 = vector.broadcast %244 : vector<4x1x128xf32> to vector<4x8x128xf32>
    %246 = vector.shape_cast %245 : vector<4x8x128xf32> to vector<32x128xf32>
    %247 = arith.subf %241, %242 : vector<32x128xf32>
    %248 = arith.mulf %246, %247 : vector<32x128xf32>
    %249 = arith.addf %242, %248 : vector<32x128xf32>
    %250 = arith.addf %241, %242 : vector<32x128xf32>
    %251 = arith.subf %250, %249 : vector<32x128xf32>
    %252 = tpu.concatenate %249, %251 in 1 : vector<32x128xf32>, vector<32x128xf32> -> vector<32x256xf32>
    %cst_84 = arith.constant dense<0.000000e+00> : vector<32x8xf32>
    %253 = tpu.matmul %252, %178, %cst_84 {dimension_numbers = #tpu.dot_dimension_numbers<[1], [0], [0], [1], [0, 0, 1, 1], [], []>} : vector<32x256xf32>, vector<256x8xf32>, vector<32x8xf32> -> vector<32x8xf32>
    %c3_i32 = arith.constant 3 : i32
    %254 = arith.index_cast %c3_i32 : i32 to index
    %c0_85 = arith.constant 0 : index
    %c0_86 = arith.constant 0 : index
    %255 = vector.load %arg2[%254, %c0_85, %c0_86] : memref<8x8x256xf32, #tpu.memory_space<vmem>>, vector<1x8x256xf32>
    %256 = vector.shape_cast %255 : vector<1x8x256xf32> to vector<8x256xf32>
    %257 = arith.index_cast %c3_i32 : i32 to index
    %c0_87 = arith.constant 0 : index
    %c0_88 = arith.constant 0 : index
    %258 = vector.load %arg3[%257, %c0_87, %c0_88] : memref<8x256x8xf32, #tpu.memory_space<vmem>>, vector<1x256x8xf32>
    %259 = vector.shape_cast %258 : vector<1x256x8xf32> to vector<256x8xf32>
    %cst_89 = arith.constant dense<0.000000e+00> : vector<4x256xf32>
    %260 = tpu.matmul %239, %256, %cst_89 {dimension_numbers = #tpu.dot_dimension_numbers<[1], [0], [0], [1], [0, 0, 1, 1], [], []>} : vector<4x8xf32>, vector<8x256xf32>, vector<4x256xf32> -> vector<4x256xf32>
    %261 = vector.extract_strided_slice %260 {offsets = [0, 0], sizes = [4, 128], strides = [1, 1]} : vector<4x256xf32> to vector<4x128xf32>
    %262 = vector.extract_strided_slice %260 {offsets = [0, 128], sizes = [4, 128], strides = [1, 1]} : vector<4x256xf32> to vector<4x128xf32>
    %263 = arith.subf %262, %261 : vector<4x128xf32>
    %cst_90 = arith.constant 1.000000e+01 : f32
    %264 = vector.broadcast %cst_90 : f32 to vector<4x128xf32>
    %265 = arith.mulf %264, %263 : vector<4x128xf32>
    %cst_91 = arith.constant 0.000000e+00 : f32
    %266 = vector.broadcast %cst_91 : f32 to vector<4x128xf32>
    %267 = arith.cmpf olt, %265, %266 : vector<4x128xf32>
    %cst_92 = arith.constant -1.000000e+00 : f32
    %cst_93 = arith.constant 1.000000e+00 : f32
    %268 = vector.broadcast %cst_92 : f32 to vector<4x128xf32>
    %269 = vector.broadcast %cst_93 : f32 to vector<4x128xf32>
    %270 = arith.select %267, %268, %269 : vector<4x128xi1>, vector<4x128xf32>
    %271 = math.absf %265 : vector<4x128xf32>
    %cst_94 = arith.constant 2.41421366 : f32
    %272 = vector.broadcast %cst_94 : f32 to vector<4x128xf32>
    %273 = arith.cmpf ogt, %271, %272 : vector<4x128xf32>
    %cst_95 = arith.constant 0.414213568 : f32
    %274 = vector.broadcast %cst_95 : f32 to vector<4x128xf32>
    %275 = arith.cmpf ogt, %271, %274 : vector<4x128xf32>
    %cst_96 = arith.constant dense<true> : vector<4x128xi1>
    %276 = arith.xori %273, %cst_96 : vector<4x128xi1>
    %277 = arith.andi %275, %276 : vector<4x128xi1>
    %cst_97 = arith.constant 1.000000e+00 : f32
    %278 = vector.broadcast %cst_97 : f32 to vector<4x128xf32>
    %279 = arith.maximumf %271, %278 : vector<4x128xf32>
    %cst_98 = arith.constant -1.000000e+00 : f32
    %280 = vector.broadcast %cst_98 : f32 to vector<4x128xf32>
    %281 = arith.divf %280, %279 : vector<4x128xf32>
    %cst_99 = arith.constant 1.000000e+00 : f32
    %282 = vector.broadcast %cst_99 : f32 to vector<4x128xf32>
    %283 = arith.subf %271, %282 : vector<4x128xf32>
    %cst_100 = arith.constant 1.000000e+00 : f32
    %284 = vector.broadcast %cst_100 : f32 to vector<4x128xf32>
    %285 = arith.addf %271, %284 : vector<4x128xf32>
    %286 = arith.divf %283, %285 : vector<4x128xf32>
    %287 = arith.select %277, %286, %271 : vector<4x128xi1>, vector<4x128xf32>
    %288 = arith.select %273, %281, %287 : vector<4x128xi1>, vector<4x128xf32>
    %cst_101 = arith.constant 0.785398185 : f32
    %cst_102 = arith.constant 0.000000e+00 : f32
    %289 = vector.broadcast %cst_101 : f32 to vector<4x128xf32>
    %290 = vector.broadcast %cst_102 : f32 to vector<4x128xf32>
    %291 = arith.select %277, %289, %290 : vector<4x128xi1>, vector<4x128xf32>
    %cst_103 = arith.constant 1.57079637 : f32
    %292 = vector.broadcast %cst_103 : f32 to vector<4x128xf32>
    %293 = arith.select %273, %292, %291 : vector<4x128xi1>, vector<4x128xf32>
    %294 = arith.mulf %288, %288 : vector<4x128xf32>
    %cst_104 = arith.constant 0.0805374458 : f32
    %295 = vector.broadcast %cst_104 : f32 to vector<4x128xf32>
    %296 = arith.mulf %295, %294 : vector<4x128xf32>
    %cst_105 = arith.constant 0.138776854 : f32
    %297 = vector.broadcast %cst_105 : f32 to vector<4x128xf32>
    %298 = arith.subf %296, %297 : vector<4x128xf32>
    %299 = arith.mulf %298, %294 : vector<4x128xf32>
    %cst_106 = arith.constant 0.199777111 : f32
    %300 = vector.broadcast %cst_106 : f32 to vector<4x128xf32>
    %301 = arith.addf %299, %300 : vector<4x128xf32>
    %302 = arith.mulf %301, %294 : vector<4x128xf32>
    %cst_107 = arith.constant 0.333329499 : f32
    %303 = vector.broadcast %cst_107 : f32 to vector<4x128xf32>
    %304 = arith.subf %302, %303 : vector<4x128xf32>
    %305 = arith.mulf %304, %294 : vector<4x128xf32>
    %306 = arith.mulf %305, %288 : vector<4x128xf32>
    %307 = arith.addf %306, %288 : vector<4x128xf32>
    %308 = arith.addf %293, %307 : vector<4x128xf32>
    %309 = arith.mulf %270, %308 : vector<4x128xf32>
    %cst_108 = arith.constant 0.318309873 : f32
    %310 = vector.broadcast %cst_108 : f32 to vector<4x128xf32>
    %311 = arith.mulf %309, %310 : vector<4x128xf32>
    %cst_109 = arith.constant 5.000000e-01 : f32
    %312 = vector.broadcast %cst_109 : f32 to vector<4x128xf32>
    %313 = arith.addf %311, %312 : vector<4x128xf32>
    %314 = arith.subf %261, %262 : vector<4x128xf32>
    %315 = arith.mulf %313, %314 : vector<4x128xf32>
    %316 = arith.addf %262, %315 : vector<4x128xf32>
    %317 = arith.addf %261, %262 : vector<4x128xf32>
    %318 = arith.subf %317, %316 : vector<4x128xf32>
    %319 = tpu.concatenate %316, %318 in 1 : vector<4x128xf32>, vector<4x128xf32> -> vector<4x256xf32>
    %cst_110 = arith.constant dense<0.000000e+00> : vector<4x8xf32>
    %320 = tpu.matmul %319, %259, %cst_110 {dimension_numbers = #tpu.dot_dimension_numbers<[1], [0], [0], [1], [0, 0, 1, 1], [], []>} : vector<4x256xf32>, vector<256x8xf32>, vector<4x8xf32> -> vector<4x8xf32>
    %cst_111 = arith.constant dense<0.000000e+00> : vector<32x256xf32>
    %321 = tpu.matmul %253, %256, %cst_111 {dimension_numbers = #tpu.dot_dimension_numbers<[1], [0], [0], [1], [0, 0, 1, 1], [], []>} : vector<32x8xf32>, vector<8x256xf32>, vector<32x256xf32> -> vector<32x256xf32>
    %322 = vector.extract_strided_slice %321 {offsets = [0, 0], sizes = [32, 128], strides = [1, 1]} : vector<32x256xf32> to vector<32x128xf32>
    %323 = vector.extract_strided_slice %321 {offsets = [0, 128], sizes = [32, 128], strides = [1, 1]} : vector<32x256xf32> to vector<32x128xf32>
    %324 = vector.shape_cast %313 : vector<4x128xf32> to vector<4x1x128xf32>
    %325 = vector.shape_cast %324 : vector<4x1x128xf32> to vector<4x1x128xf32>
    %326 = vector.broadcast %325 : vector<4x1x128xf32> to vector<4x8x128xf32>
    %327 = vector.shape_cast %326 : vector<4x8x128xf32> to vector<32x128xf32>
    %328 = arith.subf %322, %323 : vector<32x128xf32>
    %329 = arith.mulf %327, %328 : vector<32x128xf32>
    %330 = arith.addf %323, %329 : vector<32x128xf32>
    %331 = arith.addf %322, %323 : vector<32x128xf32>
    %332 = arith.subf %331, %330 : vector<32x128xf32>
    %333 = tpu.concatenate %330, %332 in 1 : vector<32x128xf32>, vector<32x128xf32> -> vector<32x256xf32>
    %cst_112 = arith.constant dense<0.000000e+00> : vector<32x8xf32>
    %334 = tpu.matmul %333, %259, %cst_112 {dimension_numbers = #tpu.dot_dimension_numbers<[1], [0], [0], [1], [0, 0, 1, 1], [], []>} : vector<32x256xf32>, vector<256x8xf32>, vector<32x8xf32> -> vector<32x8xf32>
    %c4_i32 = arith.constant 4 : i32
    %335 = arith.index_cast %c4_i32 : i32 to index
    %c0_113 = arith.constant 0 : index
    %c0_114 = arith.constant 0 : index
    %336 = vector.load %arg2[%335, %c0_113, %c0_114] : memref<8x8x256xf32, #tpu.memory_space<vmem>>, vector<1x8x256xf32>
    %337 = vector.shape_cast %336 : vector<1x8x256xf32> to vector<8x256xf32>
    %338 = arith.index_cast %c4_i32 : i32 to index
    %c0_115 = arith.constant 0 : index
    %c0_116 = arith.constant 0 : index
    %339 = vector.load %arg3[%338, %c0_115, %c0_116] : memref<8x256x8xf32, #tpu.memory_space<vmem>>, vector<1x256x8xf32>
    %340 = vector.shape_cast %339 : vector<1x256x8xf32> to vector<256x8xf32>
    %cst_117 = arith.constant dense<0.000000e+00> : vector<4x256xf32>
    %341 = tpu.matmul %320, %337, %cst_117 {dimension_numbers = #tpu.dot_dimension_numbers<[1], [0], [0], [1], [0, 0, 1, 1], [], []>} : vector<4x8xf32>, vector<8x256xf32>, vector<4x256xf32> -> vector<4x256xf32>
    %342 = vector.extract_strided_slice %341 {offsets = [0, 0], sizes = [4, 128], strides = [1, 1]} : vector<4x256xf32> to vector<4x128xf32>
    %343 = vector.extract_strided_slice %341 {offsets = [0, 128], sizes = [4, 128], strides = [1, 1]} : vector<4x256xf32> to vector<4x128xf32>
    %344 = arith.subf %343, %342 : vector<4x128xf32>
    %cst_118 = arith.constant 1.000000e+01 : f32
    %345 = vector.broadcast %cst_118 : f32 to vector<4x128xf32>
    %346 = arith.mulf %345, %344 : vector<4x128xf32>
    %cst_119 = arith.constant 0.000000e+00 : f32
    %347 = vector.broadcast %cst_119 : f32 to vector<4x128xf32>
    %348 = arith.cmpf olt, %346, %347 : vector<4x128xf32>
    %cst_120 = arith.constant -1.000000e+00 : f32
    %cst_121 = arith.constant 1.000000e+00 : f32
    %349 = vector.broadcast %cst_120 : f32 to vector<4x128xf32>
    %350 = vector.broadcast %cst_121 : f32 to vector<4x128xf32>
    %351 = arith.select %348, %349, %350 : vector<4x128xi1>, vector<4x128xf32>
    %352 = math.absf %346 : vector<4x128xf32>
    %cst_122 = arith.constant 2.41421366 : f32
    %353 = vector.broadcast %cst_122 : f32 to vector<4x128xf32>
    %354 = arith.cmpf ogt, %352, %353 : vector<4x128xf32>
    %cst_123 = arith.constant 0.414213568 : f32
    %355 = vector.broadcast %cst_123 : f32 to vector<4x128xf32>
    %356 = arith.cmpf ogt, %352, %355 : vector<4x128xf32>
    %cst_124 = arith.constant dense<true> : vector<4x128xi1>
    %357 = arith.xori %354, %cst_124 : vector<4x128xi1>
    %358 = arith.andi %356, %357 : vector<4x128xi1>
    %cst_125 = arith.constant 1.000000e+00 : f32
    %359 = vector.broadcast %cst_125 : f32 to vector<4x128xf32>
    %360 = arith.maximumf %352, %359 : vector<4x128xf32>
    %cst_126 = arith.constant -1.000000e+00 : f32
    %361 = vector.broadcast %cst_126 : f32 to vector<4x128xf32>
    %362 = arith.divf %361, %360 : vector<4x128xf32>
    %cst_127 = arith.constant 1.000000e+00 : f32
    %363 = vector.broadcast %cst_127 : f32 to vector<4x128xf32>
    %364 = arith.subf %352, %363 : vector<4x128xf32>
    %cst_128 = arith.constant 1.000000e+00 : f32
    %365 = vector.broadcast %cst_128 : f32 to vector<4x128xf32>
    %366 = arith.addf %352, %365 : vector<4x128xf32>
    %367 = arith.divf %364, %366 : vector<4x128xf32>
    %368 = arith.select %358, %367, %352 : vector<4x128xi1>, vector<4x128xf32>
    %369 = arith.select %354, %362, %368 : vector<4x128xi1>, vector<4x128xf32>
    %cst_129 = arith.constant 0.785398185 : f32
    %cst_130 = arith.constant 0.000000e+00 : f32
    %370 = vector.broadcast %cst_129 : f32 to vector<4x128xf32>
    %371 = vector.broadcast %cst_130 : f32 to vector<4x128xf32>
    %372 = arith.select %358, %370, %371 : vector<4x128xi1>, vector<4x128xf32>
    %cst_131 = arith.constant 1.57079637 : f32
    %373 = vector.broadcast %cst_131 : f32 to vector<4x128xf32>
    %374 = arith.select %354, %373, %372 : vector<4x128xi1>, vector<4x128xf32>
    %375 = arith.mulf %369, %369 : vector<4x128xf32>
    %cst_132 = arith.constant 0.0805374458 : f32
    %376 = vector.broadcast %cst_132 : f32 to vector<4x128xf32>
    %377 = arith.mulf %376, %375 : vector<4x128xf32>
    %cst_133 = arith.constant 0.138776854 : f32
    %378 = vector.broadcast %cst_133 : f32 to vector<4x128xf32>
    %379 = arith.subf %377, %378 : vector<4x128xf32>
    %380 = arith.mulf %379, %375 : vector<4x128xf32>
    %cst_134 = arith.constant 0.199777111 : f32
    %381 = vector.broadcast %cst_134 : f32 to vector<4x128xf32>
    %382 = arith.addf %380, %381 : vector<4x128xf32>
    %383 = arith.mulf %382, %375 : vector<4x128xf32>
    %cst_135 = arith.constant 0.333329499 : f32
    %384 = vector.broadcast %cst_135 : f32 to vector<4x128xf32>
    %385 = arith.subf %383, %384 : vector<4x128xf32>
    %386 = arith.mulf %385, %375 : vector<4x128xf32>
    %387 = arith.mulf %386, %369 : vector<4x128xf32>
    %388 = arith.addf %387, %369 : vector<4x128xf32>
    %389 = arith.addf %374, %388 : vector<4x128xf32>
    %390 = arith.mulf %351, %389 : vector<4x128xf32>
    %cst_136 = arith.constant 0.318309873 : f32
    %391 = vector.broadcast %cst_136 : f32 to vector<4x128xf32>
    %392 = arith.mulf %390, %391 : vector<4x128xf32>
    %cst_137 = arith.constant 5.000000e-01 : f32
    %393 = vector.broadcast %cst_137 : f32 to vector<4x128xf32>
    %394 = arith.addf %392, %393 : vector<4x128xf32>
    %395 = arith.subf %342, %343 : vector<4x128xf32>
    %396 = arith.mulf %394, %395 : vector<4x128xf32>
    %397 = arith.addf %343, %396 : vector<4x128xf32>
    %398 = arith.addf %342, %343 : vector<4x128xf32>
    %399 = arith.subf %398, %397 : vector<4x128xf32>
    %400 = tpu.concatenate %397, %399 in 1 : vector<4x128xf32>, vector<4x128xf32> -> vector<4x256xf32>
    %cst_138 = arith.constant dense<0.000000e+00> : vector<4x8xf32>
    %401 = tpu.matmul %400, %340, %cst_138 {dimension_numbers = #tpu.dot_dimension_numbers<[1], [0], [0], [1], [0, 0, 1, 1], [], []>} : vector<4x256xf32>, vector<256x8xf32>, vector<4x8xf32> -> vector<4x8xf32>
    %cst_139 = arith.constant dense<0.000000e+00> : vector<32x256xf32>
    %402 = tpu.matmul %334, %337, %cst_139 {dimension_numbers = #tpu.dot_dimension_numbers<[1], [0], [0], [1], [0, 0, 1, 1], [], []>} : vector<32x8xf32>, vector<8x256xf32>, vector<32x256xf32> -> vector<32x256xf32>
    %403 = vector.extract_strided_slice %402 {offsets = [0, 0], sizes = [32, 128], strides = [1, 1]} : vector<32x256xf32> to vector<32x128xf32>
    %404 = vector.extract_strided_slice %402 {offsets = [0, 128], sizes = [32, 128], strides = [1, 1]} : vector<32x256xf32> to vector<32x128xf32>
    %405 = vector.shape_cast %394 : vector<4x128xf32> to vector<4x1x128xf32>
    %406 = vector.shape_cast %405 : vector<4x1x128xf32> to vector<4x1x128xf32>
    %407 = vector.broadcast %406 : vector<4x1x128xf32> to vector<4x8x128xf32>
    %408 = vector.shape_cast %407 : vector<4x8x128xf32> to vector<32x128xf32>
    %409 = arith.subf %403, %404 : vector<32x128xf32>
    %410 = arith.mulf %408, %409 : vector<32x128xf32>
    %411 = arith.addf %404, %410 : vector<32x128xf32>
    %412 = arith.addf %403, %404 : vector<32x128xf32>
    %413 = arith.subf %412, %411 : vector<32x128xf32>
    %414 = tpu.concatenate %411, %413 in 1 : vector<32x128xf32>, vector<32x128xf32> -> vector<32x256xf32>
    %cst_140 = arith.constant dense<0.000000e+00> : vector<32x8xf32>
    %415 = tpu.matmul %414, %340, %cst_140 {dimension_numbers = #tpu.dot_dimension_numbers<[1], [0], [0], [1], [0, 0, 1, 1], [], []>} : vector<32x256xf32>, vector<256x8xf32>, vector<32x8xf32> -> vector<32x8xf32>
    %c5_i32 = arith.constant 5 : i32
    %416 = arith.index_cast %c5_i32 : i32 to index
    %c0_141 = arith.constant 0 : index
    %c0_142 = arith.constant 0 : index
    %417 = vector.load %arg2[%416, %c0_141, %c0_142] : memref<8x8x256xf32, #tpu.memory_space<vmem>>, vector<1x8x256xf32>
    %418 = vector.shape_cast %417 : vector<1x8x256xf32> to vector<8x256xf32>
    %419 = arith.index_cast %c5_i32 : i32 to index
    %c0_143 = arith.constant 0 : index
    %c0_144 = arith.constant 0 : index
    %420 = vector.load %arg3[%419, %c0_143, %c0_144] : memref<8x256x8xf32, #tpu.memory_space<vmem>>, vector<1x256x8xf32>
    %421 = vector.shape_cast %420 : vector<1x256x8xf32> to vector<256x8xf32>
    %cst_145 = arith.constant dense<0.000000e+00> : vector<4x256xf32>
    %422 = tpu.matmul %401, %418, %cst_145 {dimension_numbers = #tpu.dot_dimension_numbers<[1], [0], [0], [1], [0, 0, 1, 1], [], []>} : vector<4x8xf32>, vector<8x256xf32>, vector<4x256xf32> -> vector<4x256xf32>
    %423 = vector.extract_strided_slice %422 {offsets = [0, 0], sizes = [4, 128], strides = [1, 1]} : vector<4x256xf32> to vector<4x128xf32>
    %424 = vector.extract_strided_slice %422 {offsets = [0, 128], sizes = [4, 128], strides = [1, 1]} : vector<4x256xf32> to vector<4x128xf32>
    %425 = arith.subf %424, %423 : vector<4x128xf32>
    %cst_146 = arith.constant 1.000000e+01 : f32
    %426 = vector.broadcast %cst_146 : f32 to vector<4x128xf32>
    %427 = arith.mulf %426, %425 : vector<4x128xf32>
    %cst_147 = arith.constant 0.000000e+00 : f32
    %428 = vector.broadcast %cst_147 : f32 to vector<4x128xf32>
    %429 = arith.cmpf olt, %427, %428 : vector<4x128xf32>
    %cst_148 = arith.constant -1.000000e+00 : f32
    %cst_149 = arith.constant 1.000000e+00 : f32
    %430 = vector.broadcast %cst_148 : f32 to vector<4x128xf32>
    %431 = vector.broadcast %cst_149 : f32 to vector<4x128xf32>
    %432 = arith.select %429, %430, %431 : vector<4x128xi1>, vector<4x128xf32>
    %433 = math.absf %427 : vector<4x128xf32>
    %cst_150 = arith.constant 2.41421366 : f32
    %434 = vector.broadcast %cst_150 : f32 to vector<4x128xf32>
    %435 = arith.cmpf ogt, %433, %434 : vector<4x128xf32>
    %cst_151 = arith.constant 0.414213568 : f32
    %436 = vector.broadcast %cst_151 : f32 to vector<4x128xf32>
    %437 = arith.cmpf ogt, %433, %436 : vector<4x128xf32>
    %cst_152 = arith.constant dense<true> : vector<4x128xi1>
    %438 = arith.xori %435, %cst_152 : vector<4x128xi1>
    %439 = arith.andi %437, %438 : vector<4x128xi1>
    %cst_153 = arith.constant 1.000000e+00 : f32
    %440 = vector.broadcast %cst_153 : f32 to vector<4x128xf32>
    %441 = arith.maximumf %433, %440 : vector<4x128xf32>
    %cst_154 = arith.constant -1.000000e+00 : f32
    %442 = vector.broadcast %cst_154 : f32 to vector<4x128xf32>
    %443 = arith.divf %442, %441 : vector<4x128xf32>
    %cst_155 = arith.constant 1.000000e+00 : f32
    %444 = vector.broadcast %cst_155 : f32 to vector<4x128xf32>
    %445 = arith.subf %433, %444 : vector<4x128xf32>
    %cst_156 = arith.constant 1.000000e+00 : f32
    %446 = vector.broadcast %cst_156 : f32 to vector<4x128xf32>
    %447 = arith.addf %433, %446 : vector<4x128xf32>
    %448 = arith.divf %445, %447 : vector<4x128xf32>
    %449 = arith.select %439, %448, %433 : vector<4x128xi1>, vector<4x128xf32>
    %450 = arith.select %435, %443, %449 : vector<4x128xi1>, vector<4x128xf32>
    %cst_157 = arith.constant 0.785398185 : f32
    %cst_158 = arith.constant 0.000000e+00 : f32
    %451 = vector.broadcast %cst_157 : f32 to vector<4x128xf32>
    %452 = vector.broadcast %cst_158 : f32 to vector<4x128xf32>
    %453 = arith.select %439, %451, %452 : vector<4x128xi1>, vector<4x128xf32>
    %cst_159 = arith.constant 1.57079637 : f32
    %454 = vector.broadcast %cst_159 : f32 to vector<4x128xf32>
    %455 = arith.select %435, %454, %453 : vector<4x128xi1>, vector<4x128xf32>
    %456 = arith.mulf %450, %450 : vector<4x128xf32>
    %cst_160 = arith.constant 0.0805374458 : f32
    %457 = vector.broadcast %cst_160 : f32 to vector<4x128xf32>
    %458 = arith.mulf %457, %456 : vector<4x128xf32>
    %cst_161 = arith.constant 0.138776854 : f32
    %459 = vector.broadcast %cst_161 : f32 to vector<4x128xf32>
    %460 = arith.subf %458, %459 : vector<4x128xf32>
    %461 = arith.mulf %460, %456 : vector<4x128xf32>
    %cst_162 = arith.constant 0.199777111 : f32
    %462 = vector.broadcast %cst_162 : f32 to vector<4x128xf32>
    %463 = arith.addf %461, %462 : vector<4x128xf32>
    %464 = arith.mulf %463, %456 : vector<4x128xf32>
    %cst_163 = arith.constant 0.333329499 : f32
    %465 = vector.broadcast %cst_163 : f32 to vector<4x128xf32>
    %466 = arith.subf %464, %465 : vector<4x128xf32>
    %467 = arith.mulf %466, %456 : vector<4x128xf32>
    %468 = arith.mulf %467, %450 : vector<4x128xf32>
    %469 = arith.addf %468, %450 : vector<4x128xf32>
    %470 = arith.addf %455, %469 : vector<4x128xf32>
    %471 = arith.mulf %432, %470 : vector<4x128xf32>
    %cst_164 = arith.constant 0.318309873 : f32
    %472 = vector.broadcast %cst_164 : f32 to vector<4x128xf32>
    %473 = arith.mulf %471, %472 : vector<4x128xf32>
    %cst_165 = arith.constant 5.000000e-01 : f32
    %474 = vector.broadcast %cst_165 : f32 to vector<4x128xf32>
    %475 = arith.addf %473, %474 : vector<4x128xf32>
    %476 = arith.subf %423, %424 : vector<4x128xf32>
    %477 = arith.mulf %475, %476 : vector<4x128xf32>
    %478 = arith.addf %424, %477 : vector<4x128xf32>
    %479 = arith.addf %423, %424 : vector<4x128xf32>
    %480 = arith.subf %479, %478 : vector<4x128xf32>
    %481 = tpu.concatenate %478, %480 in 1 : vector<4x128xf32>, vector<4x128xf32> -> vector<4x256xf32>
    %cst_166 = arith.constant dense<0.000000e+00> : vector<4x8xf32>
    %482 = tpu.matmul %481, %421, %cst_166 {dimension_numbers = #tpu.dot_dimension_numbers<[1], [0], [0], [1], [0, 0, 1, 1], [], []>} : vector<4x256xf32>, vector<256x8xf32>, vector<4x8xf32> -> vector<4x8xf32>
    %cst_167 = arith.constant dense<0.000000e+00> : vector<32x256xf32>
    %483 = tpu.matmul %415, %418, %cst_167 {dimension_numbers = #tpu.dot_dimension_numbers<[1], [0], [0], [1], [0, 0, 1, 1], [], []>} : vector<32x8xf32>, vector<8x256xf32>, vector<32x256xf32> -> vector<32x256xf32>
    %484 = vector.extract_strided_slice %483 {offsets = [0, 0], sizes = [32, 128], strides = [1, 1]} : vector<32x256xf32> to vector<32x128xf32>
    %485 = vector.extract_strided_slice %483 {offsets = [0, 128], sizes = [32, 128], strides = [1, 1]} : vector<32x256xf32> to vector<32x128xf32>
    %486 = vector.shape_cast %475 : vector<4x128xf32> to vector<4x1x128xf32>
    %487 = vector.shape_cast %486 : vector<4x1x128xf32> to vector<4x1x128xf32>
    %488 = vector.broadcast %487 : vector<4x1x128xf32> to vector<4x8x128xf32>
    %489 = vector.shape_cast %488 : vector<4x8x128xf32> to vector<32x128xf32>
    %490 = arith.subf %484, %485 : vector<32x128xf32>
    %491 = arith.mulf %489, %490 : vector<32x128xf32>
    %492 = arith.addf %485, %491 : vector<32x128xf32>
    %493 = arith.addf %484, %485 : vector<32x128xf32>
    %494 = arith.subf %493, %492 : vector<32x128xf32>
    %495 = tpu.concatenate %492, %494 in 1 : vector<32x128xf32>, vector<32x128xf32> -> vector<32x256xf32>
    %cst_168 = arith.constant dense<0.000000e+00> : vector<32x8xf32>
    %496 = tpu.matmul %495, %421, %cst_168 {dimension_numbers = #tpu.dot_dimension_numbers<[1], [0], [0], [1], [0, 0, 1, 1], [], []>} : vector<32x256xf32>, vector<256x8xf32>, vector<32x8xf32> -> vector<32x8xf32>
    %c6_i32 = arith.constant 6 : i32
    %497 = arith.index_cast %c6_i32 : i32 to index
    %c0_169 = arith.constant 0 : index
    %c0_170 = arith.constant 0 : index
    %498 = vector.load %arg2[%497, %c0_169, %c0_170] : memref<8x8x256xf32, #tpu.memory_space<vmem>>, vector<1x8x256xf32>
    %499 = vector.shape_cast %498 : vector<1x8x256xf32> to vector<8x256xf32>
    %500 = arith.index_cast %c6_i32 : i32 to index
    %c0_171 = arith.constant 0 : index
    %c0_172 = arith.constant 0 : index
    %501 = vector.load %arg3[%500, %c0_171, %c0_172] : memref<8x256x8xf32, #tpu.memory_space<vmem>>, vector<1x256x8xf32>
    %502 = vector.shape_cast %501 : vector<1x256x8xf32> to vector<256x8xf32>
    %cst_173 = arith.constant dense<0.000000e+00> : vector<4x256xf32>
    %503 = tpu.matmul %482, %499, %cst_173 {dimension_numbers = #tpu.dot_dimension_numbers<[1], [0], [0], [1], [0, 0, 1, 1], [], []>} : vector<4x8xf32>, vector<8x256xf32>, vector<4x256xf32> -> vector<4x256xf32>
    %504 = vector.extract_strided_slice %503 {offsets = [0, 0], sizes = [4, 128], strides = [1, 1]} : vector<4x256xf32> to vector<4x128xf32>
    %505 = vector.extract_strided_slice %503 {offsets = [0, 128], sizes = [4, 128], strides = [1, 1]} : vector<4x256xf32> to vector<4x128xf32>
    %506 = arith.subf %505, %504 : vector<4x128xf32>
    %cst_174 = arith.constant 1.000000e+01 : f32
    %507 = vector.broadcast %cst_174 : f32 to vector<4x128xf32>
    %508 = arith.mulf %507, %506 : vector<4x128xf32>
    %cst_175 = arith.constant 0.000000e+00 : f32
    %509 = vector.broadcast %cst_175 : f32 to vector<4x128xf32>
    %510 = arith.cmpf olt, %508, %509 : vector<4x128xf32>
    %cst_176 = arith.constant -1.000000e+00 : f32
    %cst_177 = arith.constant 1.000000e+00 : f32
    %511 = vector.broadcast %cst_176 : f32 to vector<4x128xf32>
    %512 = vector.broadcast %cst_177 : f32 to vector<4x128xf32>
    %513 = arith.select %510, %511, %512 : vector<4x128xi1>, vector<4x128xf32>
    %514 = math.absf %508 : vector<4x128xf32>
    %cst_178 = arith.constant 2.41421366 : f32
    %515 = vector.broadcast %cst_178 : f32 to vector<4x128xf32>
    %516 = arith.cmpf ogt, %514, %515 : vector<4x128xf32>
    %cst_179 = arith.constant 0.414213568 : f32
    %517 = vector.broadcast %cst_179 : f32 to vector<4x128xf32>
    %518 = arith.cmpf ogt, %514, %517 : vector<4x128xf32>
    %cst_180 = arith.constant dense<true> : vector<4x128xi1>
    %519 = arith.xori %516, %cst_180 : vector<4x128xi1>
    %520 = arith.andi %518, %519 : vector<4x128xi1>
    %cst_181 = arith.constant 1.000000e+00 : f32
    %521 = vector.broadcast %cst_181 : f32 to vector<4x128xf32>
    %522 = arith.maximumf %514, %521 : vector<4x128xf32>
    %cst_182 = arith.constant -1.000000e+00 : f32
    %523 = vector.broadcast %cst_182 : f32 to vector<4x128xf32>
    %524 = arith.divf %523, %522 : vector<4x128xf32>
    %cst_183 = arith.constant 1.000000e+00 : f32
    %525 = vector.broadcast %cst_183 : f32 to vector<4x128xf32>
    %526 = arith.subf %514, %525 : vector<4x128xf32>
    %cst_184 = arith.constant 1.000000e+00 : f32
    %527 = vector.broadcast %cst_184 : f32 to vector<4x128xf32>
    %528 = arith.addf %514, %527 : vector<4x128xf32>
    %529 = arith.divf %526, %528 : vector<4x128xf32>
    %530 = arith.select %520, %529, %514 : vector<4x128xi1>, vector<4x128xf32>
    %531 = arith.select %516, %524, %530 : vector<4x128xi1>, vector<4x128xf32>
    %cst_185 = arith.constant 0.785398185 : f32
    %cst_186 = arith.constant 0.000000e+00 : f32
    %532 = vector.broadcast %cst_185 : f32 to vector<4x128xf32>
    %533 = vector.broadcast %cst_186 : f32 to vector<4x128xf32>
    %534 = arith.select %520, %532, %533 : vector<4x128xi1>, vector<4x128xf32>
    %cst_187 = arith.constant 1.57079637 : f32
    %535 = vector.broadcast %cst_187 : f32 to vector<4x128xf32>
    %536 = arith.select %516, %535, %534 : vector<4x128xi1>, vector<4x128xf32>
    %537 = arith.mulf %531, %531 : vector<4x128xf32>
    %cst_188 = arith.constant 0.0805374458 : f32
    %538 = vector.broadcast %cst_188 : f32 to vector<4x128xf32>
    %539 = arith.mulf %538, %537 : vector<4x128xf32>
    %cst_189 = arith.constant 0.138776854 : f32
    %540 = vector.broadcast %cst_189 : f32 to vector<4x128xf32>
    %541 = arith.subf %539, %540 : vector<4x128xf32>
    %542 = arith.mulf %541, %537 : vector<4x128xf32>
    %cst_190 = arith.constant 0.199777111 : f32
    %543 = vector.broadcast %cst_190 : f32 to vector<4x128xf32>
    %544 = arith.addf %542, %543 : vector<4x128xf32>
    %545 = arith.mulf %544, %537 : vector<4x128xf32>
    %cst_191 = arith.constant 0.333329499 : f32
    %546 = vector.broadcast %cst_191 : f32 to vector<4x128xf32>
    %547 = arith.subf %545, %546 : vector<4x128xf32>
    %548 = arith.mulf %547, %537 : vector<4x128xf32>
    %549 = arith.mulf %548, %531 : vector<4x128xf32>
    %550 = arith.addf %549, %531 : vector<4x128xf32>
    %551 = arith.addf %536, %550 : vector<4x128xf32>
    %552 = arith.mulf %513, %551 : vector<4x128xf32>
    %cst_192 = arith.constant 0.318309873 : f32
    %553 = vector.broadcast %cst_192 : f32 to vector<4x128xf32>
    %554 = arith.mulf %552, %553 : vector<4x128xf32>
    %cst_193 = arith.constant 5.000000e-01 : f32
    %555 = vector.broadcast %cst_193 : f32 to vector<4x128xf32>
    %556 = arith.addf %554, %555 : vector<4x128xf32>
    %557 = arith.subf %504, %505 : vector<4x128xf32>
    %558 = arith.mulf %556, %557 : vector<4x128xf32>
    %559 = arith.addf %505, %558 : vector<4x128xf32>
    %560 = arith.addf %504, %505 : vector<4x128xf32>
    %561 = arith.subf %560, %559 : vector<4x128xf32>
    %562 = tpu.concatenate %559, %561 in 1 : vector<4x128xf32>, vector<4x128xf32> -> vector<4x256xf32>
    %cst_194 = arith.constant dense<0.000000e+00> : vector<4x8xf32>
    %563 = tpu.matmul %562, %502, %cst_194 {dimension_numbers = #tpu.dot_dimension_numbers<[1], [0], [0], [1], [0, 0, 1, 1], [], []>} : vector<4x256xf32>, vector<256x8xf32>, vector<4x8xf32> -> vector<4x8xf32>
    %cst_195 = arith.constant dense<0.000000e+00> : vector<32x256xf32>
    %564 = tpu.matmul %496, %499, %cst_195 {dimension_numbers = #tpu.dot_dimension_numbers<[1], [0], [0], [1], [0, 0, 1, 1], [], []>} : vector<32x8xf32>, vector<8x256xf32>, vector<32x256xf32> -> vector<32x256xf32>
    %565 = vector.extract_strided_slice %564 {offsets = [0, 0], sizes = [32, 128], strides = [1, 1]} : vector<32x256xf32> to vector<32x128xf32>
    %566 = vector.extract_strided_slice %564 {offsets = [0, 128], sizes = [32, 128], strides = [1, 1]} : vector<32x256xf32> to vector<32x128xf32>
    %567 = vector.shape_cast %556 : vector<4x128xf32> to vector<4x1x128xf32>
    %568 = vector.shape_cast %567 : vector<4x1x128xf32> to vector<4x1x128xf32>
    %569 = vector.broadcast %568 : vector<4x1x128xf32> to vector<4x8x128xf32>
    %570 = vector.shape_cast %569 : vector<4x8x128xf32> to vector<32x128xf32>
    %571 = arith.subf %565, %566 : vector<32x128xf32>
    %572 = arith.mulf %570, %571 : vector<32x128xf32>
    %573 = arith.addf %566, %572 : vector<32x128xf32>
    %574 = arith.addf %565, %566 : vector<32x128xf32>
    %575 = arith.subf %574, %573 : vector<32x128xf32>
    %576 = tpu.concatenate %573, %575 in 1 : vector<32x128xf32>, vector<32x128xf32> -> vector<32x256xf32>
    %cst_196 = arith.constant dense<0.000000e+00> : vector<32x8xf32>
    %577 = tpu.matmul %576, %502, %cst_196 {dimension_numbers = #tpu.dot_dimension_numbers<[1], [0], [0], [1], [0, 0, 1, 1], [], []>} : vector<32x256xf32>, vector<256x8xf32>, vector<32x8xf32> -> vector<32x8xf32>
    %c7_i32 = arith.constant 7 : i32
    %578 = arith.index_cast %c7_i32 : i32 to index
    %c0_197 = arith.constant 0 : index
    %c0_198 = arith.constant 0 : index
    %579 = vector.load %arg2[%578, %c0_197, %c0_198] : memref<8x8x256xf32, #tpu.memory_space<vmem>>, vector<1x8x256xf32>
    %580 = vector.shape_cast %579 : vector<1x8x256xf32> to vector<8x256xf32>
    %581 = arith.index_cast %c7_i32 : i32 to index
    %c0_199 = arith.constant 0 : index
    %c0_200 = arith.constant 0 : index
    %582 = vector.load %arg3[%581, %c0_199, %c0_200] : memref<8x256x8xf32, #tpu.memory_space<vmem>>, vector<1x256x8xf32>
    %583 = vector.shape_cast %582 : vector<1x256x8xf32> to vector<256x8xf32>
    %cst_201 = arith.constant dense<0.000000e+00> : vector<4x256xf32>
    %584 = tpu.matmul %563, %580, %cst_201 {dimension_numbers = #tpu.dot_dimension_numbers<[1], [0], [0], [1], [0, 0, 1, 1], [], []>} : vector<4x8xf32>, vector<8x256xf32>, vector<4x256xf32> -> vector<4x256xf32>
    %585 = vector.extract_strided_slice %584 {offsets = [0, 0], sizes = [4, 128], strides = [1, 1]} : vector<4x256xf32> to vector<4x128xf32>
    %586 = vector.extract_strided_slice %584 {offsets = [0, 128], sizes = [4, 128], strides = [1, 1]} : vector<4x256xf32> to vector<4x128xf32>
    %587 = arith.subf %586, %585 : vector<4x128xf32>
    %cst_202 = arith.constant 1.000000e+01 : f32
    %588 = vector.broadcast %cst_202 : f32 to vector<4x128xf32>
    %589 = arith.mulf %588, %587 : vector<4x128xf32>
    %cst_203 = arith.constant 0.000000e+00 : f32
    %590 = vector.broadcast %cst_203 : f32 to vector<4x128xf32>
    %591 = arith.cmpf olt, %589, %590 : vector<4x128xf32>
    %cst_204 = arith.constant -1.000000e+00 : f32
    %cst_205 = arith.constant 1.000000e+00 : f32
    %592 = vector.broadcast %cst_204 : f32 to vector<4x128xf32>
    %593 = vector.broadcast %cst_205 : f32 to vector<4x128xf32>
    %594 = arith.select %591, %592, %593 : vector<4x128xi1>, vector<4x128xf32>
    %595 = math.absf %589 : vector<4x128xf32>
    %cst_206 = arith.constant 2.41421366 : f32
    %596 = vector.broadcast %cst_206 : f32 to vector<4x128xf32>
    %597 = arith.cmpf ogt, %595, %596 : vector<4x128xf32>
    %cst_207 = arith.constant 0.414213568 : f32
    %598 = vector.broadcast %cst_207 : f32 to vector<4x128xf32>
    %599 = arith.cmpf ogt, %595, %598 : vector<4x128xf32>
    %cst_208 = arith.constant dense<true> : vector<4x128xi1>
    %600 = arith.xori %597, %cst_208 : vector<4x128xi1>
    %601 = arith.andi %599, %600 : vector<4x128xi1>
    %cst_209 = arith.constant 1.000000e+00 : f32
    %602 = vector.broadcast %cst_209 : f32 to vector<4x128xf32>
    %603 = arith.maximumf %595, %602 : vector<4x128xf32>
    %cst_210 = arith.constant -1.000000e+00 : f32
    %604 = vector.broadcast %cst_210 : f32 to vector<4x128xf32>
    %605 = arith.divf %604, %603 : vector<4x128xf32>
    %cst_211 = arith.constant 1.000000e+00 : f32
    %606 = vector.broadcast %cst_211 : f32 to vector<4x128xf32>
    %607 = arith.subf %595, %606 : vector<4x128xf32>
    %cst_212 = arith.constant 1.000000e+00 : f32
    %608 = vector.broadcast %cst_212 : f32 to vector<4x128xf32>
    %609 = arith.addf %595, %608 : vector<4x128xf32>
    %610 = arith.divf %607, %609 : vector<4x128xf32>
    %611 = arith.select %601, %610, %595 : vector<4x128xi1>, vector<4x128xf32>
    %612 = arith.select %597, %605, %611 : vector<4x128xi1>, vector<4x128xf32>
    %cst_213 = arith.constant 0.785398185 : f32
    %cst_214 = arith.constant 0.000000e+00 : f32
    %613 = vector.broadcast %cst_213 : f32 to vector<4x128xf32>
    %614 = vector.broadcast %cst_214 : f32 to vector<4x128xf32>
    %615 = arith.select %601, %613, %614 : vector<4x128xi1>, vector<4x128xf32>
    %cst_215 = arith.constant 1.57079637 : f32
    %616 = vector.broadcast %cst_215 : f32 to vector<4x128xf32>
    %617 = arith.select %597, %616, %615 : vector<4x128xi1>, vector<4x128xf32>
    %618 = arith.mulf %612, %612 : vector<4x128xf32>
    %cst_216 = arith.constant 0.0805374458 : f32
    %619 = vector.broadcast %cst_216 : f32 to vector<4x128xf32>
    %620 = arith.mulf %619, %618 : vector<4x128xf32>
    %cst_217 = arith.constant 0.138776854 : f32
    %621 = vector.broadcast %cst_217 : f32 to vector<4x128xf32>
    %622 = arith.subf %620, %621 : vector<4x128xf32>
    %623 = arith.mulf %622, %618 : vector<4x128xf32>
    %cst_218 = arith.constant 0.199777111 : f32
    %624 = vector.broadcast %cst_218 : f32 to vector<4x128xf32>
    %625 = arith.addf %623, %624 : vector<4x128xf32>
    %626 = arith.mulf %625, %618 : vector<4x128xf32>
    %cst_219 = arith.constant 0.333329499 : f32
    %627 = vector.broadcast %cst_219 : f32 to vector<4x128xf32>
    %628 = arith.subf %626, %627 : vector<4x128xf32>
    %629 = arith.mulf %628, %618 : vector<4x128xf32>
    %630 = arith.mulf %629, %612 : vector<4x128xf32>
    %631 = arith.addf %630, %612 : vector<4x128xf32>
    %632 = arith.addf %617, %631 : vector<4x128xf32>
    %633 = arith.mulf %594, %632 : vector<4x128xf32>
    %cst_220 = arith.constant 0.318309873 : f32
    %634 = vector.broadcast %cst_220 : f32 to vector<4x128xf32>
    %635 = arith.mulf %633, %634 : vector<4x128xf32>
    %cst_221 = arith.constant 5.000000e-01 : f32
    %636 = vector.broadcast %cst_221 : f32 to vector<4x128xf32>
    %637 = arith.addf %635, %636 : vector<4x128xf32>
    %638 = arith.subf %585, %586 : vector<4x128xf32>
    %639 = arith.mulf %637, %638 : vector<4x128xf32>
    %640 = arith.addf %586, %639 : vector<4x128xf32>
    %641 = arith.addf %585, %586 : vector<4x128xf32>
    %642 = arith.subf %641, %640 : vector<4x128xf32>
    %643 = tpu.concatenate %640, %642 in 1 : vector<4x128xf32>, vector<4x128xf32> -> vector<4x256xf32>
    %cst_222 = arith.constant dense<0.000000e+00> : vector<4x8xf32>
    %644 = tpu.matmul %643, %583, %cst_222 {dimension_numbers = #tpu.dot_dimension_numbers<[1], [0], [0], [1], [0, 0, 1, 1], [], []>} : vector<4x256xf32>, vector<256x8xf32>, vector<4x8xf32> -> vector<4x8xf32>
    %cst_223 = arith.constant dense<0.000000e+00> : vector<32x256xf32>
    %645 = tpu.matmul %577, %580, %cst_223 {dimension_numbers = #tpu.dot_dimension_numbers<[1], [0], [0], [1], [0, 0, 1, 1], [], []>} : vector<32x8xf32>, vector<8x256xf32>, vector<32x256xf32> -> vector<32x256xf32>
    %646 = vector.extract_strided_slice %645 {offsets = [0, 0], sizes = [32, 128], strides = [1, 1]} : vector<32x256xf32> to vector<32x128xf32>
    %647 = vector.extract_strided_slice %645 {offsets = [0, 128], sizes = [32, 128], strides = [1, 1]} : vector<32x256xf32> to vector<32x128xf32>
    %648 = vector.shape_cast %637 : vector<4x128xf32> to vector<4x1x128xf32>
    %649 = vector.shape_cast %648 : vector<4x1x128xf32> to vector<4x1x128xf32>
    %650 = vector.broadcast %649 : vector<4x1x128xf32> to vector<4x8x128xf32>
    %651 = vector.shape_cast %650 : vector<4x8x128xf32> to vector<32x128xf32>
    %652 = arith.subf %646, %647 : vector<32x128xf32>
    %653 = arith.mulf %651, %652 : vector<32x128xf32>
    %654 = arith.addf %647, %653 : vector<32x128xf32>
    %655 = arith.addf %646, %647 : vector<32x128xf32>
    %656 = arith.subf %655, %654 : vector<32x128xf32>
    %657 = tpu.concatenate %654, %656 in 1 : vector<32x128xf32>, vector<32x128xf32> -> vector<32x256xf32>
    %cst_224 = arith.constant dense<0.000000e+00> : vector<32x8xf32>
    %658 = tpu.matmul %657, %583, %cst_224 {dimension_numbers = #tpu.dot_dimension_numbers<[1], [0], [0], [1], [0, 0, 1, 1], [], []>} : vector<32x256xf32>, vector<256x8xf32>, vector<32x8xf32> -> vector<32x8xf32>
    %c8_i32 = arith.constant 8 : i32
    %c0_225 = arith.constant 0 : index
    %c0_226 = arith.constant 0 : index
    %c0_227 = arith.constant 0 : index
    %659 = vector.load %arg4[%c0_225, %c0_226, %c0_227] : memref<1x4x8xf32, #tpu.memory_space<vmem>>, vector<1x4x8xf32>
    %660 = vector.shape_cast %659 : vector<1x4x8xf32> to vector<4x8xf32>
    %661 = vector.shape_cast %644 : vector<4x8xf32> to vector<1x4x8xf32>
    tpu.vector_store %arg4[%c0_225, %c0_226, %c0_227], %661 {strides = array<i32>} : memref<1x4x8xf32, #tpu.memory_space<vmem>>, vector<1x4x8xf32>,
    %662 = vector.shape_cast %658 : vector<32x8xf32> to vector<4x8x8xf32>
    %c0_228 = arith.constant 0 : index
    %c0_229 = arith.constant 0 : index
    %c0_230 = arith.constant 0 : index
    %663 = vector.load %arg5[%c0_228, %c0_229, %c0_230] : memref<4x8x8xf32, #tpu.memory_space<vmem>>, vector<4x8x8xf32>
    tpu.vector_store %arg5[%c0_228, %c0_229, %c0_230], %662 {strides = array<i32>} : memref<4x8x8xf32, #tpu.memory_space<vmem>>, vector<4x8x8xf32>,
    return
  }
  func.func @transform_0(%arg0: i32) -> (i32, i32, i32) {
    %c0_i32 = arith.constant 0 : i32
    %c0_i32_0 = arith.constant 0 : i32
    %c0_i32_1 = arith.constant 0 : i32
    return %arg0, %c0_i32, %c0_i32_0 : i32, i32, i32
  }
  func.func @transform_1(%arg0: i32) -> (i32, i32, i32) {
    %c0_i32 = arith.constant 0 : i32
    %c0_i32_0 = arith.constant 0 : i32
    %c0_i32_1 = arith.constant 0 : i32
    %c0_i32_2 = arith.constant 0 : i32
    return %c0_i32, %c0_i32_0, %c0_i32_1 : i32, i32, i32
  }
  func.func @transform_2(%arg0: i32) -> (i32, i32, i32) {
    %c0_i32 = arith.constant 0 : i32
    %c0_i32_0 = arith.constant 0 : i32
    %c0_i32_1 = arith.constant 0 : i32
    %c0_i32_2 = arith.constant 0 : i32
    return %c0_i32, %c0_i32_0, %c0_i32_1 : i32, i32, i32
  }
  func.func @transform_3(%arg0: i32) -> (i32, i32, i32) {
    %c0_i32 = arith.constant 0 : i32
    %c0_i32_0 = arith.constant 0 : i32
    %c0_i32_1 = arith.constant 0 : i32
    return %arg0, %c0_i32, %c0_i32_0 : i32, i32, i32
  }
  func.func @transform_4(%arg0: i32) -> (i32, i32, i32) {
    %c0_i32 = arith.constant 0 : i32
    %c0_i32_0 = arith.constant 0 : i32
    %c0_i32_1 = arith.constant 0 : i32
    return %arg0, %c0_i32, %c0_i32_0 : i32, i32, i32
  }
}

</mosaic_0001>

<llo_original>
// kernel: tpu_custom_call.1
$region0: #{tpu_custom_call.1}
  #allocation0 [shape = 'u32[]', space=smem, size = 0x4, offset = 0x4, fixed_abs, tag = 'smem constant byte address 0x4 - core index']
  #allocation1 [shape = 'u32[144,128]{1,0:T(1,128)}', space=vmem, size = 0x12000, scoped, tag = 'internal scratch']
  %s0 = inlined_call_operand.vmem [shape: f32[1,4,8], index: 0, kind: input, shape index: {}]
  %s1 = inlined_call_operand.vmem [shape: f32[8,8,256], index: 1, kind: input, shape index: {}]
  %s2 = inlined_call_operand.vmem [shape: f32[8,256,8], index: 2, kind: input, shape index: {}]
  %s3 = inlined_call_operand.hbm [shape: f32[1,4,8], index: 3, kind: output, shape index: {0}]
  %s4 = inlined_call_operand.hbm [shape: f32[4,8,8], index: 4, kind: output, shape index: {1}]
  %5 = xla_tuple %s3, %s4
  %s6 = sld [smem:[#allocation0]]
  $region30: #{tpu_custom_call.1} parent=0
    _
  %s8 = ssub.s32 1, %s6
  %s9 = scalar_select 0, %s8, %s6
  $region1: #{tpu_custom_call.1} parent=0
    #allocation2 [shape = 'u8[2048]{0}', space=vmem, size = 0x800, scoped, tag = 'output window, operand 0, single buffered']
    #allocation3 [shape = 's32[1]{0}', space=sflag, size = 0x4, scoped, tag = 'scoped memory for tpu_custom_call.1']
    #allocation4 [shape = 'u8[16384]{0}', space=vmem, size = 0x4000, scoped, tag = 'output window, operand 1, single buffered']
    #allocation5 [shape = 's32[1]{0}', space=sflag, size = 0x4, scoped, tag = 'scoped memory for tpu_custom_call.1']
    %10 = vsyncpa [#allocation3], 0
    %11 = vsyncpa [#allocation5], 0
    // Predicated region
    $region2: #{tpu_custom_call.1} parent=1 // pred_check
      _
    $region3: #{tpu_custom_call.1} parent=1 // pred_check_branch
      %13 = sbr.rel (0) target = $region5
    $region4: #{tpu_custom_call.1} parent=1 // pred_region
      _
    $region5: #{tpu_custom_call.1} parent=1 // pred_fallthru
      _
    // Predicated region
    $region6: #{tpu_custom_call.1} parent=1 // pred_check
      _
    $region7: #{tpu_custom_call.1} parent=1 // pred_check_branch
      %15 = sbr.rel (0) target = $region9
    $region8: #{tpu_custom_call.1} parent=1 // pred_region
      _
    $region9: #{tpu_custom_call.1} parent=1 // pred_fallthru
      _
    // Predicated region
    $region10: #{tpu_custom_call.1} parent=1 // pred_check
      _
    $region11: #{tpu_custom_call.1} parent=1 // pred_check_branch
      %17 = sbr.rel (0) target = $region13
    $region12: #{tpu_custom_call.1} parent=1 // pred_region
      _
    $region13: #{tpu_custom_call.1} parent=1 // pred_fallthru
      _
    %v18 = vld [vmem:[%s0] sm:$0xf]
    %v19 = vlaneseq
    %v20 = vshrl.u32 %v19, 7
    %v21 = vlaneseq
    %v22 = vand.u32 %v21, 127
    %vm23 = vcmp.eq.s32.totalorder %v20, %v22
    %v24 = vsel %vm23, 1, 0
    %v25 = vcvt.s32.f32 %v24
    %v26 = vld [vmem:[%s1] sm:$0xff]
    %v27 = vld [vmem:[%s1 + $0x8] sm:$0xff]
    %v28 = vld [vmem:[%s2] sm:$0xff]
    %v29 = vld [vmem:[%s2 + $0x8] sm:$0xff]
    %v30 = vld [vmem:[%s2 + $0x10] sm:$0xff]
    %v31 = vld [vmem:[%s2 + $0x18] sm:$0xff]
    %v32 = vld [vmem:[%s2 + $0x20] sm:$0xff]
    %v33 = vld [vmem:[%s2 + $0x28] sm:$0xff]
    %v34 = vld [vmem:[%s2 + $0x30] sm:$0xff]
    %v35 = vld [vmem:[%s2 + $0x38] sm:$0xff]
    %v36 = vld [vmem:[%s2 + $0x40] sm:$0xff]
    %v37 = vld [vmem:[%s2 + $0x48] sm:$0xff]
    %v38 = vld [vmem:[%s2 + $0x50] sm:$0xff]
    %v39 = vld [vmem:[%s2 + $0x58] sm:$0xff]
    %v40 = vld [vmem:[%s2 + $0x60] sm:$0xff]
    %v41 = vld [vmem:[%s2 + $0x68] sm:$0xff]
    %v42 = vld [vmem:[%s2 + $0x70] sm:$0xff]
    %v43 = vld [vmem:[%s2 + $0x78] sm:$0xff]
    %v44 = vld [vmem:[%s2 + $0x80] sm:$0xff]
    %v45 = vld [vmem:[%s2 + $0x88] sm:$0xff]
    %v46 = vld [vmem:[%s2 + $0x90] sm:$0xff]
    %v47 = vld [vmem:[%s2 + $0x98] sm:$0xff]
    %v48 = vld [vmem:[%s2 + $0xa0] sm:$0xff]
    %v49 = vld [vmem:[%s2 + $0xa8] sm:$0xff]
    %v50 = vld [vmem:[%s2 + $0xb0] sm:$0xff]
    %v51 = vld [vmem:[%s2 + $0xb8] sm:$0xff]
    %v52 = vld [vmem:[%s2 + $0xc0] sm:$0xff]
    %v53 = vld [vmem:[%s2 + $0xc8] sm:$0xff]
    %v54 = vld [vmem:[%s2 + $0xd0] sm:$0xff]
    %v55 = vld [vmem:[%s2 + $0xd8] sm:$0xff]
    %v56 = vld [vmem:[%s2 + $0xe0] sm:$0xff]
    %v57 = vld [vmem:[%s2 + $0xe8] sm:$0xff]
    %v58 = vld [vmem:[%s2 + $0xf0] sm:$0xff]
    %v59 = vld [vmem:[%s2 + $0xf8] sm:$0xff]
    %vm60 = vcmask 64512
    %v62 = vsel %vm60, %v18, 0
    %64 = vmatprep.subr.mxu0 %v27
    %65 = vmatpush1.msra.mxu0 %v26
    %66 = vmatprep.subr.mxu0 0.0
    %67 = vmatpush1.msra.mxu0 0.0
    %68 = vmatprep.subr.mxu0 0.0
    %69 = vmatpush1.msra.mxu0 0.0
    %70 = vmatprep.subr.mxu0 0.0
    %71 = vmatpush1.msra.mxu0 0.0
    %72 = vmatprep.subr.mxu0 0.0
    %73 = vmatpush1.msra.mxu0 0.0
    %74 = vmatprep.subr.mxu0 0.0
    %75 = vmatpush1.msra.mxu0 0.0
    %76 = vmatprep.subr.mxu0 0.0
    %77 = vmatpush1.msra.mxu0 0.0
    %78 = vmatprep.subr.mxu0 0.0
    %79 = vmatpush1.msra.mxu0 0.0
    %80 = vmatprep.subr.mxu0 0.0
    %81 = vmatpush1.msra.mxu0 0.0
    %82 = vmatprep.subr.mxu0 0.0
    %83 = vmatpush1.msra.mxu0 0.0
    %84 = vmatprep.subr.mxu0 0.0
    %85 = vmatpush1.msra.mxu0 0.0
    %86 = vmatprep.subr.mxu0 0.0
    %87 = vmatpush1.msra.mxu0 0.0
    %88 = vmatprep.subr.mxu0 0.0
    %89 = vmatpush1.msra.mxu0 0.0
    %90 = vmatprep.subr.mxu0 0.0
    %91 = vmatpush1.msra.mxu0 0.0
    %92 = vmatprep.subr.mxu0 0.0
    %93 = vmatpush1.msra.mxu0 0.0
    %94 = vmatprep.subr.mxu0 0.0
    %95 = vmatpush1.msra.mxu0 0.0
    %96 = vmatprep.subr.mxu0 0.0
    %97 = vmatpush1.msra.mxu0 0.0
    %98 = vmatprep.subr.mxu0 0.0
    %99 = vmatpush1.msra.mxu0 0.0
    %100 = vmatprep.subr.mxu0 0.0
    %101 = vmatpush1.msra.mxu0 0.0
    %102 = vmatprep.subr.mxu0 0.0
    %103 = vmatpush1.msra.mxu0 0.0
    %104 = vmatprep.subr.mxu0 0.0
    %105 = vmatpush1.msra.mxu0 0.0
    %106 = vmatprep.subr.mxu0 0.0
    %107 = vmatpush1.msra.mxu0 0.0
    %108 = vmatprep.subr.mxu0 0.0
    %109 = vmatpush1.msra.mxu0 0.0
    %110 = vmatprep.subr.mxu0 0.0
    %111 = vmatpush1.msra.mxu0 0.0
    %112 = vmatprep.subr.mxu0 0.0
    %113 = vmatpush1.msra.mxu0 0.0
    %114 = vmatprep.subr.mxu0 0.0
    %115 = vmatpush1.msra.mxu0 0.0
    %116 = vmatprep.subr.mxu0 0.0
    %117 = vmatpush1.msra.mxu0 0.0
    %118 = vmatprep.subr.mxu0 0.0
    %119 = vmatpush1.msra.mxu0 0.0
    %120 = vmatprep.subr.mxu0 0.0
    %121 = vmatpush1.msra.mxu0 0.0
    %122 = vmatprep.subr.mxu0 0.0
    %123 = vmatpush1.msra.mxu0 0.0
    %124 = vmatprep.subr.mxu0 0.0
    %125 = vmatpush1.msra.mxu0 0.0
    %126 = vmatprep.subr.mxu0 0.0
    %127 = vmatpush1.msra.mxu0 0.0
    %128 = vmatprep.mubr.f32.mxu0 0.0
    %129 = vmatmul.mubr.f32.gmra.mrb[0].mxu0 %v62
    %v130 = vpop.f32.mrb[0].mxu0
    %v131 = vadd.f32 0.0, %v130
    %v132 = vpop.f32.mrb[0].mxu0
    %v133 = vadd.f32 0.0, %v132
    %134 = vdwg.mxu0
    %v135 = vsub.f32 %v133, %v131
    %v136 = vmul.f32 %v135, 10.0
    %vm137 = vcmp.lt.f32.partialorder %v136, 0.0
    %v138 = vsel %vm137, -1.0, 1.0
    %v139 = vand.u32 2147483647, %v136
    %vm140 = vcmp.gt.f32.partialorder %v139, 2.4142137
    %vm141 = vcmp.gt.f32.partialorder %v139, 0.41421357
    %vm142 = vmxor %vm140, 1
    %vm143 = vmand %vm141, %vm142
    %v144 = vmax.f32 %v139, 1.0
    %v145 = vrcp.pop %v144
    %v146 = vmul.f32 -1.0, %v145
    %v147 = vsub.f32 %v139, 1.0
    %v148 = vadd.f32 %v139, 1.0
    %v149 = vrcp.pop %v148
    %v150 = vmul.f32 %v147, %v149
    %v151 = vsel %vm143, %v150, %v139
    %v152 = vsel %vm140, %v146, %v151
    %v153 = vsel %vm143, 0.7853982, 0.0
    %v154 = vsel %vm140, 1.5707964, %v153
    %v155 = vmul.f32 %v152, %v152
    %v156 = vmul.f32 %v155, 0.080537446
    %v157 = vsub.f32 %v156, 0.13877685
    %v158 = vmul.f32 %v157, %v155
    %v159 = vadd.f32 %v158, 0.19977711
    %v160 = vmul.f32 %v159, %v155
    %v161 = vsub.f32 %v160, 0.3333295
    %v162 = vmul.f32 %v161, %v155
    %v163 = vmul.f32 %v162, %v152
    %v164 = vadd.f32 %v163, %v152
    %v165 = vadd.f32 %v154, %v164
    %v166 = vmul.f32 %v138, %v165
    %v167 = vmul.f32 %v166, 0.31830987
    %v168 = vadd.f32 %v167, 0.5
    %v169 = vsub.f32 %v131, %v133
    %v170 = vmul.f32 %v168, %v169
    %v171 = vadd.f32 %v133, %v170
    %v172 = vadd.f32 %v131, %v133
    %v173 = vsub.f32 %v172, %v171
    %174 = vmatprep.subr.mxu0 0.0
    %175 = vmatpush1.msra.mxu0 %v28
    %176 = vmatprep.subr.mxu0 0.0
    %177 = vmatpush1.msra.mxu0 %v29
    %178 = vmatprep.subr.mxu0 0.0
    %179 = vmatpush1.msra.mxu0 %v30
    %180 = vmatprep.subr.mxu0 0.0
    %181 = vmatpush1.msra.mxu0 %v31
    %182 = vmatprep.subr.mxu0 0.0
    %183 = vmatpush1.msra.mxu0 %v32
    %184 = vmatprep.subr.mxu0 0.0
    %185 = vmatpush1.msra.mxu0 %v33
    %186 = vmatprep.subr.mxu0 0.0
    %187 = vmatpush1.msra.mxu0 %v34
    %188 = vmatprep.subr.mxu0 0.0
    %189 = vmatpush1.msra.mxu0 %v35
    %190 = vmatprep.subr.mxu0 0.0
    %191 = vmatpush1.msra.mxu0 %v36
    %192 = vmatprep.subr.mxu0 0.0
    %193 = vmatpush1.msra.mxu0 %v37
    %194 = vmatprep.subr.mxu0 0.0
    %195 = vmatpush1.msra.mxu0 %v38
    %196 = vmatprep.subr.mxu0 0.0
    %197 = vmatpush1.msra.mxu0 %v39
    %198 = vmatprep.subr.mxu0 0.0
    %199 = vmatpush1.msra.mxu0 %v40
    %200 = vmatprep.subr.mxu0 0.0
    %201 = vmatpush1.msra.mxu0 %v41
    %202 = vmatprep.subr.mxu0 0.0
    %203 = vmatpush1.msra.mxu0 %v42
    %204 = vmatprep.subr.mxu0 0.0
    %205 = vmatpush1.msra.mxu0 %v43
    %206 = vmatprep.subr.mxu0 0.0
    %207 = vmatpush1.msra.mxu0 %v44
    %208 = vmatprep.subr.mxu0 0.0
    %209 = vmatpush1.msra.mxu0 %v45
    %210 = vmatprep.subr.mxu0 0.0
    %211 = vmatpush1.msra.mxu0 %v46
    %212 = vmatprep.subr.mxu0 0.0
    %213 = vmatpush1.msra.mxu0 %v47
    %214 = vmatprep.subr.mxu0 0.0
    %215 = vmatpush1.msra.mxu0 %v48
    %216 = vmatprep.subr.mxu0 0.0
    %217 = vmatpush1.msra.mxu0 %v49
    %218 = vmatprep.subr.mxu0 0.0
    %219 = vmatpush1.msra.mxu0 %v50
    %220 = vmatprep.subr.mxu0 0.0
    %221 = vmatpush1.msra.mxu0 %v51
    %222 = vmatprep.subr.mxu0 0.0
    %223 = vmatpush1.msra.mxu0 %v52
    %224 = vmatprep.subr.mxu0 0.0
    %225 = vmatpush1.msra.mxu0 %v53
    %226 = vmatprep.subr.mxu0 0.0
    %227 = vmatpush1.msra.mxu0 %v54
    %228 = vmatprep.subr.mxu0 0.0
    %229 = vmatpush1.msra.mxu0 %v55
    %230 = vmatprep.subr.mxu0 0.0
    %231 = vmatpush1.msra.mxu0 %v56
    %232 = vmatprep.subr.mxu0 0.0
    %233 = vmatpush1.msra.mxu0 %v57
    %234 = vmatprep.subr.mxu0 0.0
    %235 = vmatpush1.msra.mxu0 %v58
    %236 = vmatprep.subr.mxu0 0.0
    %237 = vmatpush1.msra.mxu0 %v59
    %238 = vmatprep.mubr.f32.mxu0 %v173
    %239 = vmatmul.mubr.f32.gmra.mrb[0].mxu0 %v171
    %v240 = vpop.f32.mrb[0].mxu0
    %v241 = vadd.f32 0.0, %v240
    %v242 = vpop.f32.mrb[0].mxu0
    %243 = vdwg.mxu0
    %v245 = vsel %vm60, %v25, 0
    %247 = vmatprep.subr.mxu0 %v27
    %248 = vmatpush1.msra.mxu0 %v26
    %249 = vmatprep.subr.mxu0 0.0
    %250 = vmatpush1.msra.mxu0 0.0
    %251 = vmatprep.subr.mxu0 0.0
    %252 = vmatpush1.msra.mxu0 0.0
    %253 = vmatprep.subr.mxu0 0.0
    %254 = vmatpush1.msra.mxu0 0.0
    %255 = vmatprep.subr.mxu0 0.0
    %256 = vmatpush1.msra.mxu0 0.0
    %257 = vmatprep.subr.mxu0 0.0
    %258 = vmatpush1.msra.mxu0 0.0
    %259 = vmatprep.subr.mxu0 0.0
    %260 = vmatpush1.msra.mxu0 0.0
    %261 = vmatprep.subr.mxu0 0.0
    %262 = vmatpush1.msra.mxu0 0.0
    %263 = vmatprep.subr.mxu0 0.0
    %264 = vmatpush1.msra.mxu0 0.0
    %265 = vmatprep.subr.mxu0 0.0
    %266 = vmatpush1.msra.mxu0 0.0
    %267 = vmatprep.subr.mxu0 0.0
    %268 = vmatpush1.msra.mxu0 0.0
    %269 = vmatprep.subr.mxu0 0.0
    %270 = vmatpush1.msra.mxu0 0.0
    %271 = vmatprep.subr.mxu0 0.0
    %272 = vmatpush1.msra.mxu0 0.0
    %273 = vmatprep.subr.mxu0 0.0
    %274 = vmatpush1.msra.mxu0 0.0
    %275 = vmatprep.subr.mxu0 0.0
    %276 = vmatpush1.msra.mxu0 0.0
    %277 = vmatprep.subr.mxu0 0.0
    %278 = vmatpush1.msra.mxu0 0.0
    %279 = vmatprep.subr.mxu0 0.0
    %280 = vmatpush1.msra.mxu0 0.0
    %281 = vmatprep.subr.mxu0 0.0
    %282 = vmatpush1.msra.mxu0 0.0
    %283 = vmatprep.subr.mxu0 0.0
    %284 = vmatpush1.msra.mxu0 0.0
    %285 = vmatprep.subr.mxu0 0.0
    %286 = vmatpush1.msra.mxu0 0.0
    %287 = vmatprep.subr.mxu0 0.0
    %288 = vmatpush1.msra.mxu0 0.0
    %289 = vmatprep.subr.mxu0 0.0
    %290 = vmatpush1.msra.mxu0 0.0
    %291 = vmatprep.subr.mxu0 0.0
    %292 = vmatpush1.msra.mxu0 0.0
    %293 = vmatprep.subr.mxu0 0.0
    %294 = vmatpush1.msra.mxu0 0.0
    %295 = vmatprep.subr.mxu0 0.0
    %296 = vmatpush1.msra.mxu0 0.0
    %297 = vmatprep.subr.mxu0 0.0
    %298 = vmatpush1.msra.mxu0 0.0
    %299 = vmatprep.subr.mxu0 0.0
    %300 = vmatpush1.msra.mxu0 0.0
    %301 = vmatprep.subr.mxu0 0.0
    %302 = vmatpush1.msra.mxu0 0.0
    %303 = vmatprep.subr.mxu0 0.0
    %304 = vmatpush1.msra.mxu0 0.0
    %305 = vmatprep.subr.mxu0 0.0
    %306 = vmatpush1.msra.mxu0 0.0
    %307 = vmatprep.subr.mxu0 0.0
    %308 = vmatpush1.msra.mxu0 0.0
    %309 = vmatprep.subr.mxu0 0.0
    %310 = vmatpush1.msra.mxu0 0.0
    %311 = vmatprep.mubr.f32.mxu0 0.0
    %312 = vmatmul.mubr.f32.gmra.mrb[0].mxu0 %v245
    %v313 = vpop.f32.mrb[0].mxu0
    %v314 = vadd.f32 0.0, %v313
    %v315 = vpop.f32.mrb[0].mxu0
    %v316 = vadd.f32 0.0, %v315
    %317 = vmatprep.mubr.f32.mxu0 0.0
    %318 = vmatmul.mubr.f32.gmra.mrb[0].mxu0 %v245
    %v319 = vpop.f32.mrb[0].mxu0
    %v320 = vadd.f32 0.0, %v319
    %v321 = vpop.f32.mrb[0].mxu0
    %v322 = vadd.f32 0.0, %v321
    %323 = vmatprep.mubr.f32.mxu0 0.0
    %324 = vmatmul.mubr.f32.gmra.mrb[0].mxu0 %v245
    %v325 = vpop.f32.mrb[0].mxu0
    %v326 = vadd.f32 0.0, %v325
    %v327 = vpop.f32.mrb[0].mxu0
    %v328 = vadd.f32 0.0, %v327
    %329 = vmatprep.mubr.f32.mxu0 0.0
    %330 = vmatmul.mubr.f32.gmra.mrb[0].mxu0 %v245
    %v331 = vpop.f32.mrb[0].mxu0
    %v332 = vadd.f32 0.0, %v331
    %v333 = vpop.f32.mrb[0].mxu0
    %v334 = vadd.f32 0.0, %v333
    %335 = vdwg.mxu0
    %v338 = vunpack.c.l.s4 1966171168
    %v339 = vunpack.c.0.s8 %v338
    %v340 = vlaneseq
    %v341 = vshrl.u32 %v340, 7
    %v342 = vsub.s32 %v339, %v341
    %v343 = vrot.slane %v168, %v342
    %v344 = vcombine.high %v343, %v343
    %v346 = vunpack.c.l.s4 1966171168
    %v347 = vunpack.c.0.s8 %v346
    %v348 = vlaneseq
    %v349 = vshrl.u32 %v348, 7
    %v350 = vsub.s32 %v347, %v349
    %v351 = vrot.slane %v343, %v350
    %v353 = vunpack.c.l.s4 1966171168
    %v354 = vunpack.c.0.s8 %v353
    %v355 = vlaneseq
    %v356 = vshrl.u32 %v355, 7
    %v357 = vsub.s32 %v354, %v356
    %v358 = vrot.slane %v344, %v357
    %v359 = vcombine.high %v351, %v351
    %v360 = vcombine.high %v358, %v358
    %v361 = vlaneseq
    %v362 = vshrl.u32 %v361, 7
    %v363 = vsub.s32 0, %v362
    %v364 = vrot.slane %v351, %v363
    %v365 = vlaneseq
    %v366 = vshrl.u32 %v365, 7
    %v367 = vsub.s32 0, %v366
    %v368 = vrot.slane %v358, %v367
    %v369 = vlaneseq
    %v370 = vshrl.u32 %v369, 7
    %v371 = vsub.s32 0, %v370
    %v372 = vrot.slane %v359, %v371
    %v373 = vlaneseq
    %v374 = vshrl.u32 %v373, 7
    %v375 = vsub.s32 0, %v374
    %v376 = vrot.slane %v360, %v375
    %v381 = vsub.f32 %v314, %v316
    %v382 = vsub.f32 %v320, %v322
    %v383 = vsub.f32 %v326, %v328
    %v384 = vsub.f32 %v332, %v334
    %v385 = vmul.f32 %v364, %v381
    %v386 = vmul.f32 %v368, %v382
    %v387 = vmul.f32 %v372, %v383
    %v388 = vmul.f32 %v376, %v384
    %v389 = vadd.f32 %v316, %v385
    %v390 = vadd.f32 %v322, %v386
    %v391 = vadd.f32 %v328, %v387
    %v392 = vadd.f32 %v334, %v388
    %v393 = vadd.f32 %v314, %v316
    %v394 = vadd.f32 %v320, %v322
    %v395 = vadd.f32 %v326, %v328
    %v396 = vadd.f32 %v332, %v334
    %v397 = vsub.f32 %v393, %v389
    %v398 = vsub.f32 %v394, %v390
    %v399 = vsub.f32 %v395, %v391
    %v400 = vsub.f32 %v396, %v392
    %401 = vmatprep.subr.mxu0 0.0
    %402 = vmatpush1.msra.mxu0 %v28
    %403 = vmatprep.subr.mxu0 0.0
    %404 = vmatpush1.msra.mxu0 %v29
    %405 = vmatprep.subr.mxu0 0.0
    %406 = vmatpush1.msra.mxu0 %v30
    %407 = vmatprep.subr.mxu0 0.0
    %408 = vmatpush1.msra.mxu0 %v31
    %409 = vmatprep.subr.mxu0 0.0
    %410 = vmatpush1.msra.mxu0 %v32
    %411 = vmatprep.subr.mxu0 0.0
    %412 = vmatpush1.msra.mxu0 %v33
    %413 = vmatprep.subr.mxu0 0.0
    %414 = vmatpush1.msra.mxu0 %v34
    %415 = vmatprep.subr.mxu0 0.0
    %416 = vmatpush1.msra.mxu0 %v35
    %417 = vmatprep.subr.mxu0 0.0
    %418 = vmatpush1.msra.mxu0 %v36
    %419 = vmatprep.subr.mxu0 0.0
    %420 = vmatpush1.msra.mxu0 %v37
    %421 = vmatprep.subr.mxu0 0.0
    %422 = vmatpush1.msra.mxu0 %v38
    %423 = vmatprep.subr.mxu0 0.0
    %424 = vmatpush1.msra.mxu0 %v39
    %425 = vmatprep.subr.mxu0 0.0
    %426 = vmatpush1.msra.mxu0 %v40
    %427 = vmatprep.subr.mxu0 0.0
    %428 = vmatpush1.msra.mxu0 %v41
    %429 = vmatprep.subr.mxu0 0.0
    %430 = vmatpush1.msra.mxu0 %v42
    %431 = vmatprep.subr.mxu0 0.0
    %432 = vmatpush1.msra.mxu0 %v43
    %433 = vmatprep.subr.mxu0 0.0
    %434 = vmatpush1.msra.mxu0 %v44
    %435 = vmatprep.subr.mxu0 0.0
    %436 = vmatpush1.msra.mxu0 %v45
    %437 = vmatprep.subr.mxu0 0.0
    %438 = vmatpush1.msra.mxu0 %v46
    %439 = vmatprep.subr.mxu0 0.0
    %440 = vmatpush1.msra.mxu0 %v47
    %441 = vmatprep.subr.mxu0 0.0
    %442 = vmatpush1.msra.mxu0 %v48
    %443 = vmatprep.subr.mxu0 0.0
    %444 = vmatpush1.msra.mxu0 %v49
    %445 = vmatprep.subr.mxu0 0.0
    %446 = vmatpush1.msra.mxu0 %v50
    %447 = vmatprep.subr.mxu0 0.0
    %448 = vmatpush1.msra.mxu0 %v51
    %449 = vmatprep.subr.mxu0 0.0
    %450 = vmatpush1.msra.mxu0 %v52
    %451 = vmatprep.subr.mxu0 0.0
    %452 = vmatpush1.msra.mxu0 %v53
    %453 = vmatprep.subr.mxu0 0.0
    %454 = vmatpush1.msra.mxu0 %v54
    %455 = vmatprep.subr.mxu0 0.0
    %456 = vmatpush1.msra.mxu0 %v55
    %457 = vmatprep.subr.mxu0 0.0
    %458 = vmatpush1.msra.mxu0 %v56
    %459 = vmatprep.subr.mxu0 0.0
    %460 = vmatpush1.msra.mxu0 %v57
    %461 = vmatprep.subr.mxu0 0.0
    %462 = vmatpush1.msra.mxu0 %v58
    %463 = vmatprep.subr.mxu0 0.0
    %464 = vmatpush1.msra.mxu0 %v59
    %465 = vmatprep.mubr.f32.mxu0 %v397
    %466 = vmatmul.mubr.f32.gmra.mrb[0].mxu0 %v389
    %v467 = vpop.f32.mrb[0].mxu0
    %v468 = vadd.f32 0.0, %v467
    %v469 = vpop.f32.mrb[0].mxu0
    %470 = vmatprep.mubr.f32.mxu0 %v398
    %471 = vmatmul.mubr.f32.gmra.mrb[0].mxu0 %v390
    %v472 = vpop.f32.mrb[0].mxu0
    %v473 = vadd.f32 0.0, %v472
    %v474 = vpop.f32.mrb[0].mxu0
    %475 = vmatprep.mubr.f32.mxu0 %v399
    %476 = vmatmul.mubr.f32.gmra.mrb[0].mxu0 %v391
    %v477 = vpop.f32.mrb[0].mxu0
    %v478 = vadd.f32 0.0, %v477
    %v479 = vpop.f32.mrb[0].mxu0
    %480 = vmatprep.mubr.f32.mxu0 %v400
    %481 = vmatmul.mubr.f32.gmra.mrb[0].mxu0 %v392
    %v482 = vpop.f32.mrb[0].mxu0
    %v483 = vadd.f32 0.0, %v482
    %v484 = vpop.f32.mrb[0].mxu0
    %485 = vdwg.mxu0
    %s486 = scalar_lea.vmem %s1, 16
    %v487 = vld [vmem:[%s486] sm:$0xff]
    %v488 = vld [vmem:[%s486 + $0x8] sm:$0xff]
    %s489 = scalar_lea.vmem %s2, 256
    %v490 = vld [vmem:[%s489] sm:$0xff]
    %v491 = vld [vmem:[%s489 + $0x8] sm:$0xff]
    %v492 = vld [vmem:[%s489 + $0x10] sm:$0xff]
    %v493 = vld [vmem:[%s489 + $0x18] sm:$0xff]
    %v494 = vld [vmem:[%s489 + $0x20] sm:$0xff]
    %v495 = vld [vmem:[%s489 + $0x28] sm:$0xff]
    %v496 = vld [vmem:[%s489 + $0x30] sm:$0xff]
    %v497 = vld [vmem:[%s489 + $0x38] sm:$0xff]
    %v498 = vld [vmem:[%s489 + $0x40] sm:$0xff]
    %v499 = vld [vmem:[%s489 + $0x48] sm:$0xff]
    %v500 = vld [vmem:[%s489 + $0x50] sm:$0xff]
    %v501 = vld [vmem:[%s489 + $0x58] sm:$0xff]
    %v502 = vld [vmem:[%s489 + $0x60] sm:$0xff]
    %v503 = vld [vmem:[%s489 + $0x68] sm:$0xff]
    %v504 = vld [vmem:[%s489 + $0x70] sm:$0xff]
    %v505 = vld [vmem:[%s489 + $0x78] sm:$0xff]
    %v506 = vld [vmem:[%s489 + $0x80] sm:$0xff]
    %v507 = vld [vmem:[%s489 + $0x88] sm:$0xff]
    %v508 = vld [vmem:[%s489 + $0x90] sm:$0xff]
    %v509 = vld [vmem:[%s489 + $0x98] sm:$0xff]
    %v510 = vld [vmem:[%s489 + $0xa0] sm:$0xff]
    %v511 = vld [vmem:[%s489 + $0xa8] sm:$0xff]
    %v512 = vld [vmem:[%s489 + $0xb0] sm:$0xff]
    %v513 = vld [vmem:[%s489 + $0xb8] sm:$0xff]
    %v514 = vld [vmem:[%s489 + $0xc0] sm:$0xff]
    %v515 = vld [vmem:[%s489 + $0xc8] sm:$0xff]
    %v516 = vld [vmem:[%s489 + $0xd0] sm:$0xff]
    %v517 = vld [vmem:[%s489 + $0xd8] sm:$0xff]
    %v518 = vld [vmem:[%s489 + $0xe0] sm:$0xff]
    %v519 = vld [vmem:[%s489 + $0xe8] sm:$0xff]
    %v520 = vld [vmem:[%s489 + $0xf0] sm:$0xff]
    %v521 = vld [vmem:[%s489 + $0xf8] sm:$0xff]
    %v523 = vsel %vm60, %v241, 0
    %525 = vmatprep.subr.mxu0 %v488
    %526 = vmatpush1.msra.mxu0 %v487
    %527 = vmatprep.subr.mxu0 0.0
    %528 = vmatpush1.msra.mxu0 0.0
    %529 = vmatprep.subr.mxu0 0.0
    %530 = vmatpush1.msra.mxu0 0.0
    %531 = vmatprep.subr.mxu0 0.0
    %532 = vmatpush1.msra.mxu0 0.0
    %533 = vmatprep.subr.mxu0 0.0
    %534 = vmatpush1.msra.mxu0 0.0
    %535 = vmatprep.subr.mxu0 0.0
    %536 = vmatpush1.msra.mxu0 0.0
    %537 = vmatprep.subr.mxu0 0.0
    %538 = vmatpush1.msra.mxu0 0.0
    %539 = vmatprep.subr.mxu0 0.0
    %540 = vmatpush1.msra.mxu0 0.0
    %541 = vmatprep.subr.mxu0 0.0
    %542 = vmatpush1.msra.mxu0 0.0
    %543 = vmatprep.subr.mxu0 0.0
    %544 = vmatpush1.msra.mxu0 0.0
    %545 = vmatprep.subr.mxu0 0.0
    %546 = vmatpush1.msra.mxu0 0.0
    %547 = vmatprep.subr.mxu0 0.0
    %548 = vmatpush1.msra.mxu0 0.0
    %549 = vmatprep.subr.mxu0 0.0
    %550 = vmatpush1.msra.mxu0 0.0
    %551 = vmatprep.subr.mxu0 0.0
    %552 = vmatpush1.msra.mxu0 0.0
    %553 = vmatprep.subr.mxu0 0.0
    %554 = vmatpush1.msra.mxu0 0.0
    %555 = vmatprep.subr.mxu0 0.0
    %556 = vmatpush1.msra.mxu0 0.0
    %557 = vmatprep.subr.mxu0 0.0
    %558 = vmatpush1.msra.mxu0 0.0
    %559 = vmatprep.subr.mxu0 0.0
    %560 = vmatpush1.msra.mxu0 0.0
    %561 = vmatprep.subr.mxu0 0.0
    %562 = vmatpush1.msra.mxu0 0.0
    %563 = vmatprep.subr.mxu0 0.0
    %564 = vmatpush1.msra.mxu0 0.0
    %565 = vmatprep.subr.mxu0 0.0
    %566 = vmatpush1.msra.mxu0 0.0
    %567 = vmatprep.subr.mxu0 0.0
    %568 = vmatpush1.msra.mxu0 0.0
    %569 = vmatprep.subr.mxu0 0.0
    %570 = vmatpush1.msra.mxu0 0.0
    %571 = vmatprep.subr.mxu0 0.0
    %572 = vmatpush1.msra.mxu0 0.0
    %573 = vmatprep.subr.mxu0 0.0
    %574 = vmatpush1.msra.mxu0 0.0
    %575 = vmatprep.subr.mxu0 0.0
    %576 = vmatpush1.msra.mxu0 0.0
    %577 = vmatprep.subr.mxu0 0.0
    %578 = vmatpush1.msra.mxu0 0.0
    %579 = vmatprep.subr.mxu0 0.0
    %580 = vmatpush1.msra.mxu0 0.0
    %581 = vmatprep.subr.mxu0 0.0
    %582 = vmatpush1.msra.mxu0 0.0
    %583 = vmatprep.subr.mxu0 0.0
    %584 = vmatpush1.msra.mxu0 0.0
    %585 = vmatprep.subr.mxu0 0.0
    %586 = vmatpush1.msra.mxu0 0.0
    %587 = vmatprep.subr.mxu0 0.0
    %588 = vmatpush1.msra.mxu0 0.0
    %589 = vmatprep.mubr.f32.mxu0 0.0
    %590 = vmatmul.mubr.f32.gmra.mrb[0].mxu0 %v523
    %v591 = vpop.f32.mrb[0].mxu0
    %v592 = vadd.f32 0.0, %v591
    %v593 = vpop.f32.mrb[0].mxu0
    %v594 = vadd.f32 0.0, %v593
    %595 = vdwg.mxu0
    %v596 = vsub.f32 %v594, %v592
    %v597 = vmul.f32 %v596, 10.0
    %vm598 = vcmp.lt.f32.partialorder %v597, 0.0
    %v599 = vsel %vm598, -1.0, 1.0
    %v600 = vand.u32 2147483647, %v597
    %vm601 = vcmp.gt.f32.partialorder %v600, 2.4142137
    %vm602 = vcmp.gt.f32.partialorder %v600, 0.41421357
    %vm603 = vmxor %vm601, 1
    %vm604 = vmand %vm602, %vm603
    %v605 = vmax.f32 %v600, 1.0
    %v606 = vrcp.pop %v605
    %v607 = vmul.f32 -1.0, %v606
    %v608 = vsub.f32 %v600, 1.0
    %v609 = vadd.f32 %v600, 1.0
    %v610 = vrcp.pop %v609
    %v611 = vmul.f32 %v608, %v610
    %v612 = vsel %vm604, %v611, %v600
    %v613 = vsel %vm601, %v607, %v612
    %v614 = vsel %vm604, 0.7853982, 0.0
    %v615 = vsel %vm601, 1.5707964, %v614
    %v616 = vmul.f32 %v613, %v613
    %v617 = vmul.f32 %v616, 0.080537446
    %v618 = vsub.f32 %v617, 0.13877685
    %v619 = vmul.f32 %v618, %v616
    %v620 = vadd.f32 %v619, 0.19977711
    %v621 = vmul.f32 %v620, %v616
    %v622 = vsub.f32 %v621, 0.3333295
    %v623 = vmul.f32 %v622, %v616
    %v624 = vmul.f32 %v623, %v613
    %v625 = vadd.f32 %v624, %v613
    %v626 = vadd.f32 %v615, %v625
    %v627 = vmul.f32 %v599, %v626
    %v628 = vmul.f32 %v627, 0.31830987
    %v629 = vadd.f32 %v628, 0.5
    %v630 = vsub.f32 %v592, %v594
    %v631 = vmul.f32 %v629, %v630
    %v632 = vadd.f32 %v594, %v631
    %v633 = vadd.f32 %v592, %v594
    %v634 = vsub.f32 %v633, %v632
    %635 = vmatprep.subr.mxu0 0.0
    %636 = vmatpush1.msra.mxu0 %v490
    %637 = vmatprep.subr.mxu0 0.0
    %638 = vmatpush1.msra.mxu0 %v491
    %639 = vmatprep.subr.mxu0 0.0
    %640 = vmatpush1.msra.mxu0 %v492
    %641 = vmatprep.subr.mxu0 0.0
    %642 = vmatpush1.msra.mxu0 %v493
    %643 = vmatprep.subr.mxu0 0.0
    %644 = vmatpush1.msra.mxu0 %v494
    %645 = vmatprep.subr.mxu0 0.0
    %646 = vmatpush1.msra.mxu0 %v495
    %647 = vmatprep.subr.mxu0 0.0
    %648 = vmatpush1.msra.mxu0 %v496
    %649 = vmatprep.subr.mxu0 0.0
    %650 = vmatpush1.msra.mxu0 %v497
    %651 = vmatprep.subr.mxu0 0.0
    %652 = vmatpush1.msra.mxu0 %v498
    %653 = vmatprep.subr.mxu0 0.0
    %654 = vmatpush1.msra.mxu0 %v499
    %655 = vmatprep.subr.mxu0 0.0
    %656 = vmatpush1.msra.mxu0 %v500
    %657 = vmatprep.subr.mxu0 0.0
    %658 = vmatpush1.msra.mxu0 %v501
    %659 = vmatprep.subr.mxu0 0.0
    %660 = vmatpush1.msra.mxu0 %v502
    %661 = vmatprep.subr.mxu0 0.0
    %662 = vmatpush1.msra.mxu0 %v503
    %663 = vmatprep.subr.mxu0 0.0
    %664 = vmatpush1.msra.mxu0 %v504
    %665 = vmatprep.subr.mxu0 0.0
    %666 = vmatpush1.msra.mxu0 %v505
    %667 = vmatprep.subr.mxu0 0.0
    %668 = vmatpush1.msra.mxu0 %v506
    %669 = vmatprep.subr.mxu0 0.0
    %670 = vmatpush1.msra.mxu0 %v507
    %671 = vmatprep.subr.mxu0 0.0
    %672 = vmatpush1.msra.mxu0 %v508
    %673 = vmatprep.subr.mxu0 0.0
    %674 = vmatpush1.msra.mxu0 %v509
    %675 = vmatprep.subr.mxu0 0.0
    %676 = vmatpush1.msra.mxu0 %v510
    %677 = vmatprep.subr.mxu0 0.0
    %678 = vmatpush1.msra.mxu0 %v511
    %679 = vmatprep.subr.mxu0 0.0
    %680 = vmatpush1.msra.mxu0 %v512
    %681 = vmatprep.subr.mxu0 0.0
    %682 = vmatpush1.msra.mxu0 %v513
    %683 = vmatprep.subr.mxu0 0.0
    %684 = vmatpush1.msra.mxu0 %v514
    %685 = vmatprep.subr.mxu0 0.0
    %686 = vmatpush1.msra.mxu0 %v515
    %687 = vmatprep.subr.mxu0 0.0
    %688 = vmatpush1.msra.mxu0 %v516
    %689 = vmatprep.subr.mxu0 0.0
    %690 = vmatpush1.msra.mxu0 %v517
    %691 = vmatprep.subr.mxu0 0.0
    %692 = vmatpush1.msra.mxu0 %v518
    %693 = vmatprep.subr.mxu0 0.0
    %694 = vmatpush1.msra.mxu0 %v519
    %695 = vmatprep.subr.mxu0 0.0
    %696 = vmatpush1.msra.mxu0 %v520
    %697 = vmatprep.subr.mxu0 0.0
    %698 = vmatpush1.msra.mxu0 %v521
    %699 = vmatprep.mubr.f32.mxu0 %v634
    %700 = vmatmul.mubr.f32.gmra.mrb[0].mxu0 %v632
    %v701 = vpop.f32.mrb[0].mxu0
    %v702 = vadd.f32 0.0, %v701
    %v703 = vpop.f32.mrb[0].mxu0
    %704 = vdwg.mxu0
    %v706 = vsel %vm60, %v468, 0
    %v709 = vsel %vm60, %v473, 0
    %v712 = vsel %vm60, %v478, 0
    %v715 = vsel %vm60, %v483, 0
    %717 = vmatprep.subr.mxu0 %v488
    %718 = vmatpush1.msra.mxu0 %v487
    %719 = vmatprep.subr.mxu0 0.0
    %720 = vmatpush1.msra.mxu0 0.0
    %721 = vmatprep.subr.mxu0 0.0
    %722 = vmatpush1.msra.mxu0 0.0
    %723 = vmatprep.subr.mxu0 0.0
    %724 = vmatpush1.msra.mxu0 0.0
    %725 = vmatprep.subr.mxu0 0.0
    %726 = vmatpush1.msra.mxu0 0.0
    %727 = vmatprep.subr.mxu0 0.0
    %728 = vmatpush1.msra.mxu0 0.0
    %729 = vmatprep.subr.mxu0 0.0
    %730 = vmatpush1.msra.mxu0 0.0
    %731 = vmatprep.subr.mxu0 0.0
    %732 = vmatpush1.msra.mxu0 0.0
    %733 = vmatprep.subr.mxu0 0.0
    %734 = vmatpush1.msra.mxu0 0.0
    %735 = vmatprep.subr.mxu0 0.0
    %736 = vmatpush1.msra.mxu0 0.0
    %737 = vmatprep.subr.mxu0 0.0
    %738 = vmatpush1.msra.mxu0 0.0
    %739 = vmatprep.subr.mxu0 0.0
    %740 = vmatpush1.msra.mxu0 0.0
    %741 = vmatprep.subr.mxu0 0.0
    %742 = vmatpush1.msra.mxu0 0.0
    %743 = vmatprep.subr.mxu0 0.0
    %744 = vmatpush1.msra.mxu0 0.0
    %745 = vmatprep.subr.mxu0 0.0
    %746 = vmatpush1.msra.mxu0 0.0
    %747 = vmatprep.subr.mxu0 0.0
    %748 = vmatpush1.msra.mxu0 0.0
    %749 = vmatprep.subr.mxu0 0.0
    %750 = vmatpush1.msra.mxu0 0.0
    %751 = vmatprep.subr.mxu0 0.0
    %752 = vmatpush1.msra.mxu0 0.0
    %753 = vmatprep.subr.mxu0 0.0
    %754 = vmatpush1.msra.mxu0 0.0
    %755 = vmatprep.subr.mxu0 0.0
    %756 = vmatpush1.msra.mxu0 0.0
    %757 = vmatprep.subr.mxu0 0.0
    %758 = vmatpush1.msra.mxu0 0.0
    %759 = vmatprep.subr.mxu0 0.0
    %760 = vmatpush1.msra.mxu0 0.0
    %761 = vmatprep.subr.mxu0 0.0
    %762 = vmatpush1.msra.mxu0 0.0
    %763 = vmatprep.subr.mxu0 0.0
    %764 = vmatpush1.msra.mxu0 0.0
    %765 = vmatprep.subr.mxu0 0.0
    %766 = vmatpush1.msra.mxu0 0.0
    %767 = vmatprep.subr.mxu0 0.0
    %768 = vmatpush1.msra.mxu0 0.0
    %769 = vmatprep.subr.mxu0 0.0
    %770 = vmatpush1.msra.mxu0 0.0
    %771 = vmatprep.subr.mxu0 0.0
    %772 = vmatpush1.msra.mxu0 0.0
    %773 = vmatprep.subr.mxu0 0.0
    %774 = vmatpush1.msra.mxu0 0.0
    %775 = vmatprep.subr.mxu0 0.0
    %776 = vmatpush1.msra.mxu0 0.0
    %777 = vmatprep.subr.mxu0 0.0
    %778 = vmatpush1.msra.mxu0 0.0
    %779 = vmatprep.subr.mxu0 0.0
    %780 = vmatpush1.msra.mxu0 0.0
    %781 = vmatprep.mubr.f32.mxu0 0.0
    %782 = vmatmul.mubr.f32.gmra.mrb[0].mxu0 %v706
    %v783 = vpop.f32.mrb[0].mxu0
    %v784 = vadd.f32 0.0, %v783
    %v785 = vpop.f32.mrb[0].mxu0
    %v786 = vadd.f32 0.0, %v785
    %787 = vmatprep.mubr.f32.mxu0 0.0
    %788 = vmatmul.mubr.f32.gmra.mrb[0].mxu0 %v709
    %v789 = vpop.f32.mrb[0].mxu0
    %v790 = vadd.f32 0.0, %v789
    %v791 = vpop.f32.mrb[0].mxu0
    %v792 = vadd.f32 0.0, %v791
    %793 = vmatprep.mubr.f32.mxu0 0.0
    %794 = vmatmul.mubr.f32.gmra.mrb[0].mxu0 %v712
    %v795 = vpop.f32.mrb[0].mxu0
    %v796 = vadd.f32 0.0, %v795
    %v797 = vpop.f32.mrb[0].mxu0
    %v798 = vadd.f32 0.0, %v797
    %799 = vmatprep.mubr.f32.mxu0 0.0
    %800 = vmatmul.mubr.f32.gmra.mrb[0].mxu0 %v715
    %v801 = vpop.f32.mrb[0].mxu0
    %v802 = vadd.f32 0.0, %v801
    %v803 = vpop.f32.mrb[0].mxu0
    %v804 = vadd.f32 0.0, %v803
    %805 = vdwg.mxu0
    %v808 = vunpack.c.l.s4 1966171168
    %v809 = vunpack.c.0.s8 %v808
    %v810 = vlaneseq
    %v811 = vshrl.u32 %v810, 7
    %v812 = vsub.s32 %v809, %v811
    %v813 = vrot.slane %v629, %v812
    %v814 = vcombine.high %v813, %v813
    %v816 = vunpack.c.l.s4 1966171168
    %v817 = vunpack.c.0.s8 %v816
    %v818 = vlaneseq
    %v819 = vshrl.u32 %v818, 7
    %v820 = vsub.s32 %v817, %v819
    %v821 = vrot.slane %v813, %v820
    %v823 = vunpack.c.l.s4 1966171168
    %v824 = vunpack.c.0.s8 %v823
    %v825 = vlaneseq
    %v826 = vshrl.u32 %v825, 7
    %v827 = vsub.s32 %v824, %v826
    %v828 = vrot.slane %v814, %v827
    %v829 = vcombine.high %v821, %v821
    %v830 = vcombine.high %v828, %v828
    %v831 = vlaneseq
    %v832 = vshrl.u32 %v831, 7
    %v833 = vsub.s32 0, %v832
    %v834 = vrot.slane %v821, %v833
    %v835 = vlaneseq
    %v836 = vshrl.u32 %v835, 7
    %v837 = vsub.s32 0, %v836
    %v838 = vrot.slane %v828, %v837
    %v839 = vlaneseq
    %v840 = vshrl.u32 %v839, 7
    %v841 = vsub.s32 0, %v840
    %v842 = vrot.slane %v829, %v841
    %v843 = vlaneseq
    %v844 = vshrl.u32 %v843, 7
    %v845 = vsub.s32 0, %v844
    %v846 = vrot.slane %v830, %v845
    %v851 = vsub.f32 %v784, %v786
    %v852 = vsub.f32 %v790, %v792
    %v853 = vsub.f32 %v796, %v798
    %v854 = vsub.f32 %v802, %v804
    %v855 = vmul.f32 %v834, %v851
    %v856 = vmul.f32 %v838, %v852
    %v857 = vmul.f32 %v842, %v853
    %v858 = vmul.f32 %v846, %v854
    %v859 = vadd.f32 %v786, %v855
    %v860 = vadd.f32 %v792, %v856
    %v861 = vadd.f32 %v798, %v857
    %v862 = vadd.f32 %v804, %v858
    %v863 = vadd.f32 %v784, %v786
    %v864 = vadd.f32 %v790, %v792
    %v865 = vadd.f32 %v796, %v798
    %v866 = vadd.f32 %v802, %v804
    %v867 = vsub.f32 %v863, %v859
    %v868 = vsub.f32 %v864, %v860
    %v869 = vsub.f32 %v865, %v861
    %v870 = vsub.f32 %v866, %v862
    %871 = vmatprep.subr.mxu0 0.0
    %872 = vmatpush1.msra.mxu0 %v490
    %873 = vmatprep.subr.mxu0 0.0
    %874 = vmatpush1.msra.mxu0 %v491
    %875 = vmatprep.subr.mxu0 0.0
    %876 = vmatpush1.msra.mxu0 %v492
    %877 = vmatprep.subr.mxu0 0.0
    %878 = vmatpush1.msra.mxu0 %v493
    %879 = vmatprep.subr.mxu0 0.0
    %880 = vmatpush1.msra.mxu0 %v494
    %881 = vmatprep.subr.mxu0 0.0
    %882 = vmatpush1.msra.mxu0 %v495
    %883 = vmatprep.subr.mxu0 0.0
    %884 = vmatpush1.msra.mxu0 %v496
    %885 = vmatprep.subr.mxu0 0.0
    %886 = vmatpush1.msra.mxu0 %v497
    %887 = vmatprep.subr.mxu0 0.0
    %888 = vmatpush1.msra.mxu0 %v498
    %889 = vmatprep.subr.mxu0 0.0
    %890 = vmatpush1.msra.mxu0 %v499
    %891 = vmatprep.subr.mxu0 0.0
    %892 = vmatpush1.msra.mxu0 %v500
    %893 = vmatprep.subr.mxu0 0.0
    %894 = vmatpush1.msra.mxu0 %v501
    %895 = vmatprep.subr.mxu0 0.0
    %896 = vmatpush1.msra.mxu0 %v502
    %897 = vmatprep.subr.mxu0 0.0
    %898 = vmatpush1.msra.mxu0 %v503
    %899 = vmatprep.subr.mxu0 0.0
    %900 = vmatpush1.msra.mxu0 %v504
    %901 = vmatprep.subr.mxu0 0.0
    %902 = vmatpush1.msra.mxu0 %v505
    %903 = vmatprep.subr.mxu0 0.0
    %904 = vmatpush1.msra.mxu0 %v506
    %905 = vmatprep.subr.mxu0 0.0
    %906 = vmatpush1.msra.mxu0 %v507
    %907 = vmatprep.subr.mxu0 0.0
    %908 = vmatpush1.msra.mxu0 %v508
    %909 = vmatprep.subr.mxu0 0.0
    %910 = vmatpush1.msra.mxu0 %v509
    %911 = vmatprep.subr.mxu0 0.0
    %912 = vmatpush1.msra.mxu0 %v510
    %913 = vmatprep.subr.mxu0 0.0
    %914 = vmatpush1.msra.mxu0 %v511
    %915 = vmatprep.subr.mxu0 0.0
    %916 = vmatpush1.msra.mxu0 %v512
    %917 = vmatprep.subr.mxu0 0.0
    %918 = vmatpush1.msra.mxu0 %v513
    %919 = vmatprep.subr.mxu0 0.0
    %920 = vmatpush1.msra.mxu0 %v514
    %921 = vmatprep.subr.mxu0 0.0
    %922 = vmatpush1.msra.mxu0 %v515
    %923 = vmatprep.subr.mxu0 0.0
    %924 = vmatpush1.msra.mxu0 %v516
    %925 = vmatprep.subr.mxu0 0.0
    %926 = vmatpush1.msra.mxu0 %v517
    %927 = vmatprep.subr.mxu0 0.0
    %928 = vmatpush1.msra.mxu0 %v518
    %929 = vmatprep.subr.mxu0 0.0
    %930 = vmatpush1.msra.mxu0 %v519
    %931 = vmatprep.subr.mxu0 0.0
    %932 = vmatpush1.msra.mxu0 %v520
    %933 = vmatprep.subr.mxu0 0.0
    %934 = vmatpush1.msra.mxu0 %v521
    %935 = vmatprep.mubr.f32.mxu0 %v867
    %936 = vmatmul.mubr.f32.gmra.mrb[0].mxu0 %v859
    %v937 = vpop.f32.mrb[0].mxu0
    %v938 = vadd.f32 0.0, %v937
    %v939 = vpop.f32.mrb[0].mxu0
    %940 = vmatprep.mubr.f32.mxu0 %v868
    %941 = vmatmul.mubr.f32.gmra.mrb[0].mxu0 %v860
    %v942 = vpop.f32.mrb[0].mxu0
    %v943 = vadd.f32 0.0, %v942
    %v944 = vpop.f32.mrb[0].mxu0
    %945 = vmatprep.mubr.f32.mxu0 %v869
    %946 = vmatmul.mubr.f32.gmra.mrb[0].mxu0 %v861
    %v947 = vpop.f32.mrb[0].mxu0
    %v948 = vadd.f32 0.0, %v947
    %v949 = vpop.f32.mrb[0].mxu0
    %950 = vmatprep.mubr.f32.mxu0 %v870
    %951 = vmatmul.mubr.f32.gmra.mrb[0].mxu0 %v862
    %v952 = vpop.f32.mrb[0].mxu0
    %v953 = vadd.f32 0.0, %v952
    %v954 = vpop.f32.mrb[0].mxu0
    %955 = vdwg.mxu0
    %s956 = scalar_lea.vmem %s1, 32
    %v957 = vld [vmem:[%s956] sm:$0xff]
    %v958 = vld [vmem:[%s956 + $0x8] sm:$0xff]
    %s959 = scalar_lea.vmem %s2, 512
    %v960 = vld [vmem:[%s959] sm:$0xff]
    %v961 = vld [vmem:[%s959 + $0x8] sm:$0xff]
    %v962 = vld [vmem:[%s959 + $0x10] sm:$0xff]
    %v963 = vld [vmem:[%s959 + $0x18] sm:$0xff]
    %v964 = vld [vmem:[%s959 + $0x20] sm:$0xff]
    %v965 = vld [vmem:[%s959 + $0x28] sm:$0xff]
    %v966 = vld [vmem:[%s959 + $0x30] sm:$0xff]
    %v967 = vld [vmem:[%s959 + $0x38] sm:$0xff]
    %v968 = vld [vmem:[%s959 + $0x40] sm:$0xff]
    %v969 = vld [vmem:[%s959 + $0x48] sm:$0xff]
    %v970 = vld [vmem:[%s959 + $0x50] sm:$0xff]
    %v971 = vld [vmem:[%s959 + $0x58] sm:$0xff]
    %v972 = vld [vmem:[%s959 + $0x60] sm:$0xff]
    %v973 = vld [vmem:[%s959 + $0x68] sm:$0xff]
    %v974 = vld [vmem:[%s959 + $0x70] sm:$0xff]
    %v975 = vld [vmem:[%s959 + $0x78] sm:$0xff]
    %v976 = vld [vmem:[%s959 + $0x80] sm:$0xff]
    %v977 = vld [vmem:[%s959 + $0x88] sm:$0xff]
    %v978 = vld [vmem:[%s959 + $0x90] sm:$0xff]
    %v979 = vld [vmem:[%s959 + $0x98] sm:$0xff]
    %v980 = vld [vmem:[%s959 + $0xa0] sm:$0xff]
    %v981 = vld [vmem:[%s959 + $0xa8] sm:$0xff]
    %v982 = vld [vmem:[%s959 + $0xb0] sm:$0xff]
    %v983 = vld [vmem:[%s959 + $0xb8] sm:$0xff]
    %v984 = vld [vmem:[%s959 + $0xc0] sm:$0xff]
    %v985 = vld [vmem:[%s959 + $0xc8] sm:$0xff]
    %v986 = vld [vmem:[%s959 + $0xd0] sm:$0xff]
    %v987 = vld [vmem:[%s959 + $0xd8] sm:$0xff]
    %v988 = vld [vmem:[%s959 + $0xe0] sm:$0xff]
    %v989 = vld [vmem:[%s959 + $0xe8] sm:$0xff]
    %v990 = vld [vmem:[%s959 + $0xf0] sm:$0xff]
    %v991 = vld [vmem:[%s959 + $0xf8] sm:$0xff]
    %v993 = vsel %vm60, %v702, 0
    %995 = vmatprep.subr.mxu0 %v958
    %996 = vmatpush1.msra.mxu0 %v957
    %997 = vmatprep.subr.mxu0 0.0
    %998 = vmatpush1.msra.mxu0 0.0
    %999 = vmatprep.subr.mxu0 0.0
    %1000 = vmatpush1.msra.mxu0 0.0
    %1001 = vmatprep.subr.mxu0 0.0
    %1002 = vmatpush1.msra.mxu0 0.0
    %1003 = vmatprep.subr.mxu0 0.0
    %1004 = vmatpush1.msra.mxu0 0.0
    %1005 = vmatprep.subr.mxu0 0.0
    %1006 = vmatpush1.msra.mxu0 0.0
    %1007 = vmatprep.subr.mxu0 0.0
    %1008 = vmatpush1.msra.mxu0 0.0
    %1009 = vmatprep.subr.mxu0 0.0
    %1010 = vmatpush1.msra.mxu0 0.0
    %1011 = vmatprep.subr.mxu0 0.0
    %1012 = vmatpush1.msra.mxu0 0.0
    %1013 = vmatprep.subr.mxu0 0.0
    %1014 = vmatpush1.msra.mxu0 0.0
    %1015 = vmatprep.subr.mxu0 0.0
    %1016 = vmatpush1.msra.mxu0 0.0
    %1017 = vmatprep.subr.mxu0 0.0
    %1018 = vmatpush1.msra.mxu0 0.0
    %1019 = vmatprep.subr.mxu0 0.0
    %1020 = vmatpush1.msra.mxu0 0.0
    %1021 = vmatprep.subr.mxu0 0.0
    %1022 = vmatpush1.msra.mxu0 0.0
    %1023 = vmatprep.subr.mxu0 0.0
    %1024 = vmatpush1.msra.mxu0 0.0
    %1025 = vmatprep.subr.mxu0 0.0
    %1026 = vmatpush1.msra.mxu0 0.0
    %1027 = vmatprep.subr.mxu0 0.0
    %1028 = vmatpush1.msra.mxu0 0.0
    %1029 = vmatprep.subr.mxu0 0.0
    %1030 = vmatpush1.msra.mxu0 0.0
    %1031 = vmatprep.subr.mxu0 0.0
    %1032 = vmatpush1.msra.mxu0 0.0
    %1033 = vmatprep.subr.mxu0 0.0
    %1034 = vmatpush1.msra.mxu0 0.0
    %1035 = vmatprep.subr.mxu0 0.0
    %1036 = vmatpush1.msra.mxu0 0.0
    %1037 = vmatprep.subr.mxu0 0.0
    %1038 = vmatpush1.msra.mxu0 0.0
    %1039 = vmatprep.subr.mxu0 0.0
    %1040 = vmatpush1.msra.mxu0 0.0
    %1041 = vmatprep.subr.mxu0 0.0
    %1042 = vmatpush1.msra.mxu0 0.0
    %1043 = vmatprep.subr.mxu0 0.0
    %1044 = vmatpush1.msra.mxu0 0.0
    %1045 = vmatprep.subr.mxu0 0.0
    %1046 = vmatpush1.msra.mxu0 0.0
    %1047 = vmatprep.subr.mxu0 0.0
    %1048 = vmatpush1.msra.mxu0 0.0
    %1049 = vmatprep.subr.mxu0 0.0
    %1050 = vmatpush1.msra.mxu0 0.0
    %1051 = vmatprep.subr.mxu0 0.0
    %1052 = vmatpush1.msra.mxu0 0.0
    %1053 = vmatprep.subr.mxu0 0.0
    %1054 = vmatpush1.msra.mxu0 0.0
    %1055 = vmatprep.subr.mxu0 0.0
    %1056 = vmatpush1.msra.mxu0 0.0
    %1057 = vmatprep.subr.mxu0 0.0
    %1058 = vmatpush1.msra.mxu0 0.0
    %1059 = vmatprep.mubr.f32.mxu0 0.0
    %1060 = vmatmul.mubr.f32.gmra.mrb[0].mxu0 %v993
    %v1061 = vpop.f32.mrb[0].mxu0
    %v1062 = vadd.f32 0.0, %v1061
    %v1063 = vpop.f32.mrb[0].mxu0
    %v1064 = vadd.f32 0.0, %v1063
    %1065 = vdwg.mxu0
    %v1066 = vsub.f32 %v1064, %v1062
    %v1067 = vmul.f32 %v1066, 10.0
    %vm1068 = vcmp.lt.f32.partialorder %v1067, 0.0
    %v1069 = vsel %vm1068, -1.0, 1.0
    %v1070 = vand.u32 2147483647, %v1067
    %vm1071 = vcmp.gt.f32.partialorder %v1070, 2.4142137
    %vm1072 = vcmp.gt.f32.partialorder %v1070, 0.41421357
    %vm1073 = vmxor %vm1071, 1
    %vm1074 = vmand %vm1072, %vm1073
    %v1075 = vmax.f32 %v1070, 1.0
    %v1076 = vrcp.pop %v1075
    %v1077 = vmul.f32 -1.0, %v1076
    %v1078 = vsub.f32 %v1070, 1.0
    %v1079 = vadd.f32 %v1070, 1.0
    %v1080 = vrcp.pop %v1079
    %v1081 = vmul.f32 %v1078, %v1080
    %v1082 = vsel %vm1074, %v1081, %v1070
    %v1083 = vsel %vm1071, %v1077, %v1082
    %v1084 = vsel %vm1074, 0.7853982, 0.0
    %v1085 = vsel %vm1071, 1.5707964, %v1084
    %v1086 = vmul.f32 %v1083, %v1083
    %v1087 = vmul.f32 %v1086, 0.080537446
    %v1088 = vsub.f32 %v1087, 0.13877685
    %v1089 = vmul.f32 %v1088, %v1086
    %v1090 = vadd.f32 %v1089, 0.19977711
    %v1091 = vmul.f32 %v1090, %v1086
    %v1092 = vsub.f32 %v1091, 0.3333295
    %v1093 = vmul.f32 %v1092, %v1086
    %v1094 = vmul.f32 %v1093, %v1083
    %v1095 = vadd.f32 %v1094, %v1083
    %v1096 = vadd.f32 %v1085, %v1095
    %v1097 = vmul.f32 %v1069, %v1096
    %v1098 = vmul.f32 %v1097, 0.31830987
    %v1099 = vadd.f32 %v1098, 0.5
    %v1100 = vsub.f32 %v1062, %v1064
    %v1101 = vmul.f32 %v1099, %v1100
    %v1102 = vadd.f32 %v1064, %v1101
    %v1103 = vadd.f32 %v1062, %v1064
    %v1104 = vsub.f32 %v1103, %v1102
    %1105 = vmatprep.subr.mxu0 0.0
    %1106 = vmatpush1.msra.mxu0 %v960
    %1107 = vmatprep.subr.mxu0 0.0
    %1108 = vmatpush1.msra.mxu0 %v961
    %1109 = vmatprep.subr.mxu0 0.0
    %1110 = vmatpush1.msra.mxu0 %v962
    %1111 = vmatprep.subr.mxu0 0.0
    %1112 = vmatpush1.msra.mxu0 %v963
    %1113 = vmatprep.subr.mxu0 0.0
    %1114 = vmatpush1.msra.mxu0 %v964
    %1115 = vmatprep.subr.mxu0 0.0
    %1116 = vmatpush1.msra.mxu0 %v965
    %1117 = vmatprep.subr.mxu0 0.0
    %1118 = vmatpush1.msra.mxu0 %v966
    %1119 = vmatprep.subr.mxu0 0.0
    %1120 = vmatpush1.msra.mxu0 %v967
    %1121 = vmatprep.subr.mxu0 0.0
    %1122 = vmatpush1.msra.mxu0 %v968
    %1123 = vmatprep.subr.mxu0 0.0
    %1124 = vmatpush1.msra.mxu0 %v969
    %1125 = vmatprep.subr.mxu0 0.0
    %1126 = vmatpush1.msra.mxu0 %v970
    %1127 = vmatprep.subr.mxu0 0.0
    %1128 = vmatpush1.msra.mxu0 %v971
    %1129 = vmatprep.subr.mxu0 0.0
    %1130 = vmatpush1.msra.mxu0 %v972
    %1131 = vmatprep.subr.mxu0 0.0
    %1132 = vmatpush1.msra.mxu0 %v973
    %1133 = vmatprep.subr.mxu0 0.0
    %1134 = vmatpush1.msra.mxu0 %v974
    %1135 = vmatprep.subr.mxu0 0.0
    %1136 = vmatpush1.msra.mxu0 %v975
    %1137 = vmatprep.subr.mxu0 0.0
    %1138 = vmatpush1.msra.mxu0 %v976
    %1139 = vmatprep.subr.mxu0 0.0
    %1140 = vmatpush1.msra.mxu0 %v977
    %1141 = vmatprep.subr.mxu0 0.0
    %1142 = vmatpush1.msra.mxu0 %v978
    %1143 = vmatprep.subr.mxu0 0.0
    %1144 = vmatpush1.msra.mxu0 %v979
    %1145 = vmatprep.subr.mxu0 0.0
    %1146 = vmatpush1.msra.mxu0 %v980
    %1147 = vmatprep.subr.mxu0 0.0
    %1148 = vmatpush1.msra.mxu0 %v981
    %1149 = vmatprep.subr.mxu0 0.0
    %1150 = vmatpush1.msra.mxu0 %v982
    %1151 = vmatprep.subr.mxu0 0.0
    %1152 = vmatpush1.msra.mxu0 %v983
    %1153 = vmatprep.subr.mxu0 0.0
    %1154 = vmatpush1.msra.mxu0 %v984
    %1155 = vmatprep.subr.mxu0 0.0
    %1156 = vmatpush1.msra.mxu0 %v985
    %1157 = vmatprep.subr.mxu0 0.0
    %1158 = vmatpush1.msra.mxu0 %v986
    %1159 = vmatprep.subr.mxu0 0.0
    %1160 = vmatpush1.msra.mxu0 %v987
    %1161 = vmatprep.subr.mxu0 0.0
    %1162 = vmatpush1.msra.mxu0 %v988
    %1163 = vmatprep.subr.mxu0 0.0
    %1164 = vmatpush1.msra.mxu0 %v989
    %1165 = vmatprep.subr.mxu0 0.0
    %1166 = vmatpush1.msra.mxu0 %v990
    %1167 = vmatprep.subr.mxu0 0.0
    %1168 = vmatpush1.msra.mxu0 %v991
    %1169 = vmatprep.mubr.f32.mxu0 %v1104
    %1170 = vmatmul.mubr.f32.gmra.mrb[0].mxu0 %v1102
    %v1171 = vpop.f32.mrb[0].mxu0
    %v1172 = vadd.f32 0.0, %v1171
    %v1173 = vpop.f32.mrb[0].mxu0
    %1174 = vdwg.mxu0
    %v1176 = vsel %vm60, %v938, 0
    %v1179 = vsel %vm60, %v943, 0
    %v1182 = vsel %vm60, %v948, 0
    %v1185 = vsel %vm60, %v953, 0
    %1187 = vmatprep.subr.mxu0 %v958
    %1188 = vmatpush1.msra.mxu0 %v957
    %1189 = vmatprep.subr.mxu0 0.0
    %1190 = vmatpush1.msra.mxu0 0.0
    %1191 = vmatprep.subr.mxu0 0.0
    %1192 = vmatpush1.msra.mxu0 0.0
    %1193 = vmatprep.subr.mxu0 0.0
    %1194 = vmatpush1.msra.mxu0 0.0
    %1195 = vmatprep.subr.mxu0 0.0
    %1196 = vmatpush1.msra.mxu0 0.0
    %1197 = vmatprep.subr.mxu0 0.0
    %1198 = vmatpush1.msra.mxu0 0.0
    %1199 = vmatprep.subr.mxu0 0.0
    %1200 = vmatpush1.msra.mxu0 0.0
    %1201 = vmatprep.subr.mxu0 0.0
    %1202 = vmatpush1.msra.mxu0 0.0
    %1203 = vmatprep.subr.mxu0 0.0
    %1204 = vmatpush1.msra.mxu0 0.0
    %1205 = vmatprep.subr.mxu0 0.0
    %1206 = vmatpush1.msra.mxu0 0.0
    %1207 = vmatprep.subr.mxu0 0.0
    %1208 = vmatpush1.msra.mxu0 0.0
    %1209 = vmatprep.subr.mxu0 0.0
    %1210 = vmatpush1.msra.mxu0 0.0
    %1211 = vmatprep.subr.mxu0 0.0
    %1212 = vmatpush1.msra.mxu0 0.0
    %1213 = vmatprep.subr.mxu0 0.0
    %1214 = vmatpush1.msra.mxu0 0.0
    %1215 = vmatprep.subr.mxu0 0.0
    %1216 = vmatpush1.msra.mxu0 0.0
    %1217 = vmatprep.subr.mxu0 0.0
    %1218 = vmatpush1.msra.mxu0 0.0
    %1219 = vmatprep.subr.mxu0 0.0
    %1220 = vmatpush1.msra.mxu0 0.0
    %1221 = vmatprep.subr.mxu0 0.0
    %1222 = vmatpush1.msra.mxu0 0.0
    %1223 = vmatprep.subr.mxu0 0.0
    %1224 = vmatpush1.msra.mxu0 0.0
    %1225 = vmatprep.subr.mxu0 0.0
    %1226 = vmatpush1.msra.mxu0 0.0
    %1227 = vmatprep.subr.mxu0 0.0
    %1228 = vmatpush1.msra.mxu0 0.0
    %1229 = vmatprep.subr.mxu0 0.0
    %1230 = vmatpush1.msra.mxu0 0.0
    %1231 = vmatprep.subr.mxu0 0.0
    %1232 = vmatpush1.msra.mxu0 0.0
    %1233 = vmatprep.subr.mxu0 0.0
    %1234 = vmatpush1.msra.mxu0 0.0
    %1235 = vmatprep.subr.mxu0 0.0
    %1236 = vmatpush1.msra.mxu0 0.0
    %1237 = vmatprep.subr.mxu0 0.0
    %1238 = vmatpush1.msra.mxu0 0.0
    %1239 = vmatprep.subr.mxu0 0.0
    %1240 = vmatpush1.msra.mxu0 0.0
    %1241 = vmatprep.subr.mxu0 0.0
    %1242 = vmatpush1.msra.mxu0 0.0
    %1243 = vmatprep.subr.mxu0 0.0
    %1244 = vmatpush1.msra.mxu0 0.0
    %1245 = vmatprep.subr.mxu0 0.0
    %1246 = vmatpush1.msra.mxu0 0.0
    %1247 = vmatprep.subr.mxu0 0.0
    %1248 = vmatpush1.msra.mxu0 0.0
    %1249 = vmatprep.subr.mxu0 0.0
    %1250 = vmatpush1.msra.mxu0 0.0
    %1251 = vmatprep.mubr.f32.mxu0 0.0
    %1252 = vmatmul.mubr.f32.gmra.mrb[0].mxu0 %v1176
    %v1253 = vpop.f32.mrb[0].mxu0
    %v1254 = vadd.f32 0.0, %v1253
    %v1255 = vpop.f32.mrb[0].mxu0
    %v1256 = vadd.f32 0.0, %v1255
    %1257 = vmatprep.mubr.f32.mxu0 0.0
    %1258 = vmatmul.mubr.f32.gmra.mrb[0].mxu0 %v1179
    %v1259 = vpop.f32.mrb[0].mxu0
    %v1260 = vadd.f32 0.0, %v1259
    %v1261 = vpop.f32.mrb[0].mxu0
    %v1262 = vadd.f32 0.0, %v1261
    %1263 = vmatprep.mubr.f32.mxu0 0.0
    %1264 = vmatmul.mubr.f32.gmra.mrb[0].mxu0 %v1182
    %v1265 = vpop.f32.mrb[0].mxu0
    %v1266 = vadd.f32 0.0, %v1265
    %v1267 = vpop.f32.mrb[0].mxu0
    %v1268 = vadd.f32 0.0, %v1267
    %1269 = vmatprep.mubr.f32.mxu0 0.0
    %1270 = vmatmul.mubr.f32.gmra.mrb[0].mxu0 %v1185
    %v1271 = vpop.f32.mrb[0].mxu0
    %v1272 = vadd.f32 0.0, %v1271
    %v1273 = vpop.f32.mrb[0].mxu0
    %v1274 = vadd.f32 0.0, %v1273
    %1275 = vdwg.mxu0
    %v1278 = vunpack.c.l.s4 1966171168
    %v1279 = vunpack.c.0.s8 %v1278
    %v1280 = vlaneseq
    %v1281 = vshrl.u32 %v1280, 7
    %v1282 = vsub.s32 %v1279, %v1281
    %v1283 = vrot.slane %v1099, %v1282
    %v1284 = vcombine.high %v1283, %v1283
    %v1286 = vunpack.c.l.s4 1966171168
    %v1287 = vunpack.c.0.s8 %v1286
    %v1288 = vlaneseq
    %v1289 = vshrl.u32 %v1288, 7
    %v1290 = vsub.s32 %v1287, %v1289
    %v1291 = vrot.slane %v1283, %v1290
    %v1293 = vunpack.c.l.s4 1966171168
    %v1294 = vunpack.c.0.s8 %v1293
    %v1295 = vlaneseq
    %v1296 = vshrl.u32 %v1295, 7
    %v1297 = vsub.s32 %v1294, %v1296
    %v1298 = vrot.slane %v1284, %v1297
    %v1299 = vcombine.high %v1291, %v1291
    %v1300 = vcombine.high %v1298, %v1298
    %v1301 = vlaneseq
    %v1302 = vshrl.u32 %v1301, 7
    %v1303 = vsub.s32 0, %v1302
    %v1304 = vrot.slane %v1291, %v1303
    %v1305 = vlaneseq
    %v1306 = vshrl.u32 %v1305, 7
    %v1307 = vsub.s32 0, %v1306
    %v1308 = vrot.slane %v1298, %v1307
    %v1309 = vlaneseq
    %v1310 = vshrl.u32 %v1309, 7
    %v1311 = vsub.s32 0, %v1310
    %v1312 = vrot.slane %v1299, %v1311
    %v1313 = vlaneseq
    %v1314 = vshrl.u32 %v1313, 7
    %v1315 = vsub.s32 0, %v1314
    %v1316 = vrot.slane %v1300, %v1315
    %v1321 = vsub.f32 %v1254, %v1256
    %v1322 = vsub.f32 %v1260, %v1262
    %v1323 = vsub.f32 %v1266, %v1268
    %v1324 = vsub.f32 %v1272, %v1274
    %v1325 = vmul.f32 %v1304, %v1321
    %v1326 = vmul.f32 %v1308, %v1322
    %v1327 = vmul.f32 %v1312, %v1323
    %v1328 = vmul.f32 %v1316, %v1324
    %v1329 = vadd.f32 %v1256, %v1325
    %v1330 = vadd.f32 %v1262, %v1326
    %v1331 = vadd.f32 %v1268, %v1327
    %v1332 = vadd.f32 %v1274, %v1328
    %v1333 = vadd.f32 %v1254, %v1256
    %v1334 = vadd.f32 %v1260, %v1262
    %v1335 = vadd.f32 %v1266, %v1268
    %v1336 = vadd.f32 %v1272, %v1274
    %v1337 = vsub.f32 %v1333, %v1329
    %v1338 = vsub.f32 %v1334, %v1330
    %v1339 = vsub.f32 %v1335, %v1331
    %v1340 = vsub.f32 %v1336, %v1332
    %1341 = vmatprep.subr.mxu0 0.0
    %1342 = vmatpush1.msra.mxu0 %v960
    %1343 = vmatprep.subr.mxu0 0.0
    %1344 = vmatpush1.msra.mxu0 %v961
    %1345 = vmatprep.subr.mxu0 0.0
    %1346 = vmatpush1.msra.mxu0 %v962
    %1347 = vmatprep.subr.mxu0 0.0
    %1348 = vmatpush1.msra.mxu0 %v963
    %1349 = vmatprep.subr.mxu0 0.0
    %1350 = vmatpush1.msra.mxu0 %v964
    %1351 = vmatprep.subr.mxu0 0.0
    %1352 = vmatpush1.msra.mxu0 %v965
    %1353 = vmatprep.subr.mxu0 0.0
    %1354 = vmatpush1.msra.mxu0 %v966
    %1355 = vmatprep.subr.mxu0 0.0
    %1356 = vmatpush1.msra.mxu0 %v967
    %1357 = vmatprep.subr.mxu0 0.0
    %1358 = vmatpush1.msra.mxu0 %v968
    %1359 = vmatprep.subr.mxu0 0.0
    %1360 = vmatpush1.msra.mxu0 %v969
    %1361 = vmatprep.subr.mxu0 0.0
    %1362 = vmatpush1.msra.mxu0 %v970
    %1363 = vmatprep.subr.mxu0 0.0
    %1364 = vmatpush1.msra.mxu0 %v971
    %1365 = vmatprep.subr.mxu0 0.0
    %1366 = vmatpush1.msra.mxu0 %v972
    %1367 = vmatprep.subr.mxu0 0.0
    %1368 = vmatpush1.msra.mxu0 %v973
    %1369 = vmatprep.subr.mxu0 0.0
    %1370 = vmatpush1.msra.mxu0 %v974
    %1371 = vmatprep.subr.mxu0 0.0
    %1372 = vmatpush1.msra.mxu0 %v975
    %1373 = vmatprep.subr.mxu0 0.0
    %1374 = vmatpush1.msra.mxu0 %v976
    %1375 = vmatprep.subr.mxu0 0.0
    %1376 = vmatpush1.msra.mxu0 %v977
    %1377 = vmatprep.subr.mxu0 0.0
    %1378 = vmatpush1.msra.mxu0 %v978
    %1379 = vmatprep.subr.mxu0 0.0
    %1380 = vmatpush1.msra.mxu0 %v979
    %1381 = vmatprep.subr.mxu0 0.0
    %1382 = vmatpush1.msra.mxu0 %v980
    %1383 = vmatprep.subr.mxu0 0.0
    %1384 = vmatpush1.msra.mxu0 %v981
    %1385 = vmatprep.subr.mxu0 0.0
    %1386 = vmatpush1.msra.mxu0 %v982
    %1387 = vmatprep.subr.mxu0 0.0
    %1388 = vmatpush1.msra.mxu0 %v983
    %1389 = vmatprep.subr.mxu0 0.0
    %1390 = vmatpush1.msra.mxu0 %v984
    %1391 = vmatprep.subr.mxu0 0.0
    %1392 = vmatpush1.msra.mxu0 %v985
    %1393 = vmatprep.subr.mxu0 0.0
    %1394 = vmatpush1.msra.mxu0 %v986
    %1395 = vmatprep.subr.mxu0 0.0
    %1396 = vmatpush1.msra.mxu0 %v987
    %1397 = vmatprep.subr.mxu0 0.0
    %1398 = vmatpush1.msra.mxu0 %v988
    %1399 = vmatprep.subr.mxu0 0.0
    %1400 = vmatpush1.msra.mxu0 %v989
    %1401 = vmatprep.subr.mxu0 0.0
    %1402 = vmatpush1.msra.mxu0 %v990
    %1403 = vmatprep.subr.mxu0 0.0
    %1404 = vmatpush1.msra.mxu0 %v991
    %1405 = vmatprep.mubr.f32.mxu0 %v1337
    %1406 = vmatmul.mubr.f32.gmra.mrb[0].mxu0 %v1329
    %v1407 = vpop.f32.mrb[0].mxu0
    %v1408 = vadd.f32 0.0, %v1407
    %v1409 = vpop.f32.mrb[0].mxu0
    %1410 = vmatprep.mubr.f32.mxu0 %v1338
    %1411 = vmatmul.mubr.f32.gmra.mrb[0].mxu0 %v1330
    %v1412 = vpop.f32.mrb[0].mxu0
    %v1413 = vadd.f32 0.0, %v1412
    %v1414 = vpop.f32.mrb[0].mxu0
    %1415 = vmatprep.mubr.f32.mxu0 %v1339
    %1416 = vmatmul.mubr.f32.gmra.mrb[0].mxu0 %v1331
    %v1417 = vpop.f32.mrb[0].mxu0
    %v1418 = vadd.f32 0.0, %v1417
    %v1419 = vpop.f32.mrb[0].mxu0
    %1420 = vmatprep.mubr.f32.mxu0 %v1340
    %1421 = vmatmul.mubr.f32.gmra.mrb[0].mxu0 %v1332
    %v1422 = vpop.f32.mrb[0].mxu0
    %v1423 = vadd.f32 0.0, %v1422
    %v1424 = vpop.f32.mrb[0].mxu0
    %1425 = vdwg.mxu0
    %s1426 = scalar_lea.vmem %s1, 48
    %v1427 = vld [vmem:[%s1426] sm:$0xff]
    %v1428 = vld [vmem:[%s1426 + $0x8] sm:$0xff]
    %s1429 = scalar_lea.vmem %s2, 768
    %v1430 = vld [vmem:[%s1429] sm:$0xff]
    %v1431 = vld [vmem:[%s1429 + $0x8] sm:$0xff]
    %v1432 = vld [vmem:[%s1429 + $0x10] sm:$0xff]
    %v1433 = vld [vmem:[%s1429 + $0x18] sm:$0xff]
    %v1434 = vld [vmem:[%s1429 + $0x20] sm:$0xff]
    %v1435 = vld [vmem:[%s1429 + $0x28] sm:$0xff]
    %v1436 = vld [vmem:[%s1429 + $0x30] sm:$0xff]
    %v1437 = vld [vmem:[%s1429 + $0x38] sm:$0xff]
    %v1438 = vld [vmem:[%s1429 + $0x40] sm:$0xff]
    %v1439 = vld [vmem:[%s1429 + $0x48] sm:$0xff]
    %v1440 = vld [vmem:[%s1429 + $0x50] sm:$0xff]
    %v1441 = vld [vmem:[%s1429 + $0x58] sm:$0xff]
    %v1442 = vld [vmem:[%s1429 + $0x60] sm:$0xff]
    %v1443 = vld [vmem:[%s1429 + $0x68] sm:$0xff]
    %v1444 = vld [vmem:[%s1429 + $0x70] sm:$0xff]
    %v1445 = vld [vmem:[%s1429 + $0x78] sm:$0xff]
    %v1446 = vld [vmem:[%s1429 + $0x80] sm:$0xff]
    %v1447 = vld [vmem:[%s1429 + $0x88] sm:$0xff]
    %v1448 = vld [vmem:[%s1429 + $0x90] sm:$0xff]
    %v1449 = vld [vmem:[%s1429 + $0x98] sm:$0xff]
    %v1450 = vld [vmem:[%s1429 + $0xa0] sm:$0xff]
    %v1451 = vld [vmem:[%s1429 + $0xa8] sm:$0xff]
    %v1452 = vld [vmem:[%s1429 + $0xb0] sm:$0xff]
    %v1453 = vld [vmem:[%s1429 + $0xb8] sm:$0xff]
    %v1454 = vld [vmem:[%s1429 + $0xc0] sm:$0xff]
    %v1455 = vld [vmem:[%s1429 + $0xc8] sm:$0xff]
    %v1456 = vld [vmem:[%s1429 + $0xd0] sm:$0xff]
    %v1457 = vld [vmem:[%s1429 + $0xd8] sm:$0xff]
    %v1458 = vld [vmem:[%s1429 + $0xe0] sm:$0xff]
    %v1459 = vld [vmem:[%s1429 + $0xe8] sm:$0xff]
    %v1460 = vld [vmem:[%s1429 + $0xf0] sm:$0xff]
    %v1461 = vld [vmem:[%s1429 + $0xf8] sm:$0xff]
    %v1463 = vsel %vm60, %v1172, 0
    %1465 = vmatprep.subr.mxu0 %v1428
    %1466 = vmatpush1.msra.mxu0 %v1427
    %1467 = vmatprep.subr.mxu0 0.0
    %1468 = vmatpush1.msra.mxu0 0.0
    %1469 = vmatprep.subr.mxu0 0.0
    %1470 = vmatpush1.msra.mxu0 0.0
    %1471 = vmatprep.subr.mxu0 0.0
    %1472 = vmatpush1.msra.mxu0 0.0
    %1473 = vmatprep.subr.mxu0 0.0
    %1474 = vmatpush1.msra.mxu0 0.0
    %1475 = vmatprep.subr.mxu0 0.0
    %1476 = vmatpush1.msra.mxu0 0.0
    %1477 = vmatprep.subr.mxu0 0.0
    %1478 = vmatpush1.msra.mxu0 0.0
    %1479 = vmatprep.subr.mxu0 0.0
    %1480 = vmatpush1.msra.mxu0 0.0
    %1481 = vmatprep.subr.mxu0 0.0
    %1482 = vmatpush1.msra.mxu0 0.0
    %1483 = vmatprep.subr.mxu0 0.0
    %1484 = vmatpush1.msra.mxu0 0.0
    %1485 = vmatprep.subr.mxu0 0.0
    %1486 = vmatpush1.msra.mxu0 0.0
    %1487 = vmatprep.subr.mxu0 0.0
    %1488 = vmatpush1.msra.mxu0 0.0
    %1489 = vmatprep.subr.mxu0 0.0
    %1490 = vmatpush1.msra.mxu0 0.0
    %1491 = vmatprep.subr.mxu0 0.0
    %1492 = vmatpush1.msra.mxu0 0.0
    %1493 = vmatprep.subr.mxu0 0.0
    %1494 = vmatpush1.msra.mxu0 0.0
    %1495 = vmatprep.subr.mxu0 0.0
    %1496 = vmatpush1.msra.mxu0 0.0
    %1497 = vmatprep.subr.mxu0 0.0
    %1498 = vmatpush1.msra.mxu0 0.0
    %1499 = vmatprep.subr.mxu0 0.0
    %1500 = vmatpush1.msra.mxu0 0.0
    %1501 = vmatprep.subr.mxu0 0.0
    %1502 = vmatpush1.msra.mxu0 0.0
    %1503 = vmatprep.subr.mxu0 0.0
    %1504 = vmatpush1.msra.mxu0 0.0
    %1505 = vmatprep.subr.mxu0 0.0
    %1506 = vmatpush1.msra.mxu0 0.0
    %1507 = vmatprep.subr.mxu0 0.0
    %1508 = vmatpush1.msra.mxu0 0.0
    %1509 = vmatprep.subr.mxu0 0.0
    %1510 = vmatpush1.msra.mxu0 0.0
    %1511 = vmatprep.subr.mxu0 0.0
    %1512 = vmatpush1.msra.mxu0 0.0
    %1513 = vmatprep.subr.mxu0 0.0
    %1514 = vmatpush1.msra.mxu0 0.0
    %1515 = vmatprep.subr.mxu0 0.0
    %1516 = vmatpush1.msra.mxu0 0.0
    %1517 = vmatprep.subr.mxu0 0.0
    %1518 = vmatpush1.msra.mxu0 0.0
    %1519 = vmatprep.subr.mxu0 0.0
    %1520 = vmatpush1.msra.mxu0 0.0
    %1521 = vmatprep.subr.mxu0 0.0
    %1522 = vmatpush1.msra.mxu0 0.0
    %1523 = vmatprep.subr.mxu0 0.0
    %1524 = vmatpush1.msra.mxu0 0.0
    %1525 = vmatprep.subr.mxu0 0.0
    %1526 = vmatpush1.msra.mxu0 0.0
    %1527 = vmatprep.subr.mxu0 0.0
    %1528 = vmatpush1.msra.mxu0 0.0
    %1529 = vmatprep.mubr.f32.mxu0 0.0
    %1530 = vmatmul.mubr.f32.gmra.mrb[0].mxu0 %v1463
    %v1531 = vpop.f32.mrb[0].mxu0
    %v1532 = vadd.f32 0.0, %v1531
    %v1533 = vpop.f32.mrb[0].mxu0
    %v1534 = vadd.f32 0.0, %v1533
    %1535 = vdwg.mxu0
    %v1536 = vsub.f32 %v1534, %v1532
    %v1537 = vmul.f32 %v1536, 10.0
    %vm1538 = vcmp.lt.f32.partialorder %v1537, 0.0
    %v1539 = vsel %vm1538, -1.0, 1.0
    %v1540 = vand.u32 2147483647, %v1537
    %vm1541 = vcmp.gt.f32.partialorder %v1540, 2.4142137
    %vm1542 = vcmp.gt.f32.partialorder %v1540, 0.41421357
    %vm1543 = vmxor %vm1541, 1
    %vm1544 = vmand %vm1542, %vm1543
    %v1545 = vmax.f32 %v1540, 1.0
    %v1546 = vrcp.pop %v1545
    %v1547 = vmul.f32 -1.0, %v1546
    %v1548 = vsub.f32 %v1540, 1.0
    %v1549 = vadd.f32 %v1540, 1.0
    %v1550 = vrcp.pop %v1549
    %v1551 = vmul.f32 %v1548, %v1550
    %v1552 = vsel %vm1544, %v1551, %v1540
    %v1553 = vsel %vm1541, %v1547, %v1552
    %v1554 = vsel %vm1544, 0.7853982, 0.0
    %v1555 = vsel %vm1541, 1.5707964, %v1554
    %v1556 = vmul.f32 %v1553, %v1553
    %v1557 = vmul.f32 %v1556, 0.080537446
    %v1558 = vsub.f32 %v1557, 0.13877685
    %v1559 = vmul.f32 %v1558, %v1556
    %v1560 = vadd.f32 %v1559, 0.19977711
    %v1561 = vmul.f32 %v1560, %v1556
    %v1562 = vsub.f32 %v1561, 0.3333295
    %v1563 = vmul.f32 %v1562, %v1556
    %v1564 = vmul.f32 %v1563, %v1553
    %v1565 = vadd.f32 %v1564, %v1553
    %v1566 = vadd.f32 %v1555, %v1565
    %v1567 = vmul.f32 %v1539, %v1566
    %v1568 = vmul.f32 %v1567, 0.31830987
    %v1569 = vadd.f32 %v1568, 0.5
    %v1570 = vsub.f32 %v1532, %v1534
    %v1571 = vmul.f32 %v1569, %v1570
    %v1572 = vadd.f32 %v1534, %v1571
    %v1573 = vadd.f32 %v1532, %v1534
    %v1574 = vsub.f32 %v1573, %v1572
    %1575 = vmatprep.subr.mxu0 0.0
    %1576 = vmatpush1.msra.mxu0 %v1430
    %1577 = vmatprep.subr.mxu0 0.0
    %1578 = vmatpush1.msra.mxu0 %v1431
    %1579 = vmatprep.subr.mxu0 0.0
    %1580 = vmatpush1.msra.mxu0 %v1432
    %1581 = vmatprep.subr.mxu0 0.0
    %1582 = vmatpush1.msra.mxu0 %v1433
    %1583 = vmatprep.subr.mxu0 0.0
    %1584 = vmatpush1.msra.mxu0 %v1434
    %1585 = vmatprep.subr.mxu0 0.0
    %1586 = vmatpush1.msra.mxu0 %v1435
    %1587 = vmatprep.subr.mxu0 0.0
    %1588 = vmatpush1.msra.mxu0 %v1436
    %1589 = vmatprep.subr.mxu0 0.0
    %1590 = vmatpush1.msra.mxu0 %v1437
    %1591 = vmatprep.subr.mxu0 0.0
    %1592 = vmatpush1.msra.mxu0 %v1438
    %1593 = vmatprep.subr.mxu0 0.0
    %1594 = vmatpush1.msra.mxu0 %v1439
    %1595 = vmatprep.subr.mxu0 0.0
    %1596 = vmatpush1.msra.mxu0 %v1440
    %1597 = vmatprep.subr.mxu0 0.0
    %1598 = vmatpush1.msra.mxu0 %v1441
    %1599 = vmatprep.subr.mxu0 0.0
    %1600 = vmatpush1.msra.mxu0 %v1442
    %1601 = vmatprep.subr.mxu0 0.0
    %1602 = vmatpush1.msra.mxu0 %v1443
    %1603 = vmatprep.subr.mxu0 0.0
    %1604 = vmatpush1.msra.mxu0 %v1444
    %1605 = vmatprep.subr.mxu0 0.0
    %1606 = vmatpush1.msra.mxu0 %v1445
    %1607 = vmatprep.subr.mxu0 0.0
    %1608 = vmatpush1.msra.mxu0 %v1446
    %1609 = vmatprep.subr.mxu0 0.0
    %1610 = vmatpush1.msra.mxu0 %v1447
    %1611 = vmatprep.subr.mxu0 0.0
    %1612 = vmatpush1.msra.mxu0 %v1448
    %1613 = vmatprep.subr.mxu0 0.0
    %1614 = vmatpush1.msra.mxu0 %v1449
    %1615 = vmatprep.subr.mxu0 0.0
    %1616 = vmatpush1.msra.mxu0 %v1450
    %1617 = vmatprep.subr.mxu0 0.0
    %1618 = vmatpush1.msra.mxu0 %v1451
    %1619 = vmatprep.subr.mxu0 0.0
    %1620 = vmatpush1.msra.mxu0 %v1452
    %1621 = vmatprep.subr.mxu0 0.0
    %1622 = vmatpush1.msra.mxu0 %v1453
    %1623 = vmatprep.subr.mxu0 0.0
    %1624 = vmatpush1.msra.mxu0 %v1454
    %1625 = vmatprep.subr.mxu0 0.0
    %1626 = vmatpush1.msra.mxu0 %v1455
    %1627 = vmatprep.subr.mxu0 0.0
    %1628 = vmatpush1.msra.mxu0 %v1456
    %1629 = vmatprep.subr.mxu0 0.0
    %1630 = vmatpush1.msra.mxu0 %v1457
    %1631 = vmatprep.subr.mxu0 0.0
    %1632 = vmatpush1.msra.mxu0 %v1458
    %1633 = vmatprep.subr.mxu0 0.0
    %1634 = vmatpush1.msra.mxu0 %v1459
    %1635 = vmatprep.subr.mxu0 0.0
    %1636 = vmatpush1.msra.mxu0 %v1460
    %1637 = vmatprep.subr.mxu0 0.0
    %1638 = vmatpush1.msra.mxu0 %v1461
    %1639 = vmatprep.mubr.f32.mxu0 %v1574
    %1640 = vmatmul.mubr.f32.gmra.mrb[0].mxu0 %v1572
    %v1641 = vpop.f32.mrb[0].mxu0
    %v1642 = vadd.f32 0.0, %v1641
    %v1643 = vpop.f32.mrb[0].mxu0
    %1644 = vdwg.mxu0
    %v1646 = vsel %vm60, %v1408, 0
    %v1649 = vsel %vm60, %v1413, 0
    %v1652 = vsel %vm60, %v1418, 0
    %v1655 = vsel %vm60, %v1423, 0
    %1657 = vmatprep.subr.mxu0 %v1428
    %1658 = vmatpush1.msra.mxu0 %v1427
    %1659 = vmatprep.subr.mxu0 0.0
    %1660 = vmatpush1.msra.mxu0 0.0
    %1661 = vmatprep.subr.mxu0 0.0
    %1662 = vmatpush1.msra.mxu0 0.0
    %1663 = vmatprep.subr.mxu0 0.0
    %1664 = vmatpush1.msra.mxu0 0.0
    %1665 = vmatprep.subr.mxu0 0.0
    %1666 = vmatpush1.msra.mxu0 0.0
    %1667 = vmatprep.subr.mxu0 0.0
    %1668 = vmatpush1.msra.mxu0 0.0
    %1669 = vmatprep.subr.mxu0 0.0
    %1670 = vmatpush1.msra.mxu0 0.0
    %1671 = vmatprep.subr.mxu0 0.0
    %1672 = vmatpush1.msra.mxu0 0.0
    %1673 = vmatprep.subr.mxu0 0.0
    %1674 = vmatpush1.msra.mxu0 0.0
    %1675 = vmatprep.subr.mxu0 0.0
    %1676 = vmatpush1.msra.mxu0 0.0
    %1677 = vmatprep.subr.mxu0 0.0
    %1678 = vmatpush1.msra.mxu0 0.0
    %1679 = vmatprep.subr.mxu0 0.0
    %1680 = vmatpush1.msra.mxu0 0.0
    %1681 = vmatprep.subr.mxu0 0.0
    %1682 = vmatpush1.msra.mxu0 0.0
    %1683 = vmatprep.subr.mxu0 0.0
    %1684 = vmatpush1.msra.mxu0 0.0
    %1685 = vmatprep.subr.mxu0 0.0
    %1686 = vmatpush1.msra.mxu0 0.0
    %1687 = vmatprep.subr.mxu0 0.0
    %1688 = vmatpush1.msra.mxu0 0.0
    %1689 = vmatprep.subr.mxu0 0.0
    %1690 = vmatpush1.msra.mxu0 0.0
    %1691 = vmatprep.subr.mxu0 0.0
    %1692 = vmatpush1.msra.mxu0 0.0
    %1693 = vmatprep.subr.mxu0 0.0
    %1694 = vmatpush1.msra.mxu0 0.0
    %1695 = vmatprep.subr.mxu0 0.0
    %1696 = vmatpush1.msra.mxu0 0.0
    %1697 = vmatprep.subr.mxu0 0.0
    %1698 = vmatpush1.msra.mxu0 0.0
    %1699 = vmatprep.subr.mxu0 0.0
    %1700 = vmatpush1.msra.mxu0 0.0
    %1701 = vmatprep.subr.mxu0 0.0
    %1702 = vmatpush1.msra.mxu0 0.0
    %1703 = vmatprep.subr.mxu0 0.0
    %1704 = vmatpush1.msra.mxu0 0.0
    %1705 = vmatprep.subr.mxu0 0.0
    %1706 = vmatpush1.msra.mxu0 0.0
    %1707 = vmatprep.subr.mxu0 0.0
    %1708 = vmatpush1.msra.mxu0 0.0
    %1709 = vmatprep.subr.mxu0 0.0
    %1710 = vmatpush1.msra.mxu0 0.0
    %1711 = vmatprep.subr.mxu0 0.0
    %1712 = vmatpush1.msra.mxu0 0.0
    %1713 = vmatprep.subr.mxu0 0.0
    %1714 = vmatpush1.msra.mxu0 0.0
    %1715 = vmatprep.subr.mxu0 0.0
    %1716 = vmatpush1.msra.mxu0 0.0
    %1717 = vmatprep.subr.mxu0 0.0
    %1718 = vmatpush1.msra.mxu0 0.0
    %1719 = vmatprep.subr.mxu0 0.0
    %1720 = vmatpush1.msra.mxu0 0.0
    %1721 = vmatprep.mubr.f32.mxu0 0.0
    %1722 = vmatmul.mubr.f32.gmra.mrb[0].mxu0 %v1646
    %v1723 = vpop.f32.mrb[0].mxu0
    %v1724 = vadd.f32 0.0, %v1723
    %v1725 = vpop.f32.mrb[0].mxu0
    %v1726 = vadd.f32 0.0, %v1725
    %1727 = vmatprep.mubr.f32.mxu0 0.0
    %1728 = vmatmul.mubr.f32.gmra.mrb[0].mxu0 %v1649
    %v1729 = vpop.f32.mrb[0].mxu0
    %v1730 = vadd.f32 0.0, %v1729
    %v1731 = vpop.f32.mrb[0].mxu0
    %v1732 = vadd.f32 0.0, %v1731
    %1733 = vmatprep.mubr.f32.mxu0 0.0
    %1734 = vmatmul.mubr.f32.gmra.mrb[0].mxu0 %v1652
    %v1735 = vpop.f32.mrb[0].mxu0
    %v1736 = vadd.f32 0.0, %v1735
    %v1737 = vpop.f32.mrb[0].mxu0
    %v1738 = vadd.f32 0.0, %v1737
    %1739 = vmatprep.mubr.f32.mxu0 0.0
    %1740 = vmatmul.mubr.f32.gmra.mrb[0].mxu0 %v1655
    %v1741 = vpop.f32.mrb[0].mxu0
    %v1742 = vadd.f32 0.0, %v1741
    %v1743 = vpop.f32.mrb[0].mxu0
    %v1744 = vadd.f32 0.0, %v1743
    %1745 = vdwg.mxu0
    %v1748 = vunpack.c.l.s4 1966171168
    %v1749 = vunpack.c.0.s8 %v1748
    %v1750 = vlaneseq
    %v1751 = vshrl.u32 %v1750, 7
    %v1752 = vsub.s32 %v1749, %v1751
    %v1753 = vrot.slane %v1569, %v1752
    %v1754 = vcombine.high %v1753, %v1753
    %v1756 = vunpack.c.l.s4 1966171168
    %v1757 = vunpack.c.0.s8 %v1756
    %v1758 = vlaneseq
    %v1759 = vshrl.u32 %v1758, 7
    %v1760 = vsub.s32 %v1757, %v1759
    %v1761 = vrot.slane %v1753, %v1760
    %v1763 = vunpack.c.l.s4 1966171168
    %v1764 = vunpack.c.0.s8 %v1763
    %v1765 = vlaneseq
    %v1766 = vshrl.u32 %v1765, 7
    %v1767 = vsub.s32 %v1764, %v1766
    %v1768 = vrot.slane %v1754, %v1767
    %v1769 = vcombine.high %v1761, %v1761
    %v1770 = vcombine.high %v1768, %v1768
    %v1771 = vlaneseq
    %v1772 = vshrl.u32 %v1771, 7
    %v1773 = vsub.s32 0, %v1772
    %v1774 = vrot.slane %v1761, %v1773
    %v1775 = vlaneseq
    %v1776 = vshrl.u32 %v1775, 7
    %v1777 = vsub.s32 0, %v1776
    %v1778 = vrot.slane %v1768, %v1777
    %v1779 = vlaneseq
    %v1780 = vshrl.u32 %v1779, 7
    %v1781 = vsub.s32 0, %v1780
    %v1782 = vrot.slane %v1769, %v1781
    %v1783 = vlaneseq
    %v1784 = vshrl.u32 %v1783, 7
    %v1785 = vsub.s32 0, %v1784
    %v1786 = vrot.slane %v1770, %v1785
    %v1791 = vsub.f32 %v1724, %v1726
    %v1792 = vsub.f32 %v1730, %v1732
    %v1793 = vsub.f32 %v1736, %v1738
    %v1794 = vsub.f32 %v1742, %v1744
    %v1795 = vmul.f32 %v1774, %v1791
    %v1796 = vmul.f32 %v1778, %v1792
    %v1797 = vmul.f32 %v1782, %v1793
    %v1798 = vmul.f32 %v1786, %v1794
    %v1799 = vadd.f32 %v1726, %v1795
    %v1800 = vadd.f32 %v1732, %v1796
    %v1801 = vadd.f32 %v1738, %v1797
    %v1802 = vadd.f32 %v1744, %v1798
    %v1803 = vadd.f32 %v1724, %v1726
    %v1804 = vadd.f32 %v1730, %v1732
    %v1805 = vadd.f32 %v1736, %v1738
    %v1806 = vadd.f32 %v1742, %v1744
    %v1807 = vsub.f32 %v1803, %v1799
    %v1808 = vsub.f32 %v1804, %v1800
    %v1809 = vsub.f32 %v1805, %v1801
    %v1810 = vsub.f32 %v1806, %v1802
    %1811 = vmatprep.subr.mxu0 0.0
    %1812 = vmatpush1.msra.mxu0 %v1430
    %1813 = vmatprep.subr.mxu0 0.0
    %1814 = vmatpush1.msra.mxu0 %v1431
    %1815 = vmatprep.subr.mxu0 0.0
    %1816 = vmatpush1.msra.mxu0 %v1432
    %1817 = vmatprep.subr.mxu0 0.0
    %1818 = vmatpush1.msra.mxu0 %v1433
    %1819 = vmatprep.subr.mxu0 0.0
    %1820 = vmatpush1.msra.mxu0 %v1434
    %1821 = vmatprep.subr.mxu0 0.0
    %1822 = vmatpush1.msra.mxu0 %v1435
    %1823 = vmatprep.subr.mxu0 0.0
    %1824 = vmatpush1.msra.mxu0 %v1436
    %1825 = vmatprep.subr.mxu0 0.0
    %1826 = vmatpush1.msra.mxu0 %v1437
    %1827 = vmatprep.subr.mxu0 0.0
    %1828 = vmatpush1.msra.mxu0 %v1438
    %1829 = vmatprep.subr.mxu0 0.0
    %1830 = vmatpush1.msra.mxu0 %v1439
    %1831 = vmatprep.subr.mxu0 0.0
    %1832 = vmatpush1.msra.mxu0 %v1440
    %1833 = vmatprep.subr.mxu0 0.0
    %1834 = vmatpush1.msra.mxu0 %v1441
    %1835 = vmatprep.subr.mxu0 0.0
    %1836 = vmatpush1.msra.mxu0 %v1442
    %1837 = vmatprep.subr.mxu0 0.0
    %1838 = vmatpush1.msra.mxu0 %v1443
    %1839 = vmatprep.subr.mxu0 0.0
    %1840 = vmatpush1.msra.mxu0 %v1444
    %1841 = vmatprep.subr.mxu0 0.0
    %1842 = vmatpush1.msra.mxu0 %v1445
    %1843 = vmatprep.subr.mxu0 0.0
    %1844 = vmatpush1.msra.mxu0 %v1446
    %1845 = vmatprep.subr.mxu0 0.0
    %1846 = vmatpush1.msra.mxu0 %v1447
    %1847 = vmatprep.subr.mxu0 0.0
    %1848 = vmatpush1.msra.mxu0 %v1448
    %1849 = vmatprep.subr.mxu0 0.0
    %1850 = vmatpush1.msra.mxu0 %v1449
    %1851 = vmatprep.subr.mxu0 0.0
    %1852 = vmatpush1.msra.mxu0 %v1450
    %1853 = vmatprep.subr.mxu0 0.0
    %1854 = vmatpush1.msra.mxu0 %v1451
    %1855 = vmatprep.subr.mxu0 0.0
    %1856 = vmatpush1.msra.mxu0 %v1452
    %1857 = vmatprep.subr.mxu0 0.0
    %1858 = vmatpush1.msra.mxu0 %v1453
    %1859 = vmatprep.subr.mxu0 0.0
    %1860 = vmatpush1.msra.mxu0 %v1454
    %1861 = vmatprep.subr.mxu0 0.0
    %1862 = vmatpush1.msra.mxu0 %v1455
    %1863 = vmatprep.subr.mxu0 0.0
    %1864 = vmatpush1.msra.mxu0 %v1456
    %1865 = vmatprep.subr.mxu0 0.0
    %1866 = vmatpush1.msra.mxu0 %v1457
    %1867 = vmatprep.subr.mxu0 0.0
    %1868 = vmatpush1.msra.mxu0 %v1458
    %1869 = vmatprep.subr.mxu0 0.0
    %1870 = vmatpush1.msra.mxu0 %v1459
    %1871 = vmatprep.subr.mxu0 0.0
    %1872 = vmatpush1.msra.mxu0 %v1460
    %1873 = vmatprep.subr.mxu0 0.0
    %1874 = vmatpush1.msra.mxu0 %v1461
    %1875 = vmatprep.mubr.f32.mxu0 %v1807
    %1876 = vmatmul.mubr.f32.gmra.mrb[0].mxu0 %v1799
    %v1877 = vpop.f32.mrb[0].mxu0
    %v1878 = vadd.f32 0.0, %v1877
    %v1879 = vpop.f32.mrb[0].mxu0
    %1880 = vmatprep.mubr.f32.mxu0 %v1808
    %1881 = vmatmul.mubr.f32.gmra.mrb[0].mxu0 %v1800
    %v1882 = vpop.f32.mrb[0].mxu0
    %v1883 = vadd.f32 0.0, %v1882
    %v1884 = vpop.f32.mrb[0].mxu0
    %1885 = vmatprep.mubr.f32.mxu0 %v1809
    %1886 = vmatmul.mubr.f32.gmra.mrb[0].mxu0 %v1801
    %v1887 = vpop.f32.mrb[0].mxu0
    %v1888 = vadd.f32 0.0, %v1887
    %v1889 = vpop.f32.mrb[0].mxu0
    %1890 = vmatprep.mubr.f32.mxu0 %v1810
    %1891 = vmatmul.mubr.f32.gmra.mrb[0].mxu0 %v1802
    %v1892 = vpop.f32.mrb[0].mxu0
    %v1893 = vadd.f32 0.0, %v1892
    %v1894 = vpop.f32.mrb[0].mxu0
    %1895 = vdwg.mxu0
    %s1896 = scalar_lea.vmem %s1, 64
    %v1897 = vld [vmem:[%s1896] sm:$0xff]
    %v1898 = vld [vmem:[%s1896 + $0x8] sm:$0xff]
    %s1899 = scalar_lea.vmem %s2, 1024
    %v1900 = vld [vmem:[%s1899] sm:$0xff]
    %v1901 = vld [vmem:[%s1899 + $0x8] sm:$0xff]
    %v1902 = vld [vmem:[%s1899 + $0x10] sm:$0xff]
    %v1903 = vld [vmem:[%s1899 + $0x18] sm:$0xff]
    %v1904 = vld [vmem:[%s1899 + $0x20] sm:$0xff]
    %v1905 = vld [vmem:[%s1899 + $0x28] sm:$0xff]
    %v1906 = vld [vmem:[%s1899 + $0x30] sm:$0xff]
    %v1907 = vld [vmem:[%s1899 + $0x38] sm:$0xff]
    %v1908 = vld [vmem:[%s1899 + $0x40] sm:$0xff]
    %v1909 = vld [vmem:[%s1899 + $0x48] sm:$0xff]
    %v1910 = vld [vmem:[%s1899 + $0x50] sm:$0xff]
    %v1911 = vld [vmem:[%s1899 + $0x58] sm:$0xff]
    %v1912 = vld [vmem:[%s1899 + $0x60] sm:$0xff]
    %v1913 = vld [vmem:[%s1899 + $0x68] sm:$0xff]
    %v1914 = vld [vmem:[%s1899 + $0x70] sm:$0xff]
    %v1915 = vld [vmem:[%s1899 + $0x78] sm:$0xff]
    %v1916 = vld [vmem:[%s1899 + $0x80] sm:$0xff]
    %v1917 = vld [vmem:[%s1899 + $0x88] sm:$0xff]
    %v1918 = vld [vmem:[%s1899 + $0x90] sm:$0xff]
    %v1919 = vld [vmem:[%s1899 + $0x98] sm:$0xff]
    %v1920 = vld [vmem:[%s1899 + $0xa0] sm:$0xff]
    %v1921 = vld [vmem:[%s1899 + $0xa8] sm:$0xff]
    %v1922 = vld [vmem:[%s1899 + $0xb0] sm:$0xff]
    %v1923 = vld [vmem:[%s1899 + $0xb8] sm:$0xff]
    %v1924 = vld [vmem:[%s1899 + $0xc0] sm:$0xff]
    %v1925 = vld [vmem:[%s1899 + $0xc8] sm:$0xff]
    %v1926 = vld [vmem:[%s1899 + $0xd0] sm:$0xff]
    %v1927 = vld [vmem:[%s1899 + $0xd8] sm:$0xff]
    %v1928 = vld [vmem:[%s1899 + $0xe0] sm:$0xff]
    %v1929 = vld [vmem:[%s1899 + $0xe8] sm:$0xff]
    %v1930 = vld [vmem:[%s1899 + $0xf0] sm:$0xff]
    %v1931 = vld [vmem:[%s1899 + $0xf8] sm:$0xff]
    %v1933 = vsel %vm60, %v1642, 0
    %1935 = vmatprep.subr.mxu0 %v1898
    %1936 = vmatpush1.msra.mxu0 %v1897
    %1937 = vmatprep.subr.mxu0 0.0
    %1938 = vmatpush1.msra.mxu0 0.0
    %1939 = vmatprep.subr.mxu0 0.0
    %1940 = vmatpush1.msra.mxu0 0.0
    %1941 = vmatprep.subr.mxu0 0.0
    %1942 = vmatpush1.msra.mxu0 0.0
    %1943 = vmatprep.subr.mxu0 0.0
    %1944 = vmatpush1.msra.mxu0 0.0
    %1945 = vmatprep.subr.mxu0 0.0
    %1946 = vmatpush1.msra.mxu0 0.0
    %1947 = vmatprep.subr.mxu0 0.0
    %1948 = vmatpush1.msra.mxu0 0.0
    %1949 = vmatprep.subr.mxu0 0.0
    %1950 = vmatpush1.msra.mxu0 0.0
    %1951 = vmatprep.subr.mxu0 0.0
    %1952 = vmatpush1.msra.mxu0 0.0
    %1953 = vmatprep.subr.mxu0 0.0
    %1954 = vmatpush1.msra.mxu0 0.0
    %1955 = vmatprep.subr.mxu0 0.0
    %1956 = vmatpush1.msra.mxu0 0.0
    %1957 = vmatprep.subr.mxu0 0.0
    %1958 = vmatpush1.msra.mxu0 0.0
    %1959 = vmatprep.subr.mxu0 0.0
    %1960 = vmatpush1.msra.mxu0 0.0
    %1961 = vmatprep.subr.mxu0 0.0
    %1962 = vmatpush1.msra.mxu0 0.0
    %1963 = vmatprep.subr.mxu0 0.0
    %1964 = vmatpush1.msra.mxu0 0.0
    %1965 = vmatprep.subr.mxu0 0.0
    %1966 = vmatpush1.msra.mxu0 0.0
    %1967 = vmatprep.subr.mxu0 0.0
    %1968 = vmatpush1.msra.mxu0 0.0
    %1969 = vmatprep.subr.mxu0 0.0
    %1970 = vmatpush1.msra.mxu0 0.0
    %1971 = vmatprep.subr.mxu0 0.0
    %1972 = vmatpush1.msra.mxu0 0.0
    %1973 = vmatprep.subr.mxu0 0.0
    %1974 = vmatpush1.msra.mxu0 0.0
    %1975 = vmatprep.subr.mxu0 0.0
    %1976 = vmatpush1.msra.mxu0 0.0
    %1977 = vmatprep.subr.mxu0 0.0
    %1978 = vmatpush1.msra.mxu0 0.0
    %1979 = vmatprep.subr.mxu0 0.0
    %1980 = vmatpush1.msra.mxu0 0.0
    %1981 = vmatprep.subr.mxu0 0.0
    %1982 = vmatpush1.msra.mxu0 0.0
    %1983 = vmatprep.subr.mxu0 0.0
    %1984 = vmatpush1.msra.mxu0 0.0
    %1985 = vmatprep.subr.mxu0 0.0
    %1986 = vmatpush1.msra.mxu0 0.0
    %1987 = vmatprep.subr.mxu0 0.0
    %1988 = vmatpush1.msra.mxu0 0.0
    %1989 = vmatprep.subr.mxu0 0.0
    %1990 = vmatpush1.msra.mxu0 0.0
    %1991 = vmatprep.subr.mxu0 0.0
    %1992 = vmatpush1.msra.mxu0 0.0
    %1993 = vmatprep.subr.mxu0 0.0
    %1994 = vmatpush1.msra.mxu0 0.0
    %1995 = vmatprep.subr.mxu0 0.0
    %1996 = vmatpush1.msra.mxu0 0.0
    %1997 = vmatprep.subr.mxu0 0.0
    %1998 = vmatpush1.msra.mxu0 0.0
    %1999 = vmatprep.mubr.f32.mxu0 0.0
    %2000 = vmatmul.mubr.f32.gmra.mrb[0].mxu0 %v1933
    %v2001 = vpop.f32.mrb[0].mxu0
    %v2002 = vadd.f32 0.0, %v2001
    %v2003 = vpop.f32.mrb[0].mxu0
    %v2004 = vadd.f32 0.0, %v2003
    %2005 = vdwg.mxu0
    %v2006 = vsub.f32 %v2004, %v2002
    %v2007 = vmul.f32 %v2006, 10.0
    %vm2008 = vcmp.lt.f32.partialorder %v2007, 0.0
    %v2009 = vsel %vm2008, -1.0, 1.0
    %v2010 = vand.u32 2147483647, %v2007
    %vm2011 = vcmp.gt.f32.partialorder %v2010, 2.4142137
    %vm2012 = vcmp.gt.f32.partialorder %v2010, 0.41421357
    %vm2013 = vmxor %vm2011, 1
    %vm2014 = vmand %vm2012, %vm2013
    %v2015 = vmax.f32 %v2010, 1.0
    %v2016 = vrcp.pop %v2015
    %v2017 = vmul.f32 -1.0, %v2016
    %v2018 = vsub.f32 %v2010, 1.0
    %v2019 = vadd.f32 %v2010, 1.0
    %v2020 = vrcp.pop %v2019
    %v2021 = vmul.f32 %v2018, %v2020
    %v2022 = vsel %vm2014, %v2021, %v2010
    %v2023 = vsel %vm2011, %v2017, %v2022
    %v2024 = vsel %vm2014, 0.7853982, 0.0
    %v2025 = vsel %vm2011, 1.5707964, %v2024
    %v2026 = vmul.f32 %v2023, %v2023
    %v2027 = vmul.f32 %v2026, 0.080537446
    %v2028 = vsub.f32 %v2027, 0.13877685
    %v2029 = vmul.f32 %v2028, %v2026
    %v2030 = vadd.f32 %v2029, 0.19977711
    %v2031 = vmul.f32 %v2030, %v2026
    %v2032 = vsub.f32 %v2031, 0.3333295
    %v2033 = vmul.f32 %v2032, %v2026
    %v2034 = vmul.f32 %v2033, %v2023
    %v2035 = vadd.f32 %v2034, %v2023
    %v2036 = vadd.f32 %v2025, %v2035
    %v2037 = vmul.f32 %v2009, %v2036
    %v2038 = vmul.f32 %v2037, 0.31830987
    %v2039 = vadd.f32 %v2038, 0.5
    %v2040 = vsub.f32 %v2002, %v2004
    %v2041 = vmul.f32 %v2039, %v2040
    %v2042 = vadd.f32 %v2004, %v2041
    %v2043 = vadd.f32 %v2002, %v2004
    %v2044 = vsub.f32 %v2043, %v2042
    %2045 = vmatprep.subr.mxu0 0.0
    %2046 = vmatpush1.msra.mxu0 %v1900
    %2047 = vmatprep.subr.mxu0 0.0
    %2048 = vmatpush1.msra.mxu0 %v1901
    %2049 = vmatprep.subr.mxu0 0.0
    %2050 = vmatpush1.msra.mxu0 %v1902
    %2051 = vmatprep.subr.mxu0 0.0
    %2052 = vmatpush1.msra.mxu0 %v1903
    %2053 = vmatprep.subr.mxu0 0.0
    %2054 = vmatpush1.msra.mxu0 %v1904
    %2055 = vmatprep.subr.mxu0 0.0
    %2056 = vmatpush1.msra.mxu0 %v1905
    %2057 = vmatprep.subr.mxu0 0.0
    %2058 = vmatpush1.msra.mxu0 %v1906
    %2059 = vmatprep.subr.mxu0 0.0
    %2060 = vmatpush1.msra.mxu0 %v1907
    %2061 = vmatprep.subr.mxu0 0.0
    %2062 = vmatpush1.msra.mxu0 %v1908
    %2063 = vmatprep.subr.mxu0 0.0
    %2064 = vmatpush1.msra.mxu0 %v1909
    %2065 = vmatprep.subr.mxu0 0.0
    %2066 = vmatpush1.msra.mxu0 %v1910
    %2067 = vmatprep.subr.mxu0 0.0
    %2068 = vmatpush1.msra.mxu0 %v1911
    %2069 = vmatprep.subr.mxu0 0.0
    %2070 = vmatpush1.msra.mxu0 %v1912
    %2071 = vmatprep.subr.mxu0 0.0
    %2072 = vmatpush1.msra.mxu0 %v1913
    %2073 = vmatprep.subr.mxu0 0.0
    %2074 = vmatpush1.msra.mxu0 %v1914
    %2075 = vmatprep.subr.mxu0 0.0
    %2076 = vmatpush1.msra.mxu0 %v1915
    %2077 = vmatprep.subr.mxu0 0.0
    %2078 = vmatpush1.msra.mxu0 %v1916
    %2079 = vmatprep.subr.mxu0 0.0
    %2080 = vmatpush1.msra.mxu0 %v1917
    %2081 = vmatprep.subr.mxu0 0.0
    %2082 = vmatpush1.msra.mxu0 %v1918
    %2083 = vmatprep.subr.mxu0 0.0
    %2084 = vmatpush1.msra.mxu0 %v1919
    %2085 = vmatprep.subr.mxu0 0.0
    %2086 = vmatpush1.msra.mxu0 %v1920
    %2087 = vmatprep.subr.mxu0 0.0
    %2088 = vmatpush1.msra.mxu0 %v1921
    %2089 = vmatprep.subr.mxu0 0.0
    %2090 = vmatpush1.msra.mxu0 %v1922
    %2091 = vmatprep.subr.mxu0 0.0
    %2092 = vmatpush1.msra.mxu0 %v1923
    %2093 = vmatprep.subr.mxu0 0.0
    %2094 = vmatpush1.msra.mxu0 %v1924
    %2095 = vmatprep.subr.mxu0 0.0
    %2096 = vmatpush1.msra.mxu0 %v1925
    %2097 = vmatprep.subr.mxu0 0.0
    %2098 = vmatpush1.msra.mxu0 %v1926
    %2099 = vmatprep.subr.mxu0 0.0
    %2100 = vmatpush1.msra.mxu0 %v1927
    %2101 = vmatprep.subr.mxu0 0.0
    %2102 = vmatpush1.msra.mxu0 %v1928
    %2103 = vmatprep.subr.mxu0 0.0
    %2104 = vmatpush1.msra.mxu0 %v1929
    %2105 = vmatprep.subr.mxu0 0.0
    %2106 = vmatpush1.msra.mxu0 %v1930
    %2107 = vmatprep.subr.mxu0 0.0
    %2108 = vmatpush1.msra.mxu0 %v1931
    %2109 = vmatprep.mubr.f32.mxu0 %v2044
    %2110 = vmatmul.mubr.f32.gmra.mrb[0].mxu0 %v2042
    %v2111 = vpop.f32.mrb[0].mxu0
    %v2112 = vadd.f32 0.0, %v2111
    %v2113 = vpop.f32.mrb[0].mxu0
    %2114 = vdwg.mxu0
    %v2116 = vsel %vm60, %v1878, 0
    %v2119 = vsel %vm60, %v1883, 0
    %v2122 = vsel %vm60, %v1888, 0
    %v2125 = vsel %vm60, %v1893, 0
    %2127 = vmatprep.subr.mxu0 %v1898
    %2128 = vmatpush1.msra.mxu0 %v1897
    %2129 = vmatprep.subr.mxu0 0.0
    %2130 = vmatpush1.msra.mxu0 0.0
    %2131 = vmatprep.subr.mxu0 0.0
    %2132 = vmatpush1.msra.mxu0 0.0
    %2133 = vmatprep.subr.mxu0 0.0
    %2134 = vmatpush1.msra.mxu0 0.0
    %2135 = vmatprep.subr.mxu0 0.0
    %2136 = vmatpush1.msra.mxu0 0.0
    %2137 = vmatprep.subr.mxu0 0.0
    %2138 = vmatpush1.msra.mxu0 0.0
    %2139 = vmatprep.subr.mxu0 0.0
    %2140 = vmatpush1.msra.mxu0 0.0
    %2141 = vmatprep.subr.mxu0 0.0
    %2142 = vmatpush1.msra.mxu0 0.0
    %2143 = vmatprep.subr.mxu0 0.0
    %2144 = vmatpush1.msra.mxu0 0.0
    %2145 = vmatprep.subr.mxu0 0.0
    %2146 = vmatpush1.msra.mxu0 0.0
    %2147 = vmatprep.subr.mxu0 0.0
    %2148 = vmatpush1.msra.mxu0 0.0
    %2149 = vmatprep.subr.mxu0 0.0
    %2150 = vmatpush1.msra.mxu0 0.0
    %2151 = vmatprep.subr.mxu0 0.0
    %2152 = vmatpush1.msra.mxu0 0.0
    %2153 = vmatprep.subr.mxu0 0.0
    %2154 = vmatpush1.msra.mxu0 0.0
    %2155 = vmatprep.subr.mxu0 0.0
    %2156 = vmatpush1.msra.mxu0 0.0
    %2157 = vmatprep.subr.mxu0 0.0
    %2158 = vmatpush1.msra.mxu0 0.0
    %2159 = vmatprep.subr.mxu0 0.0
    %2160 = vmatpush1.msra.mxu0 0.0
    %2161 = vmatprep.subr.mxu0 0.0
    %2162 = vmatpush1.msra.mxu0 0.0
    %2163 = vmatprep.subr.mxu0 0.0
    %2164 = vmatpush1.msra.mxu0 0.0
    %2165 = vmatprep.subr.mxu0 0.0
    %2166 = vmatpush1.msra.mxu0 0.0
    %2167 = vmatprep.subr.mxu0 0.0
    %2168 = vmatpush1.msra.mxu0 0.0
    %2169 = vmatprep.subr.mxu0 0.0
    %2170 = vmatpush1.msra.mxu0 0.0
    %2171 = vmatprep.subr.mxu0 0.0
    %2172 = vmatpush1.msra.mxu0 0.0
    %2173 = vmatprep.subr.mxu0 0.0
    %2174 = vmatpush1.msra.mxu0 0.0
    %2175 = vmatprep.subr.mxu0 0.0
    %2176 = vmatpush1.msra.mxu0 0.0
    %2177 = vmatprep.subr.mxu0 0.0
    %2178 = vmatpush1.msra.mxu0 0.0
    %2179 = vmatprep.subr.mxu0 0.0
    %2180 = vmatpush1.msra.mxu0 0.0
    %2181 = vmatprep.subr.mxu0 0.0
    %2182 = vmatpush1.msra.mxu0 0.0
    %2183 = vmatprep.subr.mxu0 0.0
    %2184 = vmatpush1.msra.mxu0 0.0
    %2185 = vmatprep.subr.mxu0 0.0
    %2186 = vmatpush1.msra.mxu0 0.0
    %2187 = vmatprep.subr.mxu0 0.0
    %2188 = vmatpush1.msra.mxu0 0.0
    %2189 = vmatprep.subr.mxu0 0.0
    %2190 = vmatpush1.msra.mxu0 0.0
    %2191 = vmatprep.mubr.f32.mxu0 0.0
    %2192 = vmatmul.mubr.f32.gmra.mrb[0].mxu0 %v2116
    %v2193 = vpop.f32.mrb[0].mxu0
    %v2194 = vadd.f32 0.0, %v2193
    %v2195 = vpop.f32.mrb[0].mxu0
    %v2196 = vadd.f32 0.0, %v2195
    %2197 = vmatprep.mubr.f32.mxu0 0.0
    %2198 = vmatmul.mubr.f32.gmra.mrb[0].mxu0 %v2119
    %v2199 = vpop.f32.mrb[0].mxu0
    %v2200 = vadd.f32 0.0, %v2199
    %v2201 = vpop.f32.mrb[0].mxu0
    %v2202 = vadd.f32 0.0, %v2201
    %2203 = vmatprep.mubr.f32.mxu0 0.0
    %2204 = vmatmul.mubr.f32.gmra.mrb[0].mxu0 %v2122
    %v2205 = vpop.f32.mrb[0].mxu0
    %v2206 = vadd.f32 0.0, %v2205
    %v2207 = vpop.f32.mrb[0].mxu0
    %v2208 = vadd.f32 0.0, %v2207
    %2209 = vmatprep.mubr.f32.mxu0 0.0
    %2210 = vmatmul.mubr.f32.gmra.mrb[0].mxu0 %v2125
    %v2211 = vpop.f32.mrb[0].mxu0
    %v2212 = vadd.f32 0.0, %v2211
    %v2213 = vpop.f32.mrb[0].mxu0
    %v2214 = vadd.f32 0.0, %v2213
    %2215 = vdwg.mxu0
    %v2218 = vunpack.c.l.s4 1966171168
    %v2219 = vunpack.c.0.s8 %v2218
    %v2220 = vlaneseq
    %v2221 = vshrl.u32 %v2220, 7
    %v2222 = vsub.s32 %v2219, %v2221
    %v2223 = vrot.slane %v2039, %v2222
    %v2224 = vcombine.high %v2223, %v2223
    %v2226 = vunpack.c.l.s4 1966171168
    %v2227 = vunpack.c.0.s8 %v2226
    %v2228 = vlaneseq
    %v2229 = vshrl.u32 %v2228, 7
    %v2230 = vsub.s32 %v2227, %v2229
    %v2231 = vrot.slane %v2223, %v2230
    %v2233 = vunpack.c.l.s4 1966171168
    %v2234 = vunpack.c.0.s8 %v2233
    %v2235 = vlaneseq
    %v2236 = vshrl.u32 %v2235, 7
    %v2237 = vsub.s32 %v2234, %v2236
    %v2238 = vrot.slane %v2224, %v2237
    %v2239 = vcombine.high %v2231, %v2231
    %v2240 = vcombine.high %v2238, %v2238
    %v2241 = vlaneseq
    %v2242 = vshrl.u32 %v2241, 7
    %v2243 = vsub.s32 0, %v2242
    %v2244 = vrot.slane %v2231, %v2243
    %v2245 = vlaneseq
    %v2246 = vshrl.u32 %v2245, 7
    %v2247 = vsub.s32 0, %v2246
    %v2248 = vrot.slane %v2238, %v2247
    %v2249 = vlaneseq
    %v2250 = vshrl.u32 %v2249, 7
    %v2251 = vsub.s32 0, %v2250
    %v2252 = vrot.slane %v2239, %v2251
    %v2253 = vlaneseq
    %v2254 = vshrl.u32 %v2253, 7
    %v2255 = vsub.s32 0, %v2254
    %v2256 = vrot.slane %v2240, %v2255
    %v2261 = vsub.f32 %v2194, %v2196
    %v2262 = vsub.f32 %v2200, %v2202
    %v2263 = vsub.f32 %v2206, %v2208
    %v2264 = vsub.f32 %v2212, %v2214
    %v2265 = vmul.f32 %v2244, %v2261
    %v2266 = vmul.f32 %v2248, %v2262
    %v2267 = vmul.f32 %v2252, %v2263
    %v2268 = vmul.f32 %v2256, %v2264
    %v2269 = vadd.f32 %v2196, %v2265
    %v2270 = vadd.f32 %v2202, %v2266
    %v2271 = vadd.f32 %v2208, %v2267
    %v2272 = vadd.f32 %v2214, %v2268
    %v2273 = vadd.f32 %v2194, %v2196
    %v2274 = vadd.f32 %v2200, %v2202
    %v2275 = vadd.f32 %v2206, %v2208
    %v2276 = vadd.f32 %v2212, %v2214
    %v2277 = vsub.f32 %v2273, %v2269
    %v2278 = vsub.f32 %v2274, %v2270
    %v2279 = vsub.f32 %v2275, %v2271
    %v2280 = vsub.f32 %v2276, %v2272
    %2281 = vmatprep.subr.mxu0 0.0
    %2282 = vmatpush1.msra.mxu0 %v1900
    %2283 = vmatprep.subr.mxu0 0.0
    %2284 = vmatpush1.msra.mxu0 %v1901
    %2285 = vmatprep.subr.mxu0 0.0
    %2286 = vmatpush1.msra.mxu0 %v1902
    %2287 = vmatprep.subr.mxu0 0.0
    %2288 = vmatpush1.msra.mxu0 %v1903
    %2289 = vmatprep.subr.mxu0 0.0
    %2290 = vmatpush1.msra.mxu0 %v1904
    %2291 = vmatprep.subr.mxu0 0.0
    %2292 = vmatpush1.msra.mxu0 %v1905
    %2293 = vmatprep.subr.mxu0 0.0
    %2294 = vmatpush1.msra.mxu0 %v1906
    %2295 = vmatprep.subr.mxu0 0.0
    %2296 = vmatpush1.msra.mxu0 %v1907
    %2297 = vmatprep.subr.mxu0 0.0
    %2298 = vmatpush1.msra.mxu0 %v1908
    %2299 = vmatprep.subr.mxu0 0.0
    %2300 = vmatpush1.msra.mxu0 %v1909
    %2301 = vmatprep.subr.mxu0 0.0
    %2302 = vmatpush1.msra.mxu0 %v1910
    %2303 = vmatprep.subr.mxu0 0.0
    %2304 = vmatpush1.msra.mxu0 %v1911
    %2305 = vmatprep.subr.mxu0 0.0
    %2306 = vmatpush1.msra.mxu0 %v1912
    %2307 = vmatprep.subr.mxu0 0.0
    %2308 = vmatpush1.msra.mxu0 %v1913
    %2309 = vmatprep.subr.mxu0 0.0
    %2310 = vmatpush1.msra.mxu0 %v1914
    %2311 = vmatprep.subr.mxu0 0.0
    %2312 = vmatpush1.msra.mxu0 %v1915
    %2313 = vmatprep.subr.mxu0 0.0
    %2314 = vmatpush1.msra.mxu0 %v1916
    %2315 = vmatprep.subr.mxu0 0.0
    %2316 = vmatpush1.msra.mxu0 %v1917
    %2317 = vmatprep.subr.mxu0 0.0
    %2318 = vmatpush1.msra.mxu0 %v1918
    %2319 = vmatprep.subr.mxu0 0.0
    %2320 = vmatpush1.msra.mxu0 %v1919
    %2321 = vmatprep.subr.mxu0 0.0
    %2322 = vmatpush1.msra.mxu0 %v1920
    %2323 = vmatprep.subr.mxu0 0.0
    %2324 = vmatpush1.msra.mxu0 %v1921
    %2325 = vmatprep.subr.mxu0 0.0
    %2326 = vmatpush1.msra.mxu0 %v1922
    %2327 = vmatprep.subr.mxu0 0.0
    %2328 = vmatpush1.msra.mxu0 %v1923
    %2329 = vmatprep.subr.mxu0 0.0
    %2330 = vmatpush1.msra.mxu0 %v1924
    %2331 = vmatprep.subr.mxu0 0.0
    %2332 = vmatpush1.msra.mxu0 %v1925
    %2333 = vmatprep.subr.mxu0 0.0
    %2334 = vmatpush1.msra.mxu0 %v1926
    %2335 = vmatprep.subr.mxu0 0.0
    %2336 = vmatpush1.msra.mxu0 %v1927
    %2337 = vmatprep.subr.mxu0 0.0
    %2338 = vmatpush1.msra.mxu0 %v1928
    %2339 = vmatprep.subr.mxu0 0.0
    %2340 = vmatpush1.msra.mxu0 %v1929
    %2341 = vmatprep.subr.mxu0 0.0
    %2342 = vmatpush1.msra.mxu0 %v1930
    %2343 = vmatprep.subr.mxu0 0.0
    %2344 = vmatpush1.msra.mxu0 %v1931
    %2345 = vmatprep.mubr.f32.mxu0 %v2277
    %2346 = vmatmul.mubr.f32.gmra.mrb[0].mxu0 %v2269
    %v2347 = vpop.f32.mrb[0].mxu0
    %v2348 = vadd.f32 0.0, %v2347
    %v2349 = vpop.f32.mrb[0].mxu0
    %2350 = vmatprep.mubr.f32.mxu0 %v2278
    %2351 = vmatmul.mubr.f32.gmra.mrb[0].mxu0 %v2270
    %v2352 = vpop.f32.mrb[0].mxu0
    %v2353 = vadd.f32 0.0, %v2352
    %v2354 = vpop.f32.mrb[0].mxu0
    %2355 = vmatprep.mubr.f32.mxu0 %v2279
    %2356 = vmatmul.mubr.f32.gmra.mrb[0].mxu0 %v2271
    %v2357 = vpop.f32.mrb[0].mxu0
    %v2358 = vadd.f32 0.0, %v2357
    %v2359 = vpop.f32.mrb[0].mxu0
    %2360 = vmatprep.mubr.f32.mxu0 %v2280
    %2361 = vmatmul.mubr.f32.gmra.mrb[0].mxu0 %v2272
    %v2362 = vpop.f32.mrb[0].mxu0
    %v2363 = vadd.f32 0.0, %v2362
    %v2364 = vpop.f32.mrb[0].mxu0
    %2365 = vdwg.mxu0
    %s2366 = scalar_lea.vmem %s1, 80
    %v2367 = vld [vmem:[%s2366] sm:$0xff]
    %v2368 = vld [vmem:[%s2366 + $0x8] sm:$0xff]
    %s2369 = scalar_lea.vmem %s2, 1280
    %v2370 = vld [vmem:[%s2369] sm:$0xff]
    %v2371 = vld [vmem:[%s2369 + $0x8] sm:$0xff]
    %v2372 = vld [vmem:[%s2369 + $0x10] sm:$0xff]
    %v2373 = vld [vmem:[%s2369 + $0x18] sm:$0xff]
    %v2374 = vld [vmem:[%s2369 + $0x20] sm:$0xff]
    %v2375 = vld [vmem:[%s2369 + $0x28] sm:$0xff]
    %v2376 = vld [vmem:[%s2369 + $0x30] sm:$0xff]
    %v2377 = vld [vmem:[%s2369 + $0x38] sm:$0xff]
    %v2378 = vld [vmem:[%s2369 + $0x40] sm:$0xff]
    %v2379 = vld [vmem:[%s2369 + $0x48] sm:$0xff]
    %v2380 = vld [vmem:[%s2369 + $0x50] sm:$0xff]
    %v2381 = vld [vmem:[%s2369 + $0x58] sm:$0xff]
    %v2382 = vld [vmem:[%s2369 + $0x60] sm:$0xff]
    %v2383 = vld [vmem:[%s2369 + $0x68] sm:$0xff]
    %v2384 = vld [vmem:[%s2369 + $0x70] sm:$0xff]
    %v2385 = vld [vmem:[%s2369 + $0x78] sm:$0xff]
    %v2386 = vld [vmem:[%s2369 + $0x80] sm:$0xff]
    %v2387 = vld [vmem:[%s2369 + $0x88] sm:$0xff]
    %v2388 = vld [vmem:[%s2369 + $0x90] sm:$0xff]
    %v2389 = vld [vmem:[%s2369 + $0x98] sm:$0xff]
    %v2390 = vld [vmem:[%s2369 + $0xa0] sm:$0xff]
    %v2391 = vld [vmem:[%s2369 + $0xa8] sm:$0xff]
    %v2392 = vld [vmem:[%s2369 + $0xb0] sm:$0xff]
    %v2393 = vld [vmem:[%s2369 + $0xb8] sm:$0xff]
    %v2394 = vld [vmem:[%s2369 + $0xc0] sm:$0xff]
    %v2395 = vld [vmem:[%s2369 + $0xc8] sm:$0xff]
    %v2396 = vld [vmem:[%s2369 + $0xd0] sm:$0xff]
    %v2397 = vld [vmem:[%s2369 + $0xd8] sm:$0xff]
    %v2398 = vld [vmem:[%s2369 + $0xe0] sm:$0xff]
    %v2399 = vld [vmem:[%s2369 + $0xe8] sm:$0xff]
    %v2400 = vld [vmem:[%s2369 + $0xf0] sm:$0xff]
    %v2401 = vld [vmem:[%s2369 + $0xf8] sm:$0xff]
    %v2403 = vsel %vm60, %v2112, 0
    %2405 = vmatprep.subr.mxu0 %v2368
    %2406 = vmatpush1.msra.mxu0 %v2367
    %2407 = vmatprep.subr.mxu0 0.0
    %2408 = vmatpush1.msra.mxu0 0.0
    %2409 = vmatprep.subr.mxu0 0.0
    %2410 = vmatpush1.msra.mxu0 0.0
    %2411 = vmatprep.subr.mxu0 0.0
    %2412 = vmatpush1.msra.mxu0 0.0
    %2413 = vmatprep.subr.mxu0 0.0
    %2414 = vmatpush1.msra.mxu0 0.0
    %2415 = vmatprep.subr.mxu0 0.0
    %2416 = vmatpush1.msra.mxu0 0.0
    %2417 = vmatprep.subr.mxu0 0.0
    %2418 = vmatpush1.msra.mxu0 0.0
    %2419 = vmatprep.subr.mxu0 0.0
    %2420 = vmatpush1.msra.mxu0 0.0
    %2421 = vmatprep.subr.mxu0 0.0
    %2422 = vmatpush1.msra.mxu0 0.0
    %2423 = vmatprep.subr.mxu0 0.0
    %2424 = vmatpush1.msra.mxu0 0.0
    %2425 = vmatprep.subr.mxu0 0.0
    %2426 = vmatpush1.msra.mxu0 0.0
    %2427 = vmatprep.subr.mxu0 0.0
    %2428 = vmatpush1.msra.mxu0 0.0
    %2429 = vmatprep.subr.mxu0 0.0
    %2430 = vmatpush1.msra.mxu0 0.0
    %2431 = vmatprep.subr.mxu0 0.0
    %2432 = vmatpush1.msra.mxu0 0.0
    %2433 = vmatprep.subr.mxu0 0.0
    %2434 = vmatpush1.msra.mxu0 0.0
    %2435 = vmatprep.subr.mxu0 0.0
    %2436 = vmatpush1.msra.mxu0 0.0
    %2437 = vmatprep.subr.mxu0 0.0
    %2438 = vmatpush1.msra.mxu0 0.0
    %2439 = vmatprep.subr.mxu0 0.0
    %2440 = vmatpush1.msra.mxu0 0.0
    %2441 = vmatprep.subr.mxu0 0.0
    %2442 = vmatpush1.msra.mxu0 0.0
    %2443 = vmatprep.subr.mxu0 0.0
    %2444 = vmatpush1.msra.mxu0 0.0
    %2445 = vmatprep.subr.mxu0 0.0
    %2446 = vmatpush1.msra.mxu0 0.0
    %2447 = vmatprep.subr.mxu0 0.0
    %2448 = vmatpush1.msra.mxu0 0.0
    %2449 = vmatprep.subr.mxu0 0.0
    %2450 = vmatpush1.msra.mxu0 0.0
    %2451 = vmatprep.subr.mxu0 0.0
    %2452 = vmatpush1.msra.mxu0 0.0
    %2453 = vmatprep.subr.mxu0 0.0
    %2454 = vmatpush1.msra.mxu0 0.0
    %2455 = vmatprep.subr.mxu0 0.0
    %2456 = vmatpush1.msra.mxu0 0.0
    %2457 = vmatprep.subr.mxu0 0.0
    %2458 = vmatpush1.msra.mxu0 0.0
    %2459 = vmatprep.subr.mxu0 0.0
    %2460 = vmatpush1.msra.mxu0 0.0
    %2461 = vmatprep.subr.mxu0 0.0
    %2462 = vmatpush1.msra.mxu0 0.0
    %2463 = vmatprep.subr.mxu0 0.0
    %2464 = vmatpush1.msra.mxu0 0.0
    %2465 = vmatprep.subr.mxu0 0.0
    %2466 = vmatpush1.msra.mxu0 0.0
    %2467 = vmatprep.subr.mxu0 0.0
    %2468 = vmatpush1.msra.mxu0 0.0
    %2469 = vmatprep.mubr.f32.mxu0 0.0
    %2470 = vmatmul.mubr.f32.gmra.mrb[0].mxu0 %v2403
    %v2471 = vpop.f32.mrb[0].mxu0
    %v2472 = vadd.f32 0.0, %v2471
    %v2473 = vpop.f32.mrb[0].mxu0
    %v2474 = vadd.f32 0.0, %v2473
    %2475 = vdwg.mxu0
    %v2476 = vsub.f32 %v2474, %v2472
    %v2477 = vmul.f32 %v2476, 10.0
    %vm2478 = vcmp.lt.f32.partialorder %v2477, 0.0
    %v2479 = vsel %vm2478, -1.0, 1.0
    %v2480 = vand.u32 2147483647, %v2477
    %vm2481 = vcmp.gt.f32.partialorder %v2480, 2.4142137
    %vm2482 = vcmp.gt.f32.partialorder %v2480, 0.41421357
    %vm2483 = vmxor %vm2481, 1
    %vm2484 = vmand %vm2482, %vm2483
    %v2485 = vmax.f32 %v2480, 1.0
    %v2486 = vrcp.pop %v2485
    %v2487 = vmul.f32 -1.0, %v2486
    %v2488 = vsub.f32 %v2480, 1.0
    %v2489 = vadd.f32 %v2480, 1.0
    %v2490 = vrcp.pop %v2489
    %v2491 = vmul.f32 %v2488, %v2490
    %v2492 = vsel %vm2484, %v2491, %v2480
    %v2493 = vsel %vm2481, %v2487, %v2492
    %v2494 = vsel %vm2484, 0.7853982, 0.0
    %v2495 = vsel %vm2481, 1.5707964, %v2494
    %v2496 = vmul.f32 %v2493, %v2493
    %v2497 = vmul.f32 %v2496, 0.080537446
    %v2498 = vsub.f32 %v2497, 0.13877685
    %v2499 = vmul.f32 %v2498, %v2496
    %v2500 = vadd.f32 %v2499, 0.19977711
    %v2501 = vmul.f32 %v2500, %v2496
    %v2502 = vsub.f32 %v2501, 0.3333295
    %v2503 = vmul.f32 %v2502, %v2496
    %v2504 = vmul.f32 %v2503, %v2493
    %v2505 = vadd.f32 %v2504, %v2493
    %v2506 = vadd.f32 %v2495, %v2505
    %v2507 = vmul.f32 %v2479, %v2506
    %v2508 = vmul.f32 %v2507, 0.31830987
    %v2509 = vadd.f32 %v2508, 0.5
    %v2510 = vsub.f32 %v2472, %v2474
    %v2511 = vmul.f32 %v2509, %v2510
    %v2512 = vadd.f32 %v2474, %v2511
    %v2513 = vadd.f32 %v2472, %v2474
    %v2514 = vsub.f32 %v2513, %v2512
    %2515 = vmatprep.subr.mxu0 0.0
    %2516 = vmatpush1.msra.mxu0 %v2370
    %2517 = vmatprep.subr.mxu0 0.0
    %2518 = vmatpush1.msra.mxu0 %v2371
    %2519 = vmatprep.subr.mxu0 0.0
    %2520 = vmatpush1.msra.mxu0 %v2372
    %2521 = vmatprep.subr.mxu0 0.0
    %2522 = vmatpush1.msra.mxu0 %v2373
    %2523 = vmatprep.subr.mxu0 0.0
    %2524 = vmatpush1.msra.mxu0 %v2374
    %2525 = vmatprep.subr.mxu0 0.0
    %2526 = vmatpush1.msra.mxu0 %v2375
    %2527 = vmatprep.subr.mxu0 0.0
    %2528 = vmatpush1.msra.mxu0 %v2376
    %2529 = vmatprep.subr.mxu0 0.0
    %2530 = vmatpush1.msra.mxu0 %v2377
    %2531 = vmatprep.subr.mxu0 0.0
    %2532 = vmatpush1.msra.mxu0 %v2378
    %2533 = vmatprep.subr.mxu0 0.0
    %2534 = vmatpush1.msra.mxu0 %v2379
    %2535 = vmatprep.subr.mxu0 0.0
    %2536 = vmatpush1.msra.mxu0 %v2380
    %2537 = vmatprep.subr.mxu0 0.0
    %2538 = vmatpush1.msra.mxu0 %v2381
    %2539 = vmatprep.subr.mxu0 0.0
    %2540 = vmatpush1.msra.mxu0 %v2382
    %2541 = vmatprep.subr.mxu0 0.0
    %2542 = vmatpush1.msra.mxu0 %v2383
    %2543 = vmatprep.subr.mxu0 0.0
    %2544 = vmatpush1.msra.mxu0 %v2384
    %2545 = vmatprep.subr.mxu0 0.0
    %2546 = vmatpush1.msra.mxu0 %v2385
    %2547 = vmatprep.subr.mxu0 0.0
    %2548 = vmatpush1.msra.mxu0 %v2386
    %2549 = vmatprep.subr.mxu0 0.0
    %2550 = vmatpush1.msra.mxu0 %v2387
    %2551 = vmatprep.subr.mxu0 0.0
    %2552 = vmatpush1.msra.mxu0 %v2388
    %2553 = vmatprep.subr.mxu0 0.0
    %2554 = vmatpush1.msra.mxu0 %v2389
    %2555 = vmatprep.subr.mxu0 0.0
    %2556 = vmatpush1.msra.mxu0 %v2390
    %2557 = vmatprep.subr.mxu0 0.0
    %2558 = vmatpush1.msra.mxu0 %v2391
    %2559 = vmatprep.subr.mxu0 0.0
    %2560 = vmatpush1.msra.mxu0 %v2392
    %2561 = vmatprep.subr.mxu0 0.0
    %2562 = vmatpush1.msra.mxu0 %v2393
    %2563 = vmatprep.subr.mxu0 0.0
    %2564 = vmatpush1.msra.mxu0 %v2394
    %2565 = vmatprep.subr.mxu0 0.0
    %2566 = vmatpush1.msra.mxu0 %v2395
    %2567 = vmatprep.subr.mxu0 0.0
    %2568 = vmatpush1.msra.mxu0 %v2396
    %2569 = vmatprep.subr.mxu0 0.0
    %2570 = vmatpush1.msra.mxu0 %v2397
    %2571 = vmatprep.subr.mxu0 0.0
    %2572 = vmatpush1.msra.mxu0 %v2398
    %2573 = vmatprep.subr.mxu0 0.0
    %2574 = vmatpush1.msra.mxu0 %v2399
    %2575 = vmatprep.subr.mxu0 0.0
    %2576 = vmatpush1.msra.mxu0 %v2400
    %2577 = vmatprep.subr.mxu0 0.0
    %2578 = vmatpush1.msra.mxu0 %v2401
    %2579 = vmatprep.mubr.f32.mxu0 %v2514
    %2580 = vmatmul.mubr.f32.gmra.mrb[0].mxu0 %v2512
    %v2581 = vpop.f32.mrb[0].mxu0
    %v2582 = vadd.f32 0.0, %v2581
    %v2583 = vpop.f32.mrb[0].mxu0
    %2584 = vdwg.mxu0
    %v2586 = vsel %vm60, %v2348, 0
    %v2589 = vsel %vm60, %v2353, 0
    %v2592 = vsel %vm60, %v2358, 0
    %v2595 = vsel %vm60, %v2363, 0
    %2597 = vmatprep.subr.mxu0 %v2368
    %2598 = vmatpush1.msra.mxu0 %v2367
    %2599 = vmatprep.subr.mxu0 0.0
    %2600 = vmatpush1.msra.mxu0 0.0
    %2601 = vmatprep.subr.mxu0 0.0
    %2602 = vmatpush1.msra.mxu0 0.0
    %2603 = vmatprep.subr.mxu0 0.0
    %2604 = vmatpush1.msra.mxu0 0.0
    %2605 = vmatprep.subr.mxu0 0.0
    %2606 = vmatpush1.msra.mxu0 0.0
    %2607 = vmatprep.subr.mxu0 0.0
    %2608 = vmatpush1.msra.mxu0 0.0
    %2609 = vmatprep.subr.mxu0 0.0
    %2610 = vmatpush1.msra.mxu0 0.0
    %2611 = vmatprep.subr.mxu0 0.0
    %2612 = vmatpush1.msra.mxu0 0.0
    %2613 = vmatprep.subr.mxu0 0.0
    %2614 = vmatpush1.msra.mxu0 0.0
    %2615 = vmatprep.subr.mxu0 0.0
    %2616 = vmatpush1.msra.mxu0 0.0
    %2617 = vmatprep.subr.mxu0 0.0
    %2618 = vmatpush1.msra.mxu0 0.0
    %2619 = vmatprep.subr.mxu0 0.0
    %2620 = vmatpush1.msra.mxu0 0.0
    %2621 = vmatprep.subr.mxu0 0.0
    %2622 = vmatpush1.msra.mxu0 0.0
    %2623 = vmatprep.subr.mxu0 0.0
    %2624 = vmatpush1.msra.mxu0 0.0
    %2625 = vmatprep.subr.mxu0 0.0
    %2626 = vmatpush1.msra.mxu0 0.0
    %2627 = vmatprep.subr.mxu0 0.0
    %2628 = vmatpush1.msra.mxu0 0.0
    %2629 = vmatprep.subr.mxu0 0.0
    %2630 = vmatpush1.msra.mxu0 0.0
    %2631 = vmatprep.subr.mxu0 0.0
    %2632 = vmatpush1.msra.mxu0 0.0
    %2633 = vmatprep.subr.mxu0 0.0
    %2634 = vmatpush1.msra.mxu0 0.0
    %2635 = vmatprep.subr.mxu0 0.0
    %2636 = vmatpush1.msra.mxu0 0.0
    %2637 = vmatprep.subr.mxu0 0.0
    %2638 = vmatpush1.msra.mxu0 0.0
    %2639 = vmatprep.subr.mxu0 0.0
    %2640 = vmatpush1.msra.mxu0 0.0
    %2641 = vmatprep.subr.mxu0 0.0
    %2642 = vmatpush1.msra.mxu0 0.0
    %2643 = vmatprep.subr.mxu0 0.0
    %2644 = vmatpush1.msra.mxu0 0.0
    %2645 = vmatprep.subr.mxu0 0.0
    %2646 = vmatpush1.msra.mxu0 0.0
    %2647 = vmatprep.subr.mxu0 0.0
    %2648 = vmatpush1.msra.mxu0 0.0
    %2649 = vmatprep.subr.mxu0 0.0
    %2650 = vmatpush1.msra.mxu0 0.0
    %2651 = vmatprep.subr.mxu0 0.0
    %2652 = vmatpush1.msra.mxu0 0.0
    %2653 = vmatprep.subr.mxu0 0.0
    %2654 = vmatpush1.msra.mxu0 0.0
    %2655 = vmatprep.subr.mxu0 0.0
    %2656 = vmatpush1.msra.mxu0 0.0
    %2657 = vmatprep.subr.mxu0 0.0
    %2658 = vmatpush1.msra.mxu0 0.0
    %2659 = vmatprep.subr.mxu0 0.0
    %2660 = vmatpush1.msra.mxu0 0.0
    %2661 = vmatprep.mubr.f32.mxu0 0.0
    %2662 = vmatmul.mubr.f32.gmra.mrb[0].mxu0 %v2586
    %v2663 = vpop.f32.mrb[0].mxu0
    %v2664 = vadd.f32 0.0, %v2663
    %v2665 = vpop.f32.mrb[0].mxu0
    %v2666 = vadd.f32 0.0, %v2665
    %2667 = vmatprep.mubr.f32.mxu0 0.0
    %2668 = vmatmul.mubr.f32.gmra.mrb[0].mxu0 %v2589
    %v2669 = vpop.f32.mrb[0].mxu0
    %v2670 = vadd.f32 0.0, %v2669
    %v2671 = vpop.f32.mrb[0].mxu0
    %v2672 = vadd.f32 0.0, %v2671
    %2673 = vmatprep.mubr.f32.mxu0 0.0
    %2674 = vmatmul.mubr.f32.gmra.mrb[0].mxu0 %v2592
    %v2675 = vpop.f32.mrb[0].mxu0
    %v2676 = vadd.f32 0.0, %v2675
    %v2677 = vpop.f32.mrb[0].mxu0
    %v2678 = vadd.f32 0.0, %v2677
    %2679 = vmatprep.mubr.f32.mxu0 0.0
    %2680 = vmatmul.mubr.f32.gmra.mrb[0].mxu0 %v2595
    %v2681 = vpop.f32.mrb[0].mxu0
    %v2682 = vadd.f32 0.0, %v2681
    %v2683 = vpop.f32.mrb[0].mxu0
    %v2684 = vadd.f32 0.0, %v2683
    %2685 = vdwg.mxu0
    %v2688 = vunpack.c.l.s4 1966171168
    %v2689 = vunpack.c.0.s8 %v2688
    %v2690 = vlaneseq
    %v2691 = vshrl.u32 %v2690, 7
    %v2692 = vsub.s32 %v2689, %v2691
    %v2693 = vrot.slane %v2509, %v2692
    %v2694 = vcombine.high %v2693, %v2693
    %v2696 = vunpack.c.l.s4 1966171168
    %v2697 = vunpack.c.0.s8 %v2696
    %v2698 = vlaneseq
    %v2699 = vshrl.u32 %v2698, 7
    %v2700 = vsub.s32 %v2697, %v2699
    %v2701 = vrot.slane %v2693, %v2700
    %v2703 = vunpack.c.l.s4 1966171168
    %v2704 = vunpack.c.0.s8 %v2703
    %v2705 = vlaneseq
    %v2706 = vshrl.u32 %v2705, 7
    %v2707 = vsub.s32 %v2704, %v2706
    %v2708 = vrot.slane %v2694, %v2707
    %v2709 = vcombine.high %v2701, %v2701
    %v2710 = vcombine.high %v2708, %v2708
    %v2711 = vlaneseq
    %v2712 = vshrl.u32 %v2711, 7
    %v2713 = vsub.s32 0, %v2712
    %v2714 = vrot.slane %v2701, %v2713
    %v2715 = vlaneseq
    %v2716 = vshrl.u32 %v2715, 7
    %v2717 = vsub.s32 0, %v2716
    %v2718 = vrot.slane %v2708, %v2717
    %v2719 = vlaneseq
    %v2720 = vshrl.u32 %v2719, 7
    %v2721 = vsub.s32 0, %v2720
    %v2722 = vrot.slane %v2709, %v2721
    %v2723 = vlaneseq
    %v2724 = vshrl.u32 %v2723, 7
    %v2725 = vsub.s32 0, %v2724
    %v2726 = vrot.slane %v2710, %v2725
    %v2731 = vsub.f32 %v2664, %v2666
    %v2732 = vsub.f32 %v2670, %v2672
    %v2733 = vsub.f32 %v2676, %v2678
    %v2734 = vsub.f32 %v2682, %v2684
    %v2735 = vmul.f32 %v2714, %v2731
    %v2736 = vmul.f32 %v2718, %v2732
    %v2737 = vmul.f32 %v2722, %v2733
    %v2738 = vmul.f32 %v2726, %v2734
    %v2739 = vadd.f32 %v2666, %v2735
    %v2740 = vadd.f32 %v2672, %v2736
    %v2741 = vadd.f32 %v2678, %v2737
    %v2742 = vadd.f32 %v2684, %v2738
    %v2743 = vadd.f32 %v2664, %v2666
    %v2744 = vadd.f32 %v2670, %v2672
    %v2745 = vadd.f32 %v2676, %v2678
    %v2746 = vadd.f32 %v2682, %v2684
    %v2747 = vsub.f32 %v2743, %v2739
    %v2748 = vsub.f32 %v2744, %v2740
    %v2749 = vsub.f32 %v2745, %v2741
    %v2750 = vsub.f32 %v2746, %v2742
    %2751 = vmatprep.subr.mxu0 0.0
    %2752 = vmatpush1.msra.mxu0 %v2370
    %2753 = vmatprep.subr.mxu0 0.0
    %2754 = vmatpush1.msra.mxu0 %v2371
    %2755 = vmatprep.subr.mxu0 0.0
    %2756 = vmatpush1.msra.mxu0 %v2372
    %2757 = vmatprep.subr.mxu0 0.0
    %2758 = vmatpush1.msra.mxu0 %v2373
    %2759 = vmatprep.subr.mxu0 0.0
    %2760 = vmatpush1.msra.mxu0 %v2374
    %2761 = vmatprep.subr.mxu0 0.0
    %2762 = vmatpush1.msra.mxu0 %v2375
    %2763 = vmatprep.subr.mxu0 0.0
    %2764 = vmatpush1.msra.mxu0 %v2376
    %2765 = vmatprep.subr.mxu0 0.0
    %2766 = vmatpush1.msra.mxu0 %v2377
    %2767 = vmatprep.subr.mxu0 0.0
    %2768 = vmatpush1.msra.mxu0 %v2378
    %2769 = vmatprep.subr.mxu0 0.0
    %2770 = vmatpush1.msra.mxu0 %v2379
    %2771 = vmatprep.subr.mxu0 0.0
    %2772 = vmatpush1.msra.mxu0 %v2380
    %2773 = vmatprep.subr.mxu0 0.0
    %2774 = vmatpush1.msra.mxu0 %v2381
    %2775 = vmatprep.subr.mxu0 0.0
    %2776 = vmatpush1.msra.mxu0 %v2382
    %2777 = vmatprep.subr.mxu0 0.0
    %2778 = vmatpush1.msra.mxu0 %v2383
    %2779 = vmatprep.subr.mxu0 0.0
    %2780 = vmatpush1.msra.mxu0 %v2384
    %2781 = vmatprep.subr.mxu0 0.0
    %2782 = vmatpush1.msra.mxu0 %v2385
    %2783 = vmatprep.subr.mxu0 0.0
    %2784 = vmatpush1.msra.mxu0 %v2386
    %2785 = vmatprep.subr.mxu0 0.0
    %2786 = vmatpush1.msra.mxu0 %v2387
    %2787 = vmatprep.subr.mxu0 0.0
    %2788 = vmatpush1.msra.mxu0 %v2388
    %2789 = vmatprep.subr.mxu0 0.0
    %2790 = vmatpush1.msra.mxu0 %v2389
    %2791 = vmatprep.subr.mxu0 0.0
    %2792 = vmatpush1.msra.mxu0 %v2390
    %2793 = vmatprep.subr.mxu0 0.0
    %2794 = vmatpush1.msra.mxu0 %v2391
    %2795 = vmatprep.subr.mxu0 0.0
    %2796 = vmatpush1.msra.mxu0 %v2392
    %2797 = vmatprep.subr.mxu0 0.0
    %2798 = vmatpush1.msra.mxu0 %v2393
    %2799 = vmatprep.subr.mxu0 0.0
    %2800 = vmatpush1.msra.mxu0 %v2394
    %2801 = vmatprep.subr.mxu0 0.0
    %2802 = vmatpush1.msra.mxu0 %v2395
    %2803 = vmatprep.subr.mxu0 0.0
    %2804 = vmatpush1.msra.mxu0 %v2396
    %2805 = vmatprep.subr.mxu0 0.0
    %2806 = vmatpush1.msra.mxu0 %v2397
    %2807 = vmatprep.subr.mxu0 0.0
    %2808 = vmatpush1.msra.mxu0 %v2398
    %2809 = vmatprep.subr.mxu0 0.0
    %2810 = vmatpush1.msra.mxu0 %v2399
    %2811 = vmatprep.subr.mxu0 0.0
    %2812 = vmatpush1.msra.mxu0 %v2400
    %2813 = vmatprep.subr.mxu0 0.0
    %2814 = vmatpush1.msra.mxu0 %v2401
    %2815 = vmatprep.mubr.f32.mxu0 %v2747
    %2816 = vmatmul.mubr.f32.gmra.mrb[0].mxu0 %v2739
    %v2817 = vpop.f32.mrb[0].mxu0
    %v2818 = vadd.f32 0.0, %v2817
    %v2819 = vpop.f32.mrb[0].mxu0
    %2820 = vmatprep.mubr.f32.mxu0 %v2748
    %2821 = vmatmul.mubr.f32.gmra.mrb[0].mxu0 %v2740
    %v2822 = vpop.f32.mrb[0].mxu0
    %v2823 = vadd.f32 0.0, %v2822
    %v2824 = vpop.f32.mrb[0].mxu0
    %2825 = vmatprep.mubr.f32.mxu0 %v2749
    %2826 = vmatmul.mubr.f32.gmra.mrb[0].mxu0 %v2741
    %v2827 = vpop.f32.mrb[0].mxu0
    %v2828 = vadd.f32 0.0, %v2827
    %v2829 = vpop.f32.mrb[0].mxu0
    %2830 = vmatprep.mubr.f32.mxu0 %v2750
    %2831 = vmatmul.mubr.f32.gmra.mrb[0].mxu0 %v2742
    %v2832 = vpop.f32.mrb[0].mxu0
    %v2833 = vadd.f32 0.0, %v2832
    %v2834 = vpop.f32.mrb[0].mxu0
    %2835 = vdwg.mxu0
    %s2836 = scalar_lea.vmem %s1, 96
    %v2837 = vld [vmem:[%s2836] sm:$0xff]
    %v2838 = vld [vmem:[%s2836 + $0x8] sm:$0xff]
    %s2839 = scalar_lea.vmem %s2, 1536
    %v2840 = vld [vmem:[%s2839] sm:$0xff]
    %v2841 = vld [vmem:[%s2839 + $0x8] sm:$0xff]
    %v2842 = vld [vmem:[%s2839 + $0x10] sm:$0xff]
    %v2843 = vld [vmem:[%s2839 + $0x18] sm:$0xff]
    %v2844 = vld [vmem:[%s2839 + $0x20] sm:$0xff]
    %v2845 = vld [vmem:[%s2839 + $0x28] sm:$0xff]
    %v2846 = vld [vmem:[%s2839 + $0x30] sm:$0xff]
    %v2847 = vld [vmem:[%s2839 + $0x38] sm:$0xff]
    %v2848 = vld [vmem:[%s2839 + $0x40] sm:$0xff]
    %v2849 = vld [vmem:[%s2839 + $0x48] sm:$0xff]
    %v2850 = vld [vmem:[%s2839 + $0x50] sm:$0xff]
    %v2851 = vld [vmem:[%s2839 + $0x58] sm:$0xff]
    %v2852 = vld [vmem:[%s2839 + $0x60] sm:$0xff]
    %v2853 = vld [vmem:[%s2839 + $0x68] sm:$0xff]
    %v2854 = vld [vmem:[%s2839 + $0x70] sm:$0xff]
    %v2855 = vld [vmem:[%s2839 + $0x78] sm:$0xff]
    %v2856 = vld [vmem:[%s2839 + $0x80] sm:$0xff]
    %v2857 = vld [vmem:[%s2839 + $0x88] sm:$0xff]
    %v2858 = vld [vmem:[%s2839 + $0x90] sm:$0xff]
    %v2859 = vld [vmem:[%s2839 + $0x98] sm:$0xff]
    %v2860 = vld [vmem:[%s2839 + $0xa0] sm:$0xff]
    %v2861 = vld [vmem:[%s2839 + $0xa8] sm:$0xff]
    %v2862 = vld [vmem:[%s2839 + $0xb0] sm:$0xff]
    %v2863 = vld [vmem:[%s2839 + $0xb8] sm:$0xff]
    %v2864 = vld [vmem:[%s2839 + $0xc0] sm:$0xff]
    %v2865 = vld [vmem:[%s2839 + $0xc8] sm:$0xff]
    %v2866 = vld [vmem:[%s2839 + $0xd0] sm:$0xff]
    %v2867 = vld [vmem:[%s2839 + $0xd8] sm:$0xff]
    %v2868 = vld [vmem:[%s2839 + $0xe0] sm:$0xff]
    %v2869 = vld [vmem:[%s2839 + $0xe8] sm:$0xff]
    %v2870 = vld [vmem:[%s2839 + $0xf0] sm:$0xff]
    %v2871 = vld [vmem:[%s2839 + $0xf8] sm:$0xff]
    %v2873 = vsel %vm60, %v2582, 0
    %2875 = vmatprep.subr.mxu0 %v2838
    %2876 = vmatpush1.msra.mxu0 %v2837
    %2877 = vmatprep.subr.mxu0 0.0
    %2878 = vmatpush1.msra.mxu0 0.0
    %2879 = vmatprep.subr.mxu0 0.0
    %2880 = vmatpush1.msra.mxu0 0.0
    %2881 = vmatprep.subr.mxu0 0.0
    %2882 = vmatpush1.msra.mxu0 0.0
    %2883 = vmatprep.subr.mxu0 0.0
    %2884 = vmatpush1.msra.mxu0 0.0
    %2885 = vmatprep.subr.mxu0 0.0
    %2886 = vmatpush1.msra.mxu0 0.0
    %2887 = vmatprep.subr.mxu0 0.0
    %2888 = vmatpush1.msra.mxu0 0.0
    %2889 = vmatprep.subr.mxu0 0.0
    %2890 = vmatpush1.msra.mxu0 0.0
    %2891 = vmatprep.subr.mxu0 0.0
    %2892 = vmatpush1.msra.mxu0 0.0
    %2893 = vmatprep.subr.mxu0 0.0
    %2894 = vmatpush1.msra.mxu0 0.0
    %2895 = vmatprep.subr.mxu0 0.0
    %2896 = vmatpush1.msra.mxu0 0.0
    %2897 = vmatprep.subr.mxu0 0.0
    %2898 = vmatpush1.msra.mxu0 0.0
    %2899 = vmatprep.subr.mxu0 0.0
    %2900 = vmatpush1.msra.mxu0 0.0
    %2901 = vmatprep.subr.mxu0 0.0
    %2902 = vmatpush1.msra.mxu0 0.0
    %2903 = vmatprep.subr.mxu0 0.0
    %2904 = vmatpush1.msra.mxu0 0.0
    %2905 = vmatprep.subr.mxu0 0.0
    %2906 = vmatpush1.msra.mxu0 0.0
    %2907 = vmatprep.subr.mxu0 0.0
    %2908 = vmatpush1.msra.mxu0 0.0
    %2909 = vmatprep.subr.mxu0 0.0
    %2910 = vmatpush1.msra.mxu0 0.0
    %2911 = vmatprep.subr.mxu0 0.0
    %2912 = vmatpush1.msra.mxu0 0.0
    %2913 = vmatprep.subr.mxu0 0.0
    %2914 = vmatpush1.msra.mxu0 0.0
    %2915 = vmatprep.subr.mxu0 0.0
    %2916 = vmatpush1.msra.mxu0 0.0
    %2917 = vmatprep.subr.mxu0 0.0
    %2918 = vmatpush1.msra.mxu0 0.0
    %2919 = vmatprep.subr.mxu0 0.0
    %2920 = vmatpush1.msra.mxu0 0.0
    %2921 = vmatprep.subr.mxu0 0.0
    %2922 = vmatpush1.msra.mxu0 0.0
    %2923 = vmatprep.subr.mxu0 0.0
    %2924 = vmatpush1.msra.mxu0 0.0
    %2925 = vmatprep.subr.mxu0 0.0
    %2926 = vmatpush1.msra.mxu0 0.0
    %2927 = vmatprep.subr.mxu0 0.0
    %2928 = vmatpush1.msra.mxu0 0.0
    %2929 = vmatprep.subr.mxu0 0.0
    %2930 = vmatpush1.msra.mxu0 0.0
    %2931 = vmatprep.subr.mxu0 0.0
    %2932 = vmatpush1.msra.mxu0 0.0
    %2933 = vmatprep.subr.mxu0 0.0
    %2934 = vmatpush1.msra.mxu0 0.0
    %2935 = vmatprep.subr.mxu0 0.0
    %2936 = vmatpush1.msra.mxu0 0.0
    %2937 = vmatprep.subr.mxu0 0.0
    %2938 = vmatpush1.msra.mxu0 0.0
    %2939 = vmatprep.mubr.f32.mxu0 0.0
    %2940 = vmatmul.mubr.f32.gmra.mrb[0].mxu0 %v2873
    %v2941 = vpop.f32.mrb[0].mxu0
    %v2942 = vadd.f32 0.0, %v2941
    %v2943 = vpop.f32.mrb[0].mxu0
    %v2944 = vadd.f32 0.0, %v2943
    %2945 = vdwg.mxu0
    %v2946 = vsub.f32 %v2944, %v2942
    %v2947 = vmul.f32 %v2946, 10.0
    %vm2948 = vcmp.lt.f32.partialorder %v2947, 0.0
    %v2949 = vsel %vm2948, -1.0, 1.0
    %v2950 = vand.u32 2147483647, %v2947
    %vm2951 = vcmp.gt.f32.partialorder %v2950, 2.4142137
    %vm2952 = vcmp.gt.f32.partialorder %v2950, 0.41421357
    %vm2953 = vmxor %vm2951, 1
    %vm2954 = vmand %vm2952, %vm2953
    %v2955 = vmax.f32 %v2950, 1.0
    %v2956 = vrcp.pop %v2955
    %v2957 = vmul.f32 -1.0, %v2956
    %v2958 = vsub.f32 %v2950, 1.0
    %v2959 = vadd.f32 %v2950, 1.0
    %v2960 = vrcp.pop %v2959
    %v2961 = vmul.f32 %v2958, %v2960
    %v2962 = vsel %vm2954, %v2961, %v2950
    %v2963 = vsel %vm2951, %v2957, %v2962
    %v2964 = vsel %vm2954, 0.7853982, 0.0
    %v2965 = vsel %vm2951, 1.5707964, %v2964
    %v2966 = vmul.f32 %v2963, %v2963
    %v2967 = vmul.f32 %v2966, 0.080537446
    %v2968 = vsub.f32 %v2967, 0.13877685
    %v2969 = vmul.f32 %v2968, %v2966
    %v2970 = vadd.f32 %v2969, 0.19977711
    %v2971 = vmul.f32 %v2970, %v2966
    %v2972 = vsub.f32 %v2971, 0.3333295
    %v2973 = vmul.f32 %v2972, %v2966
    %v2974 = vmul.f32 %v2973, %v2963
    %v2975 = vadd.f32 %v2974, %v2963
    %v2976 = vadd.f32 %v2965, %v2975
    %v2977 = vmul.f32 %v2949, %v2976
    %v2978 = vmul.f32 %v2977, 0.31830987
    %v2979 = vadd.f32 %v2978, 0.5
    %v2980 = vsub.f32 %v2942, %v2944
    %v2981 = vmul.f32 %v2979, %v2980
    %v2982 = vadd.f32 %v2944, %v2981
    %v2983 = vadd.f32 %v2942, %v2944
    %v2984 = vsub.f32 %v2983, %v2982
    %2985 = vmatprep.subr.mxu0 0.0
    %2986 = vmatpush1.msra.mxu0 %v2840
    %2987 = vmatprep.subr.mxu0 0.0
    %2988 = vmatpush1.msra.mxu0 %v2841
    %2989 = vmatprep.subr.mxu0 0.0
    %2990 = vmatpush1.msra.mxu0 %v2842
    %2991 = vmatprep.subr.mxu0 0.0
    %2992 = vmatpush1.msra.mxu0 %v2843
    %2993 = vmatprep.subr.mxu0 0.0
    %2994 = vmatpush1.msra.mxu0 %v2844
    %2995 = vmatprep.subr.mxu0 0.0
    %2996 = vmatpush1.msra.mxu0 %v2845
    %2997 = vmatprep.subr.mxu0 0.0
    %2998 = vmatpush1.msra.mxu0 %v2846
    %2999 = vmatprep.subr.mxu0 0.0
    %3000 = vmatpush1.msra.mxu0 %v2847
    %3001 = vmatprep.subr.mxu0 0.0
    %3002 = vmatpush1.msra.mxu0 %v2848
    %3003 = vmatprep.subr.mxu0 0.0
    %3004 = vmatpush1.msra.mxu0 %v2849
    %3005 = vmatprep.subr.mxu0 0.0
    %3006 = vmatpush1.msra.mxu0 %v2850
    %3007 = vmatprep.subr.mxu0 0.0
    %3008 = vmatpush1.msra.mxu0 %v2851
    %3009 = vmatprep.subr.mxu0 0.0
    %3010 = vmatpush1.msra.mxu0 %v2852
    %3011 = vmatprep.subr.mxu0 0.0
    %3012 = vmatpush1.msra.mxu0 %v2853
    %3013 = vmatprep.subr.mxu0 0.0
    %3014 = vmatpush1.msra.mxu0 %v2854
    %3015 = vmatprep.subr.mxu0 0.0
    %3016 = vmatpush1.msra.mxu0 %v2855
    %3017 = vmatprep.subr.mxu0 0.0
    %3018 = vmatpush1.msra.mxu0 %v2856
    %3019 = vmatprep.subr.mxu0 0.0
    %3020 = vmatpush1.msra.mxu0 %v2857
    %3021 = vmatprep.subr.mxu0 0.0
    %3022 = vmatpush1.msra.mxu0 %v2858
    %3023 = vmatprep.subr.mxu0 0.0
    %3024 = vmatpush1.msra.mxu0 %v2859
    %3025 = vmatprep.subr.mxu0 0.0
    %3026 = vmatpush1.msra.mxu0 %v2860
    %3027 = vmatprep.subr.mxu0 0.0
    %3028 = vmatpush1.msra.mxu0 %v2861
    %3029 = vmatprep.subr.mxu0 0.0
    %3030 = vmatpush1.msra.mxu0 %v2862
    %3031 = vmatprep.subr.mxu0 0.0
    %3032 = vmatpush1.msra.mxu0 %v2863
    %3033 = vmatprep.subr.mxu0 0.0
    %3034 = vmatpush1.msra.mxu0 %v2864
    %3035 = vmatprep.subr.mxu0 0.0
    %3036 = vmatpush1.msra.mxu0 %v2865
    %3037 = vmatprep.subr.mxu0 0.0
    %3038 = vmatpush1.msra.mxu0 %v2866
    %3039 = vmatprep.subr.mxu0 0.0
    %3040 = vmatpush1.msra.mxu0 %v2867
    %3041 = vmatprep.subr.mxu0 0.0
    %3042 = vmatpush1.msra.mxu0 %v2868
    %3043 = vmatprep.subr.mxu0 0.0
    %3044 = vmatpush1.msra.mxu0 %v2869
    %3045 = vmatprep.subr.mxu0 0.0
    %3046 = vmatpush1.msra.mxu0 %v2870
    %3047 = vmatprep.subr.mxu0 0.0
    %3048 = vmatpush1.msra.mxu0 %v2871
    %3049 = vmatprep.mubr.f32.mxu0 %v2984
    %3050 = vmatmul.mubr.f32.gmra.mrb[0].mxu0 %v2982
    %v3051 = vpop.f32.mrb[0].mxu0
    %v3052 = vadd.f32 0.0, %v3051
    %v3053 = vpop.f32.mrb[0].mxu0
    %3054 = vdwg.mxu0
    %v3056 = vsel %vm60, %v2818, 0
    %v3059 = vsel %vm60, %v2823, 0
    %v3062 = vsel %vm60, %v2828, 0
    %v3065 = vsel %vm60, %v2833, 0
    %3067 = vmatprep.subr.mxu0 %v2838
    %3068 = vmatpush1.msra.mxu0 %v2837
    %3069 = vmatprep.subr.mxu0 0.0
    %3070 = vmatpush1.msra.mxu0 0.0
    %3071 = vmatprep.subr.mxu0 0.0
    %3072 = vmatpush1.msra.mxu0 0.0
    %3073 = vmatprep.subr.mxu0 0.0
    %3074 = vmatpush1.msra.mxu0 0.0
    %3075 = vmatprep.subr.mxu0 0.0
    %3076 = vmatpush1.msra.mxu0 0.0
    %3077 = vmatprep.subr.mxu0 0.0
    %3078 = vmatpush1.msra.mxu0 0.0
    %3079 = vmatprep.subr.mxu0 0.0
    %3080 = vmatpush1.msra.mxu0 0.0
    %3081 = vmatprep.subr.mxu0 0.0
    %3082 = vmatpush1.msra.mxu0 0.0
    %3083 = vmatprep.subr.mxu0 0.0
    %3084 = vmatpush1.msra.mxu0 0.0
    %3085 = vmatprep.subr.mxu0 0.0
    %3086 = vmatpush1.msra.mxu0 0.0
    %3087 = vmatprep.subr.mxu0 0.0
    %3088 = vmatpush1.msra.mxu0 0.0
    %3089 = vmatprep.subr.mxu0 0.0
    %3090 = vmatpush1.msra.mxu0 0.0
    %3091 = vmatprep.subr.mxu0 0.0
    %3092 = vmatpush1.msra.mxu0 0.0
    %3093 = vmatprep.subr.mxu0 0.0
    %3094 = vmatpush1.msra.mxu0 0.0
    %3095 = vmatprep.subr.mxu0 0.0
    %3096 = vmatpush1.msra.mxu0 0.0
    %3097 = vmatprep.subr.mxu0 0.0
    %3098 = vmatpush1.msra.mxu0 0.0
    %3099 = vmatprep.subr.mxu0 0.0
    %3100 = vmatpush1.msra.mxu0 0.0
    %3101 = vmatprep.subr.mxu0 0.0
    %3102 = vmatpush1.msra.mxu0 0.0
    %3103 = vmatprep.subr.mxu0 0.0
    %3104 = vmatpush1.msra.mxu0 0.0
    %3105 = vmatprep.subr.mxu0 0.0
    %3106 = vmatpush1.msra.mxu0 0.0
    %3107 = vmatprep.subr.mxu0 0.0
    %3108 = vmatpush1.msra.mxu0 0.0
    %3109 = vmatprep.subr.mxu0 0.0
    %3110 = vmatpush1.msra.mxu0 0.0
    %3111 = vmatprep.subr.mxu0 0.0
    %3112 = vmatpush1.msra.mxu0 0.0
    %3113 = vmatprep.subr.mxu0 0.0
    %3114 = vmatpush1.msra.mxu0 0.0
    %3115 = vmatprep.subr.mxu0 0.0
    %3116 = vmatpush1.msra.mxu0 0.0
    %3117 = vmatprep.subr.mxu0 0.0
    %3118 = vmatpush1.msra.mxu0 0.0
    %3119 = vmatprep.subr.mxu0 0.0
    %3120 = vmatpush1.msra.mxu0 0.0
    %3121 = vmatprep.subr.mxu0 0.0
    %3122 = vmatpush1.msra.mxu0 0.0
    %3123 = vmatprep.subr.mxu0 0.0
    %3124 = vmatpush1.msra.mxu0 0.0
    %3125 = vmatprep.subr.mxu0 0.0
    %3126 = vmatpush1.msra.mxu0 0.0
    %3127 = vmatprep.subr.mxu0 0.0
    %3128 = vmatpush1.msra.mxu0 0.0
    %3129 = vmatprep.subr.mxu0 0.0
    %3130 = vmatpush1.msra.mxu0 0.0
    %3131 = vmatprep.mubr.f32.mxu0 0.0
    %3132 = vmatmul.mubr.f32.gmra.mrb[0].mxu0 %v3056
    %v3133 = vpop.f32.mrb[0].mxu0
    %v3134 = vadd.f32 0.0, %v3133
    %v3135 = vpop.f32.mrb[0].mxu0
    %v3136 = vadd.f32 0.0, %v3135
    %3137 = vmatprep.mubr.f32.mxu0 0.0
    %3138 = vmatmul.mubr.f32.gmra.mrb[0].mxu0 %v3059
    %v3139 = vpop.f32.mrb[0].mxu0
    %v3140 = vadd.f32 0.0, %v3139
    %v3141 = vpop.f32.mrb[0].mxu0
    %v3142 = vadd.f32 0.0, %v3141
    %3143 = vmatprep.mubr.f32.mxu0 0.0
    %3144 = vmatmul.mubr.f32.gmra.mrb[0].mxu0 %v3062
    %v3145 = vpop.f32.mrb[0].mxu0
    %v3146 = vadd.f32 0.0, %v3145
    %v3147 = vpop.f32.mrb[0].mxu0
    %v3148 = vadd.f32 0.0, %v3147
    %3149 = vmatprep.mubr.f32.mxu0 0.0
    %3150 = vmatmul.mubr.f32.gmra.mrb[0].mxu0 %v3065
    %v3151 = vpop.f32.mrb[0].mxu0
    %v3152 = vadd.f32 0.0, %v3151
    %v3153 = vpop.f32.mrb[0].mxu0
    %v3154 = vadd.f32 0.0, %v3153
    %3155 = vdwg.mxu0
    %v3158 = vunpack.c.l.s4 1966171168
    %v3159 = vunpack.c.0.s8 %v3158
    %v3160 = vlaneseq
    %v3161 = vshrl.u32 %v3160, 7
    %v3162 = vsub.s32 %v3159, %v3161
    %v3163 = vrot.slane %v2979, %v3162
    %v3164 = vcombine.high %v3163, %v3163
    %v3166 = vunpack.c.l.s4 1966171168
    %v3167 = vunpack.c.0.s8 %v3166
    %v3168 = vlaneseq
    %v3169 = vshrl.u32 %v3168, 7
    %v3170 = vsub.s32 %v3167, %v3169
    %v3171 = vrot.slane %v3163, %v3170
    %v3173 = vunpack.c.l.s4 1966171168
    %v3174 = vunpack.c.0.s8 %v3173
    %v3175 = vlaneseq
    %v3176 = vshrl.u32 %v3175, 7
    %v3177 = vsub.s32 %v3174, %v3176
    %v3178 = vrot.slane %v3164, %v3177
    %v3179 = vcombine.high %v3171, %v3171
    %v3180 = vcombine.high %v3178, %v3178
    %v3181 = vlaneseq
    %v3182 = vshrl.u32 %v3181, 7
    %v3183 = vsub.s32 0, %v3182
    %v3184 = vrot.slane %v3171, %v3183
    %v3185 = vlaneseq
    %v3186 = vshrl.u32 %v3185, 7
    %v3187 = vsub.s32 0, %v3186
    %v3188 = vrot.slane %v3178, %v3187
    %v3189 = vlaneseq
    %v3190 = vshrl.u32 %v3189, 7
    %v3191 = vsub.s32 0, %v3190
    %v3192 = vrot.slane %v3179, %v3191
    %v3193 = vlaneseq
    %v3194 = vshrl.u32 %v3193, 7
    %v3195 = vsub.s32 0, %v3194
    %v3196 = vrot.slane %v3180, %v3195
    %v3201 = vsub.f32 %v3134, %v3136
    %v3202 = vsub.f32 %v3140, %v3142
    %v3203 = vsub.f32 %v3146, %v3148
    %v3204 = vsub.f32 %v3152, %v3154
    %v3205 = vmul.f32 %v3184, %v3201
    %v3206 = vmul.f32 %v3188, %v3202
    %v3207 = vmul.f32 %v3192, %v3203
    %v3208 = vmul.f32 %v3196, %v3204
    %v3209 = vadd.f32 %v3136, %v3205
    %v3210 = vadd.f32 %v3142, %v3206
    %v3211 = vadd.f32 %v3148, %v3207
    %v3212 = vadd.f32 %v3154, %v3208
    %v3213 = vadd.f32 %v3134, %v3136
    %v3214 = vadd.f32 %v3140, %v3142
    %v3215 = vadd.f32 %v3146, %v3148
    %v3216 = vadd.f32 %v3152, %v3154
    %v3217 = vsub.f32 %v3213, %v3209
    %v3218 = vsub.f32 %v3214, %v3210
    %v3219 = vsub.f32 %v3215, %v3211
    %v3220 = vsub.f32 %v3216, %v3212
    %3221 = vmatprep.subr.mxu0 0.0
    %3222 = vmatpush1.msra.mxu0 %v2840
    %3223 = vmatprep.subr.mxu0 0.0
    %3224 = vmatpush1.msra.mxu0 %v2841
    %3225 = vmatprep.subr.mxu0 0.0
    %3226 = vmatpush1.msra.mxu0 %v2842
    %3227 = vmatprep.subr.mxu0 0.0
    %3228 = vmatpush1.msra.mxu0 %v2843
    %3229 = vmatprep.subr.mxu0 0.0
    %3230 = vmatpush1.msra.mxu0 %v2844
    %3231 = vmatprep.subr.mxu0 0.0
    %3232 = vmatpush1.msra.mxu0 %v2845
    %3233 = vmatprep.subr.mxu0 0.0
    %3234 = vmatpush1.msra.mxu0 %v2846
    %3235 = vmatprep.subr.mxu0 0.0
    %3236 = vmatpush1.msra.mxu0 %v2847
    %3237 = vmatprep.subr.mxu0 0.0
    %3238 = vmatpush1.msra.mxu0 %v2848
    %3239 = vmatprep.subr.mxu0 0.0
    %3240 = vmatpush1.msra.mxu0 %v2849
    %3241 = vmatprep.subr.mxu0 0.0
    %3242 = vmatpush1.msra.mxu0 %v2850
    %3243 = vmatprep.subr.mxu0 0.0
    %3244 = vmatpush1.msra.mxu0 %v2851
    %3245 = vmatprep.subr.mxu0 0.0
    %3246 = vmatpush1.msra.mxu0 %v2852
    %3247 = vmatprep.subr.mxu0 0.0
    %3248 = vmatpush1.msra.mxu0 %v2853
    %3249 = vmatprep.subr.mxu0 0.0
    %3250 = vmatpush1.msra.mxu0 %v2854
    %3251 = vmatprep.subr.mxu0 0.0
    %3252 = vmatpush1.msra.mxu0 %v2855
    %3253 = vmatprep.subr.mxu0 0.0
    %3254 = vmatpush1.msra.mxu0 %v2856
    %3255 = vmatprep.subr.mxu0 0.0
    %3256 = vmatpush1.msra.mxu0 %v2857
    %3257 = vmatprep.subr.mxu0 0.0
    %3258 = vmatpush1.msra.mxu0 %v2858
    %3259 = vmatprep.subr.mxu0 0.0
    %3260 = vmatpush1.msra.mxu0 %v2859
    %3261 = vmatprep.subr.mxu0 0.0
    %3262 = vmatpush1.msra.mxu0 %v2860
    %3263 = vmatprep.subr.mxu0 0.0
    %3264 = vmatpush1.msra.mxu0 %v2861
    %3265 = vmatprep.subr.mxu0 0.0
    %3266 = vmatpush1.msra.mxu0 %v2862
    %3267 = vmatprep.subr.mxu0 0.0
    %3268 = vmatpush1.msra.mxu0 %v2863
    %3269 = vmatprep.subr.mxu0 0.0
    %3270 = vmatpush1.msra.mxu0 %v2864
    %3271 = vmatprep.subr.mxu0 0.0
    %3272 = vmatpush1.msra.mxu0 %v2865
    %3273 = vmatprep.subr.mxu0 0.0
    %3274 = vmatpush1.msra.mxu0 %v2866
    %3275 = vmatprep.subr.mxu0 0.0
    %3276 = vmatpush1.msra.mxu0 %v2867
    %3277 = vmatprep.subr.mxu0 0.0
    %3278 = vmatpush1.msra.mxu0 %v2868
    %3279 = vmatprep.subr.mxu0 0.0
    %3280 = vmatpush1.msra.mxu0 %v2869
    %3281 = vmatprep.subr.mxu0 0.0
    %3282 = vmatpush1.msra.mxu0 %v2870
    %3283 = vmatprep.subr.mxu0 0.0
    %3284 = vmatpush1.msra.mxu0 %v2871
    %3285 = vmatprep.mubr.f32.mxu0 %v3217
    %3286 = vmatmul.mubr.f32.gmra.mrb[0].mxu0 %v3209
    %v3287 = vpop.f32.mrb[0].mxu0
    %v3288 = vadd.f32 0.0, %v3287
    %v3289 = vpop.f32.mrb[0].mxu0
    %3290 = vmatprep.mubr.f32.mxu0 %v3218
    %3291 = vmatmul.mubr.f32.gmra.mrb[0].mxu0 %v3210
    %v3292 = vpop.f32.mrb[0].mxu0
    %v3293 = vadd.f32 0.0, %v3292
    %v3294 = vpop.f32.mrb[0].mxu0
    %3295 = vmatprep.mubr.f32.mxu0 %v3219
    %3296 = vmatmul.mubr.f32.gmra.mrb[0].mxu0 %v3211
    %v3297 = vpop.f32.mrb[0].mxu0
    %v3298 = vadd.f32 0.0, %v3297
    %v3299 = vpop.f32.mrb[0].mxu0
    %3300 = vmatprep.mubr.f32.mxu0 %v3220
    %3301 = vmatmul.mubr.f32.gmra.mrb[0].mxu0 %v3212
    %v3302 = vpop.f32.mrb[0].mxu0
    %v3303 = vadd.f32 0.0, %v3302
    %v3304 = vpop.f32.mrb[0].mxu0
    %3305 = vdwg.mxu0
    %s3306 = scalar_lea.vmem %s1, 112
    %v3307 = vld [vmem:[%s3306] sm:$0xff]
    %v3308 = vld [vmem:[%s3306 + $0x8] sm:$0xff]
    %s3309 = scalar_lea.vmem %s2, 1792
    %v3310 = vld [vmem:[%s3309] sm:$0xff]
    %v3311 = vld [vmem:[%s3309 + $0x8] sm:$0xff]
    %v3312 = vld [vmem:[%s3309 + $0x10] sm:$0xff]
    %v3313 = vld [vmem:[%s3309 + $0x18] sm:$0xff]
    %v3314 = vld [vmem:[%s3309 + $0x20] sm:$0xff]
    %v3315 = vld [vmem:[%s3309 + $0x28] sm:$0xff]
    %v3316 = vld [vmem:[%s3309 + $0x30] sm:$0xff]
    %v3317 = vld [vmem:[%s3309 + $0x38] sm:$0xff]
    %v3318 = vld [vmem:[%s3309 + $0x40] sm:$0xff]
    %v3319 = vld [vmem:[%s3309 + $0x48] sm:$0xff]
    %v3320 = vld [vmem:[%s3309 + $0x50] sm:$0xff]
    %v3321 = vld [vmem:[%s3309 + $0x58] sm:$0xff]
    %v3322 = vld [vmem:[%s3309 + $0x60] sm:$0xff]
    %v3323 = vld [vmem:[%s3309 + $0x68] sm:$0xff]
    %v3324 = vld [vmem:[%s3309 + $0x70] sm:$0xff]
    %v3325 = vld [vmem:[%s3309 + $0x78] sm:$0xff]
    %v3326 = vld [vmem:[%s3309 + $0x80] sm:$0xff]
    %v3327 = vld [vmem:[%s3309 + $0x88] sm:$0xff]
    %v3328 = vld [vmem:[%s3309 + $0x90] sm:$0xff]
    %v3329 = vld [vmem:[%s3309 + $0x98] sm:$0xff]
    %v3330 = vld [vmem:[%s3309 + $0xa0] sm:$0xff]
    %v3331 = vld [vmem:[%s3309 + $0xa8] sm:$0xff]
    %v3332 = vld [vmem:[%s3309 + $0xb0] sm:$0xff]
    %v3333 = vld [vmem:[%s3309 + $0xb8] sm:$0xff]
    %v3334 = vld [vmem:[%s3309 + $0xc0] sm:$0xff]
    %v3335 = vld [vmem:[%s3309 + $0xc8] sm:$0xff]
    %v3336 = vld [vmem:[%s3309 + $0xd0] sm:$0xff]
    %v3337 = vld [vmem:[%s3309 + $0xd8] sm:$0xff]
    %v3338 = vld [vmem:[%s3309 + $0xe0] sm:$0xff]
    %v3339 = vld [vmem:[%s3309 + $0xe8] sm:$0xff]
    %v3340 = vld [vmem:[%s3309 + $0xf0] sm:$0xff]
    %v3341 = vld [vmem:[%s3309 + $0xf8] sm:$0xff]
    %v3343 = vsel %vm60, %v3052, 0
    %3345 = vmatprep.subr.mxu0 %v3308
    %3346 = vmatpush1.msra.mxu0 %v3307
    %3347 = vmatprep.subr.mxu0 0.0
    %3348 = vmatpush1.msra.mxu0 0.0
    %3349 = vmatprep.subr.mxu0 0.0
    %3350 = vmatpush1.msra.mxu0 0.0
    %3351 = vmatprep.subr.mxu0 0.0
    %3352 = vmatpush1.msra.mxu0 0.0
    %3353 = vmatprep.subr.mxu0 0.0
    %3354 = vmatpush1.msra.mxu0 0.0
    %3355 = vmatprep.subr.mxu0 0.0
    %3356 = vmatpush1.msra.mxu0 0.0
    %3357 = vmatprep.subr.mxu0 0.0
    %3358 = vmatpush1.msra.mxu0 0.0
    %3359 = vmatprep.subr.mxu0 0.0
    %3360 = vmatpush1.msra.mxu0 0.0
    %3361 = vmatprep.subr.mxu0 0.0
    %3362 = vmatpush1.msra.mxu0 0.0
    %3363 = vmatprep.subr.mxu0 0.0
    %3364 = vmatpush1.msra.mxu0 0.0
    %3365 = vmatprep.subr.mxu0 0.0
    %3366 = vmatpush1.msra.mxu0 0.0
    %3367 = vmatprep.subr.mxu0 0.0
    %3368 = vmatpush1.msra.mxu0 0.0
    %3369 = vmatprep.subr.mxu0 0.0
    %3370 = vmatpush1.msra.mxu0 0.0
    %3371 = vmatprep.subr.mxu0 0.0
    %3372 = vmatpush1.msra.mxu0 0.0
    %3373 = vmatprep.subr.mxu0 0.0
    %3374 = vmatpush1.msra.mxu0 0.0
    %3375 = vmatprep.subr.mxu0 0.0
    %3376 = vmatpush1.msra.mxu0 0.0
    %3377 = vmatprep.subr.mxu0 0.0
    %3378 = vmatpush1.msra.mxu0 0.0
    %3379 = vmatprep.subr.mxu0 0.0
    %3380 = vmatpush1.msra.mxu0 0.0
    %3381 = vmatprep.subr.mxu0 0.0
    %3382 = vmatpush1.msra.mxu0 0.0
    %3383 = vmatprep.subr.mxu0 0.0
    %3384 = vmatpush1.msra.mxu0 0.0
    %3385 = vmatprep.subr.mxu0 0.0
    %3386 = vmatpush1.msra.mxu0 0.0
    %3387 = vmatprep.subr.mxu0 0.0
    %3388 = vmatpush1.msra.mxu0 0.0
    %3389 = vmatprep.subr.mxu0 0.0
    %3390 = vmatpush1.msra.mxu0 0.0
    %3391 = vmatprep.subr.mxu0 0.0
    %3392 = vmatpush1.msra.mxu0 0.0
    %3393 = vmatprep.subr.mxu0 0.0
    %3394 = vmatpush1.msra.mxu0 0.0
    %3395 = vmatprep.subr.mxu0 0.0
    %3396 = vmatpush1.msra.mxu0 0.0
    %3397 = vmatprep.subr.mxu0 0.0
    %3398 = vmatpush1.msra.mxu0 0.0
    %3399 = vmatprep.subr.mxu0 0.0
    %3400 = vmatpush1.msra.mxu0 0.0
    %3401 = vmatprep.subr.mxu0 0.0
    %3402 = vmatpush1.msra.mxu0 0.0
    %3403 = vmatprep.subr.mxu0 0.0
    %3404 = vmatpush1.msra.mxu0 0.0
    %3405 = vmatprep.subr.mxu0 0.0
    %3406 = vmatpush1.msra.mxu0 0.0
    %3407 = vmatprep.subr.mxu0 0.0
    %3408 = vmatpush1.msra.mxu0 0.0
    %3409 = vmatprep.mubr.f32.mxu0 0.0
    %3410 = vmatmul.mubr.f32.gmra.mrb[0].mxu0 %v3343
    %v3411 = vpop.f32.mrb[0].mxu0
    %v3412 = vadd.f32 0.0, %v3411
    %v3413 = vpop.f32.mrb[0].mxu0
    %v3414 = vadd.f32 0.0, %v3413
    %3415 = vdwg.mxu0
    %v3416 = vsub.f32 %v3414, %v3412
    %v3417 = vmul.f32 %v3416, 10.0
    %vm3418 = vcmp.lt.f32.partialorder %v3417, 0.0
    %v3419 = vsel %vm3418, -1.0, 1.0
    %v3420 = vand.u32 2147483647, %v3417
    %vm3421 = vcmp.gt.f32.partialorder %v3420, 2.4142137
    %vm3422 = vcmp.gt.f32.partialorder %v3420, 0.41421357
    %vm3423 = vmxor %vm3421, 1
    %vm3424 = vmand %vm3422, %vm3423
    %v3425 = vmax.f32 %v3420, 1.0
    %v3426 = vrcp.pop %v3425
    %v3427 = vmul.f32 -1.0, %v3426
    %v3428 = vsub.f32 %v3420, 1.0
    %v3429 = vadd.f32 %v3420, 1.0
    %v3430 = vrcp.pop %v3429
    %v3431 = vmul.f32 %v3428, %v3430
    %v3432 = vsel %vm3424, %v3431, %v3420
    %v3433 = vsel %vm3421, %v3427, %v3432
    %v3434 = vsel %vm3424, 0.7853982, 0.0
    %v3435 = vsel %vm3421, 1.5707964, %v3434
    %v3436 = vmul.f32 %v3433, %v3433
    %v3437 = vmul.f32 %v3436, 0.080537446
    %v3438 = vsub.f32 %v3437, 0.13877685
    %v3439 = vmul.f32 %v3438, %v3436
    %v3440 = vadd.f32 %v3439, 0.19977711
    %v3441 = vmul.f32 %v3440, %v3436
    %v3442 = vsub.f32 %v3441, 0.3333295
    %v3443 = vmul.f32 %v3442, %v3436
    %v3444 = vmul.f32 %v3443, %v3433
    %v3445 = vadd.f32 %v3444, %v3433
    %v3446 = vadd.f32 %v3435, %v3445
    %v3447 = vmul.f32 %v3419, %v3446
    %v3448 = vmul.f32 %v3447, 0.31830987
    %v3449 = vadd.f32 %v3448, 0.5
    %v3450 = vsub.f32 %v3412, %v3414
    %v3451 = vmul.f32 %v3449, %v3450
    %v3452 = vadd.f32 %v3414, %v3451
    %v3453 = vadd.f32 %v3412, %v3414
    %v3454 = vsub.f32 %v3453, %v3452
    %3455 = vmatprep.subr.mxu0 0.0
    %3456 = vmatpush1.msra.mxu0 %v3310
    %3457 = vmatprep.subr.mxu0 0.0
    %3458 = vmatpush1.msra.mxu0 %v3311
    %3459 = vmatprep.subr.mxu0 0.0
    %3460 = vmatpush1.msra.mxu0 %v3312
    %3461 = vmatprep.subr.mxu0 0.0
    %3462 = vmatpush1.msra.mxu0 %v3313
    %3463 = vmatprep.subr.mxu0 0.0
    %3464 = vmatpush1.msra.mxu0 %v3314
    %3465 = vmatprep.subr.mxu0 0.0
    %3466 = vmatpush1.msra.mxu0 %v3315
    %3467 = vmatprep.subr.mxu0 0.0
    %3468 = vmatpush1.msra.mxu0 %v3316
    %3469 = vmatprep.subr.mxu0 0.0
    %3470 = vmatpush1.msra.mxu0 %v3317
    %3471 = vmatprep.subr.mxu0 0.0
    %3472 = vmatpush1.msra.mxu0 %v3318
    %3473 = vmatprep.subr.mxu0 0.0
    %3474 = vmatpush1.msra.mxu0 %v3319
    %3475 = vmatprep.subr.mxu0 0.0
    %3476 = vmatpush1.msra.mxu0 %v3320
    %3477 = vmatprep.subr.mxu0 0.0
    %3478 = vmatpush1.msra.mxu0 %v3321
    %3479 = vmatprep.subr.mxu0 0.0
    %3480 = vmatpush1.msra.mxu0 %v3322
    %3481 = vmatprep.subr.mxu0 0.0
    %3482 = vmatpush1.msra.mxu0 %v3323
    %3483 = vmatprep.subr.mxu0 0.0
    %3484 = vmatpush1.msra.mxu0 %v3324
    %3485 = vmatprep.subr.mxu0 0.0
    %3486 = vmatpush1.msra.mxu0 %v3325
    %3487 = vmatprep.subr.mxu0 0.0
    %3488 = vmatpush1.msra.mxu0 %v3326
    %3489 = vmatprep.subr.mxu0 0.0
    %3490 = vmatpush1.msra.mxu0 %v3327
    %3491 = vmatprep.subr.mxu0 0.0
    %3492 = vmatpush1.msra.mxu0 %v3328
    %3493 = vmatprep.subr.mxu0 0.0
    %3494 = vmatpush1.msra.mxu0 %v3329
    %3495 = vmatprep.subr.mxu0 0.0
    %3496 = vmatpush1.msra.mxu0 %v3330
    %3497 = vmatprep.subr.mxu0 0.0
    %3498 = vmatpush1.msra.mxu0 %v3331
    %3499 = vmatprep.subr.mxu0 0.0
    %3500 = vmatpush1.msra.mxu0 %v3332
    %3501 = vmatprep.subr.mxu0 0.0
    %3502 = vmatpush1.msra.mxu0 %v3333
    %3503 = vmatprep.subr.mxu0 0.0
    %3504 = vmatpush1.msra.mxu0 %v3334
    %3505 = vmatprep.subr.mxu0 0.0
    %3506 = vmatpush1.msra.mxu0 %v3335
    %3507 = vmatprep.subr.mxu0 0.0
    %3508 = vmatpush1.msra.mxu0 %v3336
    %3509 = vmatprep.subr.mxu0 0.0
    %3510 = vmatpush1.msra.mxu0 %v3337
    %3511 = vmatprep.subr.mxu0 0.0
    %3512 = vmatpush1.msra.mxu0 %v3338
    %3513 = vmatprep.subr.mxu0 0.0
    %3514 = vmatpush1.msra.mxu0 %v3339
    %3515 = vmatprep.subr.mxu0 0.0
    %3516 = vmatpush1.msra.mxu0 %v3340
    %3517 = vmatprep.subr.mxu0 0.0
    %3518 = vmatpush1.msra.mxu0 %v3341
    %3519 = vmatprep.mubr.f32.mxu0 %v3454
    %3520 = vmatmul.mubr.f32.gmra.mrb[0].mxu0 %v3452
    %v3521 = vpop.f32.mrb[0].mxu0
    %v3522 = vadd.f32 0.0, %v3521
    %v3523 = vpop.f32.mrb[0].mxu0
    %3524 = vdwg.mxu0
    %v3526 = vsel %vm60, %v3288, 0
    %v3529 = vsel %vm60, %v3293, 0
    %v3532 = vsel %vm60, %v3298, 0
    %v3535 = vsel %vm60, %v3303, 0
    %3537 = vmatprep.subr.mxu0 %v3308
    %3538 = vmatpush1.msra.mxu0 %v3307
    %3539 = vmatprep.subr.mxu0 0.0
    %3540 = vmatpush1.msra.mxu0 0.0
    %3541 = vmatprep.subr.mxu0 0.0
    %3542 = vmatpush1.msra.mxu0 0.0
    %3543 = vmatprep.subr.mxu0 0.0
    %3544 = vmatpush1.msra.mxu0 0.0
    %3545 = vmatprep.subr.mxu0 0.0
    %3546 = vmatpush1.msra.mxu0 0.0
    %3547 = vmatprep.subr.mxu0 0.0
    %3548 = vmatpush1.msra.mxu0 0.0
    %3549 = vmatprep.subr.mxu0 0.0
    %3550 = vmatpush1.msra.mxu0 0.0
    %3551 = vmatprep.subr.mxu0 0.0
    %3552 = vmatpush1.msra.mxu0 0.0
    %3553 = vmatprep.subr.mxu0 0.0
    %3554 = vmatpush1.msra.mxu0 0.0
    %3555 = vmatprep.subr.mxu0 0.0
    %3556 = vmatpush1.msra.mxu0 0.0
    %3557 = vmatprep.subr.mxu0 0.0
    %3558 = vmatpush1.msra.mxu0 0.0
    %3559 = vmatprep.subr.mxu0 0.0
    %3560 = vmatpush1.msra.mxu0 0.0
    %3561 = vmatprep.subr.mxu0 0.0
    %3562 = vmatpush1.msra.mxu0 0.0
    %3563 = vmatprep.subr.mxu0 0.0
    %3564 = vmatpush1.msra.mxu0 0.0
    %3565 = vmatprep.subr.mxu0 0.0
    %3566 = vmatpush1.msra.mxu0 0.0
    %3567 = vmatprep.subr.mxu0 0.0
    %3568 = vmatpush1.msra.mxu0 0.0
    %3569 = vmatprep.subr.mxu0 0.0
    %3570 = vmatpush1.msra.mxu0 0.0
    %3571 = vmatprep.subr.mxu0 0.0
    %3572 = vmatpush1.msra.mxu0 0.0
    %3573 = vmatprep.subr.mxu0 0.0
    %3574 = vmatpush1.msra.mxu0 0.0
    %3575 = vmatprep.subr.mxu0 0.0
    %3576 = vmatpush1.msra.mxu0 0.0
    %3577 = vmatprep.subr.mxu0 0.0
    %3578 = vmatpush1.msra.mxu0 0.0
    %3579 = vmatprep.subr.mxu0 0.0
    %3580 = vmatpush1.msra.mxu0 0.0
    %3581 = vmatprep.subr.mxu0 0.0
    %3582 = vmatpush1.msra.mxu0 0.0
    %3583 = vmatprep.subr.mxu0 0.0
    %3584 = vmatpush1.msra.mxu0 0.0
    %3585 = vmatprep.subr.mxu0 0.0
    %3586 = vmatpush1.msra.mxu0 0.0
    %3587 = vmatprep.subr.mxu0 0.0
    %3588 = vmatpush1.msra.mxu0 0.0
    %3589 = vmatprep.subr.mxu0 0.0
    %3590 = vmatpush1.msra.mxu0 0.0
    %3591 = vmatprep.subr.mxu0 0.0
    %3592 = vmatpush1.msra.mxu0 0.0
    %3593 = vmatprep.subr.mxu0 0.0
    %3594 = vmatpush1.msra.mxu0 0.0
    %3595 = vmatprep.subr.mxu0 0.0
    %3596 = vmatpush1.msra.mxu0 0.0
    %3597 = vmatprep.subr.mxu0 0.0
    %3598 = vmatpush1.msra.mxu0 0.0
    %3599 = vmatprep.subr.mxu0 0.0
    %3600 = vmatpush1.msra.mxu0 0.0
    %3601 = vmatprep.mubr.f32.mxu0 0.0
    %3602 = vmatmul.mubr.f32.gmra.mrb[0].mxu0 %v3526
    %v3603 = vpop.f32.mrb[0].mxu0
    %v3604 = vadd.f32 0.0, %v3603
    %v3605 = vpop.f32.mrb[0].mxu0
    %v3606 = vadd.f32 0.0, %v3605
    %3607 = vmatprep.mubr.f32.mxu0 0.0
    %3608 = vmatmul.mubr.f32.gmra.mrb[0].mxu0 %v3529
    %v3609 = vpop.f32.mrb[0].mxu0
    %v3610 = vadd.f32 0.0, %v3609
    %v3611 = vpop.f32.mrb[0].mxu0
    %v3612 = vadd.f32 0.0, %v3611
    %3613 = vmatprep.mubr.f32.mxu0 0.0
    %3614 = vmatmul.mubr.f32.gmra.mrb[0].mxu0 %v3532
    %v3615 = vpop.f32.mrb[0].mxu0
    %v3616 = vadd.f32 0.0, %v3615
    %v3617 = vpop.f32.mrb[0].mxu0
    %v3618 = vadd.f32 0.0, %v3617
    %3619 = vmatprep.mubr.f32.mxu0 0.0
    %3620 = vmatmul.mubr.f32.gmra.mrb[0].mxu0 %v3535
    %v3621 = vpop.f32.mrb[0].mxu0
    %v3622 = vadd.f32 0.0, %v3621
    %v3623 = vpop.f32.mrb[0].mxu0
    %v3624 = vadd.f32 0.0, %v3623
    %3625 = vdwg.mxu0
    %v3628 = vunpack.c.l.s4 1966171168
    %v3629 = vunpack.c.0.s8 %v3628
    %v3630 = vlaneseq
    %v3631 = vshrl.u32 %v3630, 7
    %v3632 = vsub.s32 %v3629, %v3631
    %v3633 = vrot.slane %v3449, %v3632
    %v3634 = vcombine.high %v3633, %v3633
    %v3636 = vunpack.c.l.s4 1966171168
    %v3637 = vunpack.c.0.s8 %v3636
    %v3638 = vlaneseq
    %v3639 = vshrl.u32 %v3638, 7
    %v3640 = vsub.s32 %v3637, %v3639
    %v3641 = vrot.slane %v3633, %v3640
    %v3643 = vunpack.c.l.s4 1966171168
    %v3644 = vunpack.c.0.s8 %v3643
    %v3645 = vlaneseq
    %v3646 = vshrl.u32 %v3645, 7
    %v3647 = vsub.s32 %v3644, %v3646
    %v3648 = vrot.slane %v3634, %v3647
    %v3649 = vcombine.high %v3641, %v3641
    %v3650 = vcombine.high %v3648, %v3648
    %v3651 = vlaneseq
    %v3652 = vshrl.u32 %v3651, 7
    %v3653 = vsub.s32 0, %v3652
    %v3654 = vrot.slane %v3641, %v3653
    %v3655 = vlaneseq
    %v3656 = vshrl.u32 %v3655, 7
    %v3657 = vsub.s32 0, %v3656
    %v3658 = vrot.slane %v3648, %v3657
    %v3659 = vlaneseq
    %v3660 = vshrl.u32 %v3659, 7
    %v3661 = vsub.s32 0, %v3660
    %v3662 = vrot.slane %v3649, %v3661
    %v3663 = vlaneseq
    %v3664 = vshrl.u32 %v3663, 7
    %v3665 = vsub.s32 0, %v3664
    %v3666 = vrot.slane %v3650, %v3665
    %v3671 = vsub.f32 %v3604, %v3606
    %v3672 = vsub.f32 %v3610, %v3612
    %v3673 = vsub.f32 %v3616, %v3618
    %v3674 = vsub.f32 %v3622, %v3624
    %v3675 = vmul.f32 %v3654, %v3671
    %v3676 = vmul.f32 %v3658, %v3672
    %v3677 = vmul.f32 %v3662, %v3673
    %v3678 = vmul.f32 %v3666, %v3674
    %v3679 = vadd.f32 %v3606, %v3675
    %v3680 = vadd.f32 %v3612, %v3676
    %v3681 = vadd.f32 %v3618, %v3677
    %v3682 = vadd.f32 %v3624, %v3678
    %v3683 = vadd.f32 %v3604, %v3606
    %v3684 = vadd.f32 %v3610, %v3612
    %v3685 = vadd.f32 %v3616, %v3618
    %v3686 = vadd.f32 %v3622, %v3624
    %v3687 = vsub.f32 %v3683, %v3679
    %v3688 = vsub.f32 %v3684, %v3680
    %v3689 = vsub.f32 %v3685, %v3681
    %v3690 = vsub.f32 %v3686, %v3682
    %3691 = vmatprep.subr.mxu0 0.0
    %3692 = vmatpush1.msra.mxu0 %v3310
    %3693 = vmatprep.subr.mxu0 0.0
    %3694 = vmatpush1.msra.mxu0 %v3311
    %3695 = vmatprep.subr.mxu0 0.0
    %3696 = vmatpush1.msra.mxu0 %v3312
    %3697 = vmatprep.subr.mxu0 0.0
    %3698 = vmatpush1.msra.mxu0 %v3313
    %3699 = vmatprep.subr.mxu0 0.0
    %3700 = vmatpush1.msra.mxu0 %v3314
    %3701 = vmatprep.subr.mxu0 0.0
    %3702 = vmatpush1.msra.mxu0 %v3315
    %3703 = vmatprep.subr.mxu0 0.0
    %3704 = vmatpush1.msra.mxu0 %v3316
    %3705 = vmatprep.subr.mxu0 0.0
    %3706 = vmatpush1.msra.mxu0 %v3317
    %3707 = vmatprep.subr.mxu0 0.0
    %3708 = vmatpush1.msra.mxu0 %v3318
    %3709 = vmatprep.subr.mxu0 0.0
    %3710 = vmatpush1.msra.mxu0 %v3319
    %3711 = vmatprep.subr.mxu0 0.0
    %3712 = vmatpush1.msra.mxu0 %v3320
    %3713 = vmatprep.subr.mxu0 0.0
    %3714 = vmatpush1.msra.mxu0 %v3321
    %3715 = vmatprep.subr.mxu0 0.0
    %3716 = vmatpush1.msra.mxu0 %v3322
    %3717 = vmatprep.subr.mxu0 0.0
    %3718 = vmatpush1.msra.mxu0 %v3323
    %3719 = vmatprep.subr.mxu0 0.0
    %3720 = vmatpush1.msra.mxu0 %v3324
    %3721 = vmatprep.subr.mxu0 0.0
    %3722 = vmatpush1.msra.mxu0 %v3325
    %3723 = vmatprep.subr.mxu0 0.0
    %3724 = vmatpush1.msra.mxu0 %v3326
    %3725 = vmatprep.subr.mxu0 0.0
    %3726 = vmatpush1.msra.mxu0 %v3327
    %3727 = vmatprep.subr.mxu0 0.0
    %3728 = vmatpush1.msra.mxu0 %v3328
    %3729 = vmatprep.subr.mxu0 0.0
    %3730 = vmatpush1.msra.mxu0 %v3329
    %3731 = vmatprep.subr.mxu0 0.0
    %3732 = vmatpush1.msra.mxu0 %v3330
    %3733 = vmatprep.subr.mxu0 0.0
    %3734 = vmatpush1.msra.mxu0 %v3331
    %3735 = vmatprep.subr.mxu0 0.0
    %3736 = vmatpush1.msra.mxu0 %v3332
    %3737 = vmatprep.subr.mxu0 0.0
    %3738 = vmatpush1.msra.mxu0 %v3333
    %3739 = vmatprep.subr.mxu0 0.0
    %3740 = vmatpush1.msra.mxu0 %v3334
    %3741 = vmatprep.subr.mxu0 0.0
    %3742 = vmatpush1.msra.mxu0 %v3335
    %3743 = vmatprep.subr.mxu0 0.0
    %3744 = vmatpush1.msra.mxu0 %v3336
    %3745 = vmatprep.subr.mxu0 0.0
    %3746 = vmatpush1.msra.mxu0 %v3337
    %3747 = vmatprep.subr.mxu0 0.0
    %3748 = vmatpush1.msra.mxu0 %v3338
    %3749 = vmatprep.subr.mxu0 0.0
    %3750 = vmatpush1.msra.mxu0 %v3339
    %3751 = vmatprep.subr.mxu0 0.0
    %3752 = vmatpush1.msra.mxu0 %v3340
    %3753 = vmatprep.subr.mxu0 0.0
    %3754 = vmatpush1.msra.mxu0 %v3341
    %3755 = vmatprep.mubr.f32.mxu0 %v3687
    %3756 = vmatmul.mubr.f32.gmra.mrb[0].mxu0 %v3679
    %v3757 = vpop.f32.mrb[0].mxu0
    %v3758 = vadd.f32 0.0, %v3757
    %v3759 = vpop.f32.mrb[0].mxu0
    %3760 = vmatprep.mubr.f32.mxu0 %v3688
    %3761 = vmatmul.mubr.f32.gmra.mrb[0].mxu0 %v3680
    %v3762 = vpop.f32.mrb[0].mxu0
    %v3763 = vadd.f32 0.0, %v3762
    %v3764 = vpop.f32.mrb[0].mxu0
    %3765 = vmatprep.mubr.f32.mxu0 %v3689
    %3766 = vmatmul.mubr.f32.gmra.mrb[0].mxu0 %v3681
    %v3767 = vpop.f32.mrb[0].mxu0
    %v3768 = vadd.f32 0.0, %v3767
    %v3769 = vpop.f32.mrb[0].mxu0
    %3770 = vmatprep.mubr.f32.mxu0 %v3690
    %3771 = vmatmul.mubr.f32.gmra.mrb[0].mxu0 %v3682
    %v3772 = vpop.f32.mrb[0].mxu0
    %v3773 = vadd.f32 0.0, %v3772
    %v3774 = vpop.f32.mrb[0].mxu0
    %3775 = vdwg.mxu0
    %vm3776 = vcmask 60416
    %3777 = vst.msk [vmem:[#allocation2] sm:$0xf] %vm3776, %v3522
    %3778 = vst.msk [vmem:[#allocation4] sm:$0xff] %vm60, %v3758
    %3779 = vst.msk [vmem:[#allocation4 + $0x8] sm:$0xff] %vm60, %v3763
    %3780 = vst.msk [vmem:[#allocation4 + $0x10] sm:$0xff] %vm60, %v3768
    %3781 = vst.msk [vmem:[#allocation4 + $0x18] sm:$0xff] %vm60, %v3773
    // Predicated region
    $region14: #{tpu_custom_call.1} parent=1 // pred_check
      _
    $region15: #{tpu_custom_call.1} parent=1 // pred_check_branch
      %3783 = sbr.rel (0) target = $region17
    $region16: #{tpu_custom_call.1} parent=1 // pred_region
      %s3785 = ssub.s32 64, 64
      %3786 = vsyncadd [#allocation3], %s3785
      %s3788 = sshll.u32 [#allocation2], 4
      %s3789 = int_to_ptr.vmem [resolvable:$true] %s3788
      %3791 = dma.vmem_to_hbm [thread:$0]  %s3789, 64, %s3, [#allocation3]
    $region17: #{tpu_custom_call.1} parent=1 // pred_fallthru
      _
    // Predicated region
    $region18: #{tpu_custom_call.1} parent=1 // pred_check
      _
    $region19: #{tpu_custom_call.1} parent=1 // pred_check_branch
      %3793 = sbr.rel (0) target = $region21
    $region20: #{tpu_custom_call.1} parent=1 // pred_region
      %s3795 = ssub.s32 512, 512
      %3796 = vsyncadd [#allocation5], %s3795
      %s3797 = sshll.u32 [#allocation4], 4
      %s3798 = int_to_ptr.vmem [resolvable:$true] %s3797
      %3803 = dma.vmem_to_hbm [thread:$0]  %s3798, 512, %s4, [#allocation5], 128, 128, 8
    $region21: #{tpu_custom_call.1} parent=1 // pred_fallthru
      _
    // Predicated region
    $region22: #{tpu_custom_call.1} parent=1 // pred_check
      _
    $region23: #{tpu_custom_call.1} parent=1 // pred_check_branch
      %3805 = sbr.rel (0) target = $region25
    $region24: #{tpu_custom_call.1} parent=1 // pred_region
      %3806 = dma.done [#allocation3], 64
    $region25: #{tpu_custom_call.1} parent=1 // pred_fallthru
      _
    // Predicated region
    $region26: #{tpu_custom_call.1} parent=1 // pred_check
      _
    $region27: #{tpu_custom_call.1} parent=1 // pred_check_branch
      %3808 = sbr.rel (0) target = $region29
    $region28: #{tpu_custom_call.1} parent=1 // pred_region
      %3809 = dma.done [#allocation5], 512
    $region29: #{tpu_custom_call.1} parent=1 // pred_fallthru
      _
    %3810 = vsyncpa [#allocation3], 1
    %3811 = vsyncpa [#allocation5], 1

</llo_original>
